<compile_context>
chip_gen: v7x
topology: tpu7x:2x2x1
jax: 0.10.0
libtpu: 0.0.40
codegen_flags: <defaults>
</compile_context>

<pallas_src>
import functools

import jax
import jax.numpy as jnp
from jax.experimental import pallas as pl
from jax.experimental.pallas import tpu as pltpu


# ---------------------------------------------------------------------------
# Kernel helpers
# ---------------------------------------------------------------------------
def _zero_border(pad_ref, pad, hp, wp, c):
    """Zero only the halo ring of the padded scratch (interior is overwritten)."""
    zrow = jnp.zeros((pad, wp, c), jnp.float32)
    pad_ref[0:pad, :, :] = zrow
    pad_ref[hp - pad:hp, :, :] = zrow
    zcol = jnp.zeros((hp, pad, c), jnp.float32)
    pad_ref[:, 0:pad, :] = zcol
    pad_ref[:, wp - pad:wp, :] = zcol


def _conv3x3_im2col(pad_ref, w_flat, out_h, out_w, cin, dilation):
    """3x3 conv as a single im2col matmul.

    pad_ref: VMEM ref, (out_h + 2*dilation, out_w + 2*dilation, cin), zero border.
    w_flat:  (9*cin, cout) weights, row order (ky, kx, ci), BN scale pre-folded.
    Returns (out_h*out_w, cout) float32.
    """
    taps = []
    for ky in range(3):
        for kx in range(3):
            y0 = ky * dilation
            x0 = kx * dilation
            win = pad_ref[y0:y0 + out_h, x0:x0 + out_w, :]      # (out_h, out_w, cin)
            taps.append(win.reshape(out_h * out_w, cin))
    patches = jnp.concatenate(taps, axis=1)                     # (out_h*out_w, 9*cin)
    return jnp.dot(patches, w_flat, preferred_element_type=jnp.float32)


def _psm_block_kernel(x_ref, w1_ref, b1_ref, w2_ref, b2_ref, o_ref, pad_ref, *,
                      out_h, out_w, cin, cout, dilation):
    pad = dilation
    hp = out_h + 2 * pad
    wp = out_w + 2 * pad

    # In-VMEM zero padding: zero only the halo ring (megacore-safe, cheap), place
    # the input in the interior.
    _zero_border(pad_ref, pad, hp, wp, cin)
    pad_ref[pad:pad + out_h, pad:pad + out_w, :] = x_ref[0].astype(jnp.float32)

    # conv1 (single im2col matmul) + BN1 (scale pre-folded into w1) + ReLU.
    h = _conv3x3_im2col(pad_ref, w1_ref[...], out_h, out_w, cin, dilation)
    h = jnp.maximum(h + b1_ref[...], 0.0)                       # (out_h*out_w, Cout)

    # Reuse the halo scratch for the conv1 activation (border is still zero).
    pad_ref[pad:pad + out_h, pad:pad + out_w, :] = h.reshape(out_h, out_w, cout)

    # conv2 + BN2 + residual add (no trailing ReLU, as in PSMBasicBlock.forward).
    h2 = _conv3x3_im2col(pad_ref, w2_ref[...], out_h, out_w, cout, dilation)
    h2 = h2 + b2_ref[...]
    out = h2.reshape(out_h, out_w, cout) + x_ref[0].astype(jnp.float32)  # Cin == Cout
    o_ref[0] = out.astype(o_ref.dtype)


# ---------------------------------------------------------------------------
# Wrapper
# ---------------------------------------------------------------------------
def _fold_bn(gamma, beta, mean, var, eps=1e-5):
    scale = gamma / jnp.sqrt(var + eps)
    bias = beta - mean * scale
    return scale, bias


def psm_basic_block_forward(x_nchw, params, *, stride=1, pad=1, dilation=1):
    """Pallas implementation of PSMBasicBlock.forward (downsample=None)."""
    assert stride == 1, "stride>1 requires a downsample module (None here)"
    pad_eff = dilation if dilation > 1 else pad                 # matches convbn()
    assert pad_eff == dilation, "residual add requires 'same' convs (pad == dilation)"

    N, cin, H, W = x_nchw.shape
    cout = params["w1"].shape[-1]
    assert cin == cout, "downsample=None requires inplanes == planes"
    out_h, out_w = H, W

    s1, b1 = _fold_bn(*params["bn1"])
    s2, b2 = _fold_bn(*params["bn2"])
    # Fold BN scale into the conv weights; flatten to im2col layout (9*Cin, Cout).
    w1 = (params["w1"] * s1).reshape(9 * cin, cout).astype(jnp.float32)
    w2 = (params["w2"] * s2).reshape(9 * cout, cout).astype(jnp.float32)
    b1 = b1.reshape(1, cout).astype(jnp.float32)
    b2 = b2.reshape(1, cout).astype(jnp.float32)

    x_nhwc = jnp.transpose(x_nchw, (0, 2, 3, 1))                # NCHW -> NHWC

    kern = functools.partial(_psm_block_kernel, out_h=out_h, out_w=out_w,
                             cin=cin, cout=cout, dilation=dilation)

    out = pl.pallas_call(
        kern,
        grid=(N,),
        in_specs=[
            pl.BlockSpec((1, H, W, cin), lambda b: (b, 0, 0, 0)),
            pl.BlockSpec((9 * cin, cout), lambda b: (0, 0)),
            pl.BlockSpec((1, cout), lambda b: (0, 0)),
            pl.BlockSpec((9 * cout, cout), lambda b: (0, 0)),
            pl.BlockSpec((1, cout), lambda b: (0, 0)),
        ],
        out_specs=pl.BlockSpec((1, out_h, out_w, cout), lambda b: (b, 0, 0, 0)),
        out_shape=jax.ShapeDtypeStruct((N, out_h, out_w, cout), x_nchw.dtype),
        scratch_shapes=[
            pltpu.VMEM((out_h + 2 * dilation, out_w + 2 * dilation, cout),
                       jnp.float32),
        ],
        compiler_params=pltpu.CompilerParams(dimension_semantics=("parallel",)),
    )(x_nhwc, w1, b1, w2, b2)

    return jnp.transpose(out, (0, 3, 1, 2))                     # NHWC -> NCHW


# ---------------------------------------------------------------------------
# Pure-JAX reference (for correctness check)
# ---------------------------------------------------------------------------
def _ref_conv_bn(x_nhwc, w_hwio, scale, bias, stride, dilation, pad):
    out = jax.lax.conv_general_dilated(
        x_nhwc, w_hwio, window_strides=(stride, stride),
        padding=((pad, pad), (pad, pad)), rhs_dilation=(dilation, dilation),
        dimension_numbers=("NHWC", "HWIO", "NHWC"))
    return out * scale + bias


def _ref_forward(x_nchw, params, stride, pad, dilation):
    pad_eff = dilation if dilation > 1 else pad
    x = jnp.transpose(x_nchw, (0, 2, 3, 1))
    s1, b1 = _fold_bn(*params["bn1"])
    s2, b2 = _fold_bn(*params["bn2"])
    out = jax.nn.relu(_ref_conv_bn(x, params["w1"], s1, b1, stride, dilation, pad_eff))
    out = _ref_conv_bn(out, params["w2"], s2, b2, 1, dilation, pad_eff) + x
    return jnp.transpose(out, (0, 3, 1, 2))


# ---------------------------------------------------------------------------
# Main
# ---------------------------------------------------------------------------
if __name__ == "__main__":
    key = jax.random.PRNGKey(0)
    inplanes = planes = 4      # residual add requires inplanes == planes (downsample=None)
    N, H, W = 2, 16, 16
    stride, pad, dilation = 1, 1, 1

    ks = jax.random.split(key, 11)
    params = {
        # conv weights in HWIO layout (3, 3, Cin, Cout)
        "w1": 0.1 * jax.random.normal(ks[0], (3, 3, inplanes, planes), jnp.float32),
        "w2": 0.1 * jax.random.normal(ks[1], (3, 3, planes, planes), jnp.float32),
        # BN params: (gamma, beta, running_mean, running_var)
        "bn1": (1.0 + 0.1 * jax.random.normal(ks[2], (planes,), jnp.float32),
                0.1 * jax.random.normal(ks[3], (planes,), jnp.float32),
                0.1 * jax.random.normal(ks[4], (planes,), jnp.float32),
                1.0 + 0.1 * jax.random.uniform(ks[5], (planes,), jnp.float32)),
        "bn2": (1.0 + 0.1 * jax.random.normal(ks[6], (planes,), jnp.float32),
                0.1 * jax.random.normal(ks[7], (planes,), jnp.float32),
                0.1 * jax.random.normal(ks[8], (planes,), jnp.float32),
                1.0 + 0.1 * jax.random.uniform(ks[9], (planes,), jnp.float32)),
    }
    x = jax.random.normal(ks[10], (N, inplanes, H, W), jnp.float32)

    out = psm_basic_block_forward(x, params, stride=stride, pad=pad, dilation=dilation)
    out = jax.block_until_ready(out)

    ref = _ref_forward(x, params, stride, pad, dilation)
    assert out.shape == (N, planes, H, W), out.shape
    assert jnp.allclose(out, ref, atol=1e-4, rtol=1e-4), float(jnp.abs(out - ref).max())

    print("KERNEL_OK")
</pallas_src>

<mosaic_0001>
module attributes {stable_mosaic.version = 11 : i64} {
  func.func @_psm_block_kernel(%arg0: i32, %arg1: memref<1x16x16x4xf32, #tpu.memory_space<vmem>>, %arg2: memref<36x4xf32, #tpu.memory_space<vmem>>, %arg3: memref<1x4xf32, #tpu.memory_space<vmem>>, %arg4: memref<36x4xf32, #tpu.memory_space<vmem>>, %arg5: memref<1x4xf32, #tpu.memory_space<vmem>>, %arg6: memref<1x16x16x4xf32, #tpu.memory_space<vmem>>, %arg7: memref<18x18x4xf32, #tpu.memory_space<vmem>>) attributes {dimension_semantics = [#tpu.dimension_semantics<parallel>], iteration_bounds = array<i64: 2>, scalar_prefetch = 0 : i64, scratch_operands = 1 : i64, tpu.core_type = #tpu.core_type<tc>, window_params = [{transform_indices = @transform_0, window_bounds = array<i64: 1, 16, 16, 4>}, {pipeline_mode = #tpu.pipeline_mode<synchronous>, transform_indices = @transform_1, window_bounds = array<i64: 36, 4>}, {pipeline_mode = #tpu.pipeline_mode<synchronous>, transform_indices = @transform_2, window_bounds = array<i64: 1, 4>}, {pipeline_mode = #tpu.pipeline_mode<synchronous>, transform_indices = @transform_3, window_bounds = array<i64: 36, 4>}, {pipeline_mode = #tpu.pipeline_mode<synchronous>, transform_indices = @transform_4, window_bounds = array<i64: 1, 4>}, {transform_indices = @transform_5, window_bounds = array<i64: 1, 16, 16, 4>}]} {
    %cst = arith.constant 0.000000e+00 : f32
    %0 = vector.broadcast %cst : f32 to vector<1x18x4xf32>
    %c0 = arith.constant 0 : index
    %c0_0 = arith.constant 0 : index
    %c0_1 = arith.constant 0 : index
    %1 = vector.load %arg7[%c0, %c0_0, %c0_1] : memref<18x18x4xf32, #tpu.memory_space<vmem>>, vector<1x18x4xf32>
    tpu.vector_store %arg7[%c0, %c0_0, %c0_1], %0 {strides = array<i32>} : memref<18x18x4xf32, #tpu.memory_space<vmem>>, vector<1x18x4xf32>,
    %c17 = arith.constant 17 : index
    %c0_2 = arith.constant 0 : index
    %c0_3 = arith.constant 0 : index
    %2 = vector.load %arg7[%c17, %c0_2, %c0_3] : memref<18x18x4xf32, #tpu.memory_space<vmem>>, vector<1x18x4xf32>
    tpu.vector_store %arg7[%c17, %c0_2, %c0_3], %0 {strides = array<i32>} : memref<18x18x4xf32, #tpu.memory_space<vmem>>, vector<1x18x4xf32>,
    %cst_4 = arith.constant 0.000000e+00 : f32
    %3 = vector.broadcast %cst_4 : f32 to vector<18x1x4xf32>
    %c0_5 = arith.constant 0 : index
    %c0_6 = arith.constant 0 : index
    %c0_7 = arith.constant 0 : index
    %4 = vector.load %arg7[%c0_5, %c0_6, %c0_7] : memref<18x18x4xf32, #tpu.memory_space<vmem>>, vector<18x1x4xf32>
    tpu.vector_store %arg7[%c0_5, %c0_6, %c0_7], %3 {strides = array<i32>} : memref<18x18x4xf32, #tpu.memory_space<vmem>>, vector<18x1x4xf32>,
    %c0_8 = arith.constant 0 : index
    %c17_9 = arith.constant 17 : index
    %c0_10 = arith.constant 0 : index
    %5 = vector.load %arg7[%c0_8, %c17_9, %c0_10] : memref<18x18x4xf32, #tpu.memory_space<vmem>>, vector<18x1x4xf32>
    tpu.vector_store %arg7[%c0_8, %c17_9, %c0_10], %3 {strides = array<i32>} : memref<18x18x4xf32, #tpu.memory_space<vmem>>, vector<18x1x4xf32>,
    %c0_11 = arith.constant 0 : index
    %c0_12 = arith.constant 0 : index
    %c0_13 = arith.constant 0 : index
    %c0_14 = arith.constant 0 : index
    %6 = vector.load %arg1[%c0_11, %c0_12, %c0_13, %c0_14] : memref<1x16x16x4xf32, #tpu.memory_space<vmem>>, vector<1x16x16x4xf32>
    %7 = vector.shape_cast %6 : vector<1x16x16x4xf32> to vector<16x16x4xf32>
    %c1 = arith.constant 1 : index
    %c1_15 = arith.constant 1 : index
    %c0_16 = arith.constant 0 : index
    %8 = vector.load %arg7[%c1, %c1_15, %c0_16] : memref<18x18x4xf32, #tpu.memory_space<vmem>>, vector<16x16x4xf32>
    tpu.vector_store %arg7[%c1, %c1_15, %c0_16], %7 {strides = array<i32>} : memref<18x18x4xf32, #tpu.memory_space<vmem>>, vector<16x16x4xf32>,
    %c0_17 = arith.constant 0 : index
    %c0_18 = arith.constant 0 : index
    %9 = vector.load %arg2[%c0_17, %c0_18] : memref<36x4xf32, #tpu.memory_space<vmem>>, vector<36x4xf32>
    %c0_19 = arith.constant 0 : index
    %c0_20 = arith.constant 0 : index
    %c0_21 = arith.constant 0 : index
    %10 = vector.load %arg7[%c0_19, %c0_20, %c0_21] : memref<18x18x4xf32, #tpu.memory_space<vmem>>, vector<16x16x4xf32>
    %11 = vector.shape_cast %10 : vector<16x16x4xf32> to vector<256x4xf32>
    %c0_22 = arith.constant 0 : index
    %c1_23 = arith.constant 1 : index
    %c0_24 = arith.constant 0 : index
    %12 = vector.load %arg7[%c0_22, %c1_23, %c0_24] : memref<18x18x4xf32, #tpu.memory_space<vmem>>, vector<16x16x4xf32>
    %13 = vector.shape_cast %12 : vector<16x16x4xf32> to vector<256x4xf32>
    %c0_25 = arith.constant 0 : index
    %c2 = arith.constant 2 : index
    %c0_26 = arith.constant 0 : index
    %14 = vector.load %arg7[%c0_25, %c2, %c0_26] : memref<18x18x4xf32, #tpu.memory_space<vmem>>, vector<16x16x4xf32>
    %15 = vector.shape_cast %14 : vector<16x16x4xf32> to vector<256x4xf32>
    %c1_27 = arith.constant 1 : index
    %c0_28 = arith.constant 0 : index
    %c0_29 = arith.constant 0 : index
    %16 = vector.load %arg7[%c1_27, %c0_28, %c0_29] : memref<18x18x4xf32, #tpu.memory_space<vmem>>, vector<16x16x4xf32>
    %17 = vector.shape_cast %16 : vector<16x16x4xf32> to vector<256x4xf32>
    %c1_30 = arith.constant 1 : index
    %c1_31 = arith.constant 1 : index
    %c0_32 = arith.constant 0 : index
    %18 = vector.load %arg7[%c1_30, %c1_31, %c0_32] : memref<18x18x4xf32, #tpu.memory_space<vmem>>, vector<16x16x4xf32>
    %19 = vector.shape_cast %18 : vector<16x16x4xf32> to vector<256x4xf32>
    %c1_33 = arith.constant 1 : index
    %c2_34 = arith.constant 2 : index
    %c0_35 = arith.constant 0 : index
    %20 = vector.load %arg7[%c1_33, %c2_34, %c0_35] : memref<18x18x4xf32, #tpu.memory_space<vmem>>, vector<16x16x4xf32>
    %21 = vector.shape_cast %20 : vector<16x16x4xf32> to vector<256x4xf32>
    %c2_36 = arith.constant 2 : index
    %c0_37 = arith.constant 0 : index
    %c0_38 = arith.constant 0 : index
    %22 = vector.load %arg7[%c2_36, %c0_37, %c0_38] : memref<18x18x4xf32, #tpu.memory_space<vmem>>, vector<16x16x4xf32>
    %23 = vector.shape_cast %22 : vector<16x16x4xf32> to vector<256x4xf32>
    %c2_39 = arith.constant 2 : index
    %c1_40 = arith.constant 1 : index
    %c0_41 = arith.constant 0 : index
    %24 = vector.load %arg7[%c2_39, %c1_40, %c0_41] : memref<18x18x4xf32, #tpu.memory_space<vmem>>, vector<16x16x4xf32>
    %25 = vector.shape_cast %24 : vector<16x16x4xf32> to vector<256x4xf32>
    %c2_42 = arith.constant 2 : index
    %c2_43 = arith.constant 2 : index
    %c0_44 = arith.constant 0 : index
    %26 = vector.load %arg7[%c2_42, %c2_43, %c0_44] : memref<18x18x4xf32, #tpu.memory_space<vmem>>, vector<16x16x4xf32>
    %27 = vector.shape_cast %26 : vector<16x16x4xf32> to vector<256x4xf32>
    %28 = tpu.concatenate %11, %13, %15, %17, %19, %21, %23, %25, %27 in 1 : vector<256x4xf32>, vector<256x4xf32>, vector<256x4xf32>, vector<256x4xf32>, vector<256x4xf32>, vector<256x4xf32>, vector<256x4xf32>, vector<256x4xf32>, vector<256x4xf32> -> vector<256x36xf32>
    %cst_45 = arith.constant dense<0.000000e+00> : vector<256x4xf32>
    %29 = tpu.matmul %28, %9, %cst_45 {dimension_numbers = #tpu.dot_dimension_numbers<[1], [0], [0], [1], [0, 0, 1, 1], [], []>} : vector<256x36xf32>, vector<36x4xf32>, vector<256x4xf32> -> vector<256x4xf32>
    %c0_46 = arith.constant 0 : index
    %c0_47 = arith.constant 0 : index
    %30 = vector.load %arg3[%c0_46, %c0_47] : memref<1x4xf32, #tpu.memory_space<vmem>>, vector<1x4xf32>
    %31 = vector.broadcast %30 : vector<1x4xf32> to vector<256x4xf32>
    %32 = arith.addf %29, %31 : vector<256x4xf32>
    %cst_48 = arith.constant 0.000000e+00 : f32
    %33 = vector.broadcast %cst_48 : f32 to vector<256x4xf32>
    %34 = arith.maximumf %32, %33 : vector<256x4xf32>
    %35 = vector.shape_cast %34 : vector<256x4xf32> to vector<16x16x4xf32>
    %c1_49 = arith.constant 1 : index
    %c1_50 = arith.constant 1 : index
    %c0_51 = arith.constant 0 : index
    %36 = vector.load %arg7[%c1_49, %c1_50, %c0_51] : memref<18x18x4xf32, #tpu.memory_space<vmem>>, vector<16x16x4xf32>
    tpu.vector_store %arg7[%c1_49, %c1_50, %c0_51], %35 {strides = array<i32>} : memref<18x18x4xf32, #tpu.memory_space<vmem>>, vector<16x16x4xf32>,
    %c0_52 = arith.constant 0 : index
    %c0_53 = arith.constant 0 : index
    %37 = vector.load %arg4[%c0_52, %c0_53] : memref<36x4xf32, #tpu.memory_space<vmem>>, vector<36x4xf32>
    %c0_54 = arith.constant 0 : index
    %c0_55 = arith.constant 0 : index
    %c0_56 = arith.constant 0 : index
    %38 = vector.load %arg7[%c0_54, %c0_55, %c0_56] : memref<18x18x4xf32, #tpu.memory_space<vmem>>, vector<16x16x4xf32>
    %39 = vector.shape_cast %38 : vector<16x16x4xf32> to vector<256x4xf32>
    %c0_57 = arith.constant 0 : index
    %c1_58 = arith.constant 1 : index
    %c0_59 = arith.constant 0 : index
    %40 = vector.load %arg7[%c0_57, %c1_58, %c0_59] : memref<18x18x4xf32, #tpu.memory_space<vmem>>, vector<16x16x4xf32>
    %41 = vector.shape_cast %40 : vector<16x16x4xf32> to vector<256x4xf32>
    %c0_60 = arith.constant 0 : index
    %c2_61 = arith.constant 2 : index
    %c0_62 = arith.constant 0 : index
    %42 = vector.load %arg7[%c0_60, %c2_61, %c0_62] : memref<18x18x4xf32, #tpu.memory_space<vmem>>, vector<16x16x4xf32>
    %43 = vector.shape_cast %42 : vector<16x16x4xf32> to vector<256x4xf32>
    %c1_63 = arith.constant 1 : index
    %c0_64 = arith.constant 0 : index
    %c0_65 = arith.constant 0 : index
    %44 = vector.load %arg7[%c1_63, %c0_64, %c0_65] : memref<18x18x4xf32, #tpu.memory_space<vmem>>, vector<16x16x4xf32>
    %45 = vector.shape_cast %44 : vector<16x16x4xf32> to vector<256x4xf32>
    %c1_66 = arith.constant 1 : index
    %c1_67 = arith.constant 1 : index
    %c0_68 = arith.constant 0 : index
    %46 = vector.load %arg7[%c1_66, %c1_67, %c0_68] : memref<18x18x4xf32, #tpu.memory_space<vmem>>, vector<16x16x4xf32>
    %47 = vector.shape_cast %46 : vector<16x16x4xf32> to vector<256x4xf32>
    %c1_69 = arith.constant 1 : index
    %c2_70 = arith.constant 2 : index
    %c0_71 = arith.constant 0 : index
    %48 = vector.load %arg7[%c1_69, %c2_70, %c0_71] : memref<18x18x4xf32, #tpu.memory_space<vmem>>, vector<16x16x4xf32>
    %49 = vector.shape_cast %48 : vector<16x16x4xf32> to vector<256x4xf32>
    %c2_72 = arith.constant 2 : index
    %c0_73 = arith.constant 0 : index
    %c0_74 = arith.constant 0 : index
    %50 = vector.load %arg7[%c2_72, %c0_73, %c0_74] : memref<18x18x4xf32, #tpu.memory_space<vmem>>, vector<16x16x4xf32>
    %51 = vector.shape_cast %50 : vector<16x16x4xf32> to vector<256x4xf32>
    %c2_75 = arith.constant 2 : index
    %c1_76 = arith.constant 1 : index
    %c0_77 = arith.constant 0 : index
    %52 = vector.load %arg7[%c2_75, %c1_76, %c0_77] : memref<18x18x4xf32, #tpu.memory_space<vmem>>, vector<16x16x4xf32>
    %53 = vector.shape_cast %52 : vector<16x16x4xf32> to vector<256x4xf32>
    %c2_78 = arith.constant 2 : index
    %c2_79 = arith.constant 2 : index
    %c0_80 = arith.constant 0 : index
    %54 = vector.load %arg7[%c2_78, %c2_79, %c0_80] : memref<18x18x4xf32, #tpu.memory_space<vmem>>, vector<16x16x4xf32>
    %55 = vector.shape_cast %54 : vector<16x16x4xf32> to vector<256x4xf32>
    %56 = tpu.concatenate %39, %41, %43, %45, %47, %49, %51, %53, %55 in 1 : vector<256x4xf32>, vector<256x4xf32>, vector<256x4xf32>, vector<256x4xf32>, vector<256x4xf32>, vector<256x4xf32>, vector<256x4xf32>, vector<256x4xf32>, vector<256x4xf32> -> vector<256x36xf32>
    %cst_81 = arith.constant dense<0.000000e+00> : vector<256x4xf32>
    %57 = tpu.matmul %56, %37, %cst_81 {dimension_numbers = #tpu.dot_dimension_numbers<[1], [0], [0], [1], [0, 0, 1, 1], [], []>} : vector<256x36xf32>, vector<36x4xf32>, vector<256x4xf32> -> vector<256x4xf32>
    %c0_82 = arith.constant 0 : index
    %c0_83 = arith.constant 0 : index
    %58 = vector.load %arg5[%c0_82, %c0_83] : memref<1x4xf32, #tpu.memory_space<vmem>>, vector<1x4xf32>
    %59 = vector.broadcast %58 : vector<1x4xf32> to vector<256x4xf32>
    %60 = arith.addf %57, %59 : vector<256x4xf32>
    %61 = vector.shape_cast %60 : vector<256x4xf32> to vector<16x16x4xf32>
    %c0_84 = arith.constant 0 : index
    %c0_85 = arith.constant 0 : index
    %c0_86 = arith.constant 0 : index
    %c0_87 = arith.constant 0 : index
    %62 = vector.load %arg1[%c0_84, %c0_85, %c0_86, %c0_87] : memref<1x16x16x4xf32, #tpu.memory_space<vmem>>, vector<1x16x16x4xf32>
    %63 = vector.shape_cast %62 : vector<1x16x16x4xf32> to vector<16x16x4xf32>
    %64 = arith.addf %61, %63 : vector<16x16x4xf32>
    %c0_88 = arith.constant 0 : index
    %c0_89 = arith.constant 0 : index
    %c0_90 = arith.constant 0 : index
    %c0_91 = arith.constant 0 : index
    %65 = vector.load %arg6[%c0_88, %c0_89, %c0_90, %c0_91] : memref<1x16x16x4xf32, #tpu.memory_space<vmem>>, vector<1x16x16x4xf32>
    %66 = vector.shape_cast %65 : vector<1x16x16x4xf32> to vector<16x16x4xf32>
    %67 = vector.shape_cast %64 : vector<16x16x4xf32> to vector<1x16x16x4xf32>
    tpu.vector_store %arg6[%c0_88, %c0_89, %c0_90, %c0_91], %67 {strides = array<i32>} : memref<1x16x16x4xf32, #tpu.memory_space<vmem>>, vector<1x16x16x4xf32>,
    return
  }
  func.func @transform_0(%arg0: i32) -> (i32, i32, i32, i32) {
    %c0_i32 = arith.constant 0 : i32
    %c0_i32_0 = arith.constant 0 : i32
    %c0_i32_1 = arith.constant 0 : i32
    %c0_i32_2 = arith.constant 0 : i32
    return %arg0, %c0_i32, %c0_i32_0, %c0_i32_1 : i32, i32, i32, i32
  }
  func.func @transform_1(%arg0: i32) -> (i32, i32) {
    %c0_i32 = arith.constant 0 : i32
    %c0_i32_0 = arith.constant 0 : i32
    %c0_i32_1 = arith.constant 0 : i32
    return %c0_i32, %c0_i32_0 : i32, i32
  }
  func.func @transform_2(%arg0: i32) -> (i32, i32) {
    %c0_i32 = arith.constant 0 : i32
    %c0_i32_0 = arith.constant 0 : i32
    %c0_i32_1 = arith.constant 0 : i32
    return %c0_i32, %c0_i32_0 : i32, i32
  }
  func.func @transform_3(%arg0: i32) -> (i32, i32) {
    %c0_i32 = arith.constant 0 : i32
    %c0_i32_0 = arith.constant 0 : i32
    %c0_i32_1 = arith.constant 0 : i32
    return %c0_i32, %c0_i32_0 : i32, i32
  }
  func.func @transform_4(%arg0: i32) -> (i32, i32) {
    %c0_i32 = arith.constant 0 : i32
    %c0_i32_0 = arith.constant 0 : i32
    %c0_i32_1 = arith.constant 0 : i32
    return %c0_i32, %c0_i32_0 : i32, i32
  }
  func.func @transform_5(%arg0: i32) -> (i32, i32, i32, i32) {
    %c0_i32 = arith.constant 0 : i32
    %c0_i32_0 = arith.constant 0 : i32
    %c0_i32_1 = arith.constant 0 : i32
    %c0_i32_2 = arith.constant 0 : i32
    return %arg0, %c0_i32, %c0_i32_0, %c0_i32_1 : i32, i32, i32, i32
  }
}

</mosaic_0001>

<llo_original>
// kernel: tpu_custom_call.1
$region0: #{tpu_custom_call.1}
  #allocation0 [shape = 'u32[]', space=smem, size = 0x4, offset = 0x4, fixed_abs, tag = 'smem constant byte address 0x4 - core index']
  #allocation1 [shape = 'u32[144,128]{1,0:T(1,128)}', space=vmem, size = 0x12000, scoped, tag = 'internal scratch']
  #allocation2 [shape = 'f32[18,18,4]{2,1,0:T(8,128)}', space=vmem, size = 0x36000, scoped, tag = 'scratch operand']
  %s0 = inlined_call_operand.vmem [shape: f32[2,16,16,4], index: 0, kind: input, shape index: {}]
  %s1 = inlined_call_operand.vmem [shape: f32[36,4], index: 1, kind: input, shape index: {}]
  %s2 = inlined_call_operand.vmem [shape: f32[1,4], index: 2, kind: input, shape index: {}]
  %s3 = inlined_call_operand.vmem [shape: f32[36,4], index: 3, kind: input, shape index: {}]
  %s4 = inlined_call_operand.vmem [shape: f32[1,4], index: 4, kind: input, shape index: {}]
  %s5 = inlined_call_operand.vmem [shape: f32[2,16,16,4], index: 5, kind: output, shape index: {}]
  %s6 = sld [smem:[#allocation0]]
  $region53: #{tpu_custom_call.1} parent=0
    _
  %s8 = ssub.s32 1, %s6
  %s9 = scalar_select 0, %s8, %s6
  loop: start=0, step=1, limit=4
  $region2: #{tpu_custom_call.1} parent=0 // loop_pre_header
    _
  $region3: #{tpu_custom_call.1} parent=0 // loop_header
    %s11 = sphi 0, %s15
    %p12 = scmp.ge.s32.totalorder %s11, 4
    %s21 = sphi 0, %s23
    %s24 = sphi 0, %s21
    %s25 = sphi 0, %s24
    %s41 = sphi 0, %s25
    %s45 = sphi 0, %s45
    %s47 = sphi 0, %s45
    %s48 = sphi 0, %s47
    %s62 = sphi 0, %s48
    %s66 = sphi 0, %s66
    %s68 = sphi 0, %s66
    %s69 = sphi 0, %s68
    %s83 = sphi 0, %s69
    %s87 = sphi 0, %s87
    %s89 = sphi 0, %s87
    %s90 = sphi 0, %s89
    %s104 = sphi 0, %s90
    %s108 = sphi 0, %s108
    %s110 = sphi 0, %s108
    %s111 = sphi 0, %s110
    %s125 = sphi 0, %s111
    %s131 = sphi 0, %s133
    %s134 = sphi 0, %s131
    %s135 = sphi 0, %s134
    %s151 = sphi 0, %s135
  $region4: #{tpu_custom_call.1} parent=0 // loop_header_branch
    %14 = sbr.rel (%p12) target = $region8
  $region5: #{tpu_custom_call.1} parent=0 // loop_body
    %s16 = ssub.s32 %s11, 1
    %s17 = ssub.s32 %s11, 2
    %s18 = sadd.s32 %s11, 1
    %s19 = ssub.s32 %s11, %s18
    %p20 = scmp.eq.s32.totalorder %s19, 0
    %s22 = sadd.s32 %s21, 1
    %s23 = scalar_select %p20, %s21, %s22
    %p26 = pneg %p20
    %p27 = scmp.eq.s32.totalorder %s11, 1
    %p28 = por %p26, %p27
    %p29 = scmp.ne.s32.totalorder %s21, %s24
    %p30 = scmp.eq.s32.totalorder %s11, 0
    %p31 = por %p29, %p30
    %p32 = scmp.ne.s32.totalorder %s21, %s24
    %p33 = scmp.eq.s32.totalorder %s16, 1
    %p34 = por %p32, %p33
    %p35 = scmp.ne.s32.totalorder %s24, %s25
    %p36 = scmp.eq.s32.totalorder %s16, 0
    %p37 = por %p35, %p36
    %p38 = scmp.ne.s32.totalorder %s24, %s25
    %p39 = scmp.eq.s32.totalorder %s17, 1
    %p40 = por %p38, %p39
    %p42 = scmp.ne.s32.totalorder %s25, %s41
    %p43 = scmp.eq.s32.totalorder %s17, 0
    %p44 = por %p42, %p43
    %s46 = sadd.s32 %s45, 1
    %p49 = scmp.eq.s32.totalorder %s11, 1
    %p50 = scmp.ne.s32.totalorder %s45, %s47
    %p51 = scmp.eq.s32.totalorder %s11, 0
    %p52 = por %p50, %p51
    %p53 = scmp.ne.s32.totalorder %s45, %s47
    %p54 = scmp.eq.s32.totalorder %s16, 1
    %p55 = por %p53, %p54
    %p56 = scmp.ne.s32.totalorder %s47, %s48
    %p57 = scmp.eq.s32.totalorder %s16, 0
    %p58 = por %p56, %p57
    %p59 = scmp.ne.s32.totalorder %s47, %s48
    %p60 = scmp.eq.s32.totalorder %s17, 1
    %p61 = por %p59, %p60
    %p63 = scmp.ne.s32.totalorder %s48, %s62
    %p64 = scmp.eq.s32.totalorder %s17, 0
    %p65 = por %p63, %p64
    %s67 = sadd.s32 %s66, 1
    %p70 = scmp.eq.s32.totalorder %s11, 1
    %p71 = scmp.ne.s32.totalorder %s66, %s68
    %p72 = scmp.eq.s32.totalorder %s11, 0
    %p73 = por %p71, %p72
    %p74 = scmp.ne.s32.totalorder %s66, %s68
    %p75 = scmp.eq.s32.totalorder %s16, 1
    %p76 = por %p74, %p75
    %p77 = scmp.ne.s32.totalorder %s68, %s69
    %p78 = scmp.eq.s32.totalorder %s16, 0
    %p79 = por %p77, %p78
    %p80 = scmp.ne.s32.totalorder %s68, %s69
    %p81 = scmp.eq.s32.totalorder %s17, 1
    %p82 = por %p80, %p81
    %p84 = scmp.ne.s32.totalorder %s69, %s83
    %p85 = scmp.eq.s32.totalorder %s17, 0
    %p86 = por %p84, %p85
    %s88 = sadd.s32 %s87, 1
    %p91 = scmp.eq.s32.totalorder %s11, 1
    %p92 = scmp.ne.s32.totalorder %s87, %s89
    %p93 = scmp.eq.s32.totalorder %s11, 0
    %p94 = por %p92, %p93
    %p95 = scmp.ne.s32.totalorder %s87, %s89
    %p96 = scmp.eq.s32.totalorder %s16, 1
    %p97 = por %p95, %p96
    %p98 = scmp.ne.s32.totalorder %s89, %s90
    %p99 = scmp.eq.s32.totalorder %s16, 0
    %p100 = por %p98, %p99
    %p101 = scmp.ne.s32.totalorder %s89, %s90
    %p102 = scmp.eq.s32.totalorder %s17, 1
    %p103 = por %p101, %p102
    %p105 = scmp.ne.s32.totalorder %s90, %s104
    %p106 = scmp.eq.s32.totalorder %s17, 0
    %p107 = por %p105, %p106
    %s109 = sadd.s32 %s108, 1
    %p112 = scmp.eq.s32.totalorder %s11, 1
    %p113 = scmp.ne.s32.totalorder %s108, %s110
    %p114 = scmp.eq.s32.totalorder %s11, 0
    %p115 = por %p113, %p114
    %p116 = scmp.ne.s32.totalorder %s108, %s110
    %p117 = scmp.eq.s32.totalorder %s16, 1
    %p118 = por %p116, %p117
    %p119 = scmp.ne.s32.totalorder %s110, %s111
    %p120 = scmp.eq.s32.totalorder %s16, 0
    %p121 = por %p119, %p120
    %p122 = scmp.ne.s32.totalorder %s110, %s111
    %p123 = scmp.eq.s32.totalorder %s17, 1
    %p124 = por %p122, %p123
    %p126 = scmp.ne.s32.totalorder %s111, %s125
    %p127 = scmp.eq.s32.totalorder %s17, 0
    %p128 = por %p126, %p127
    %s129 = ssub.s32 %s11, %s18
    %p130 = scmp.eq.s32.totalorder %s129, 0
    %s132 = sadd.s32 %s131, 1
    %s133 = scalar_select %p130, %s131, %s132
    %p136 = pneg %p130
    %p137 = scmp.eq.s32.totalorder %s11, 1
    %p138 = por %p136, %p137
    %p139 = scmp.ne.s32.totalorder %s131, %s134
    %p140 = scmp.eq.s32.totalorder %s11, 0
    %p141 = por %p139, %p140
    %p142 = scmp.ne.s32.totalorder %s131, %s134
    %p143 = scmp.eq.s32.totalorder %s16, 1
    %p144 = por %p142, %p143
    %p145 = scmp.ne.s32.totalorder %s134, %s135
    %p146 = scmp.eq.s32.totalorder %s16, 0
    %p147 = por %p145, %p146
    %p148 = scmp.ne.s32.totalorder %s134, %s135
    %p149 = scmp.eq.s32.totalorder %s17, 1
    %p150 = por %p148, %p149
    %p152 = scmp.ne.s32.totalorder %s135, %s151
    %p153 = scmp.eq.s32.totalorder %s17, 0
    %p154 = por %p152, %p153
    %p155 = scmp.le.s32.totalorder 1, %s11
    %p156 = scmp.lt.s32.totalorder %s11, 3
    %p157 = pnand %p155, %p156
    %p158 = pneg %p157
    // Predicated region
    $region9: #{tpu_custom_call.1} parent=5 // pred_check
      _
    $region10: #{tpu_custom_call.1} parent=5 // pred_check_branch
      %160 = sbr.rel (%p157) target = $region12
    $region11: #{tpu_custom_call.1} parent=5 // pred_region
      %s161 = ssub.s32 %s11, 1
      // Predicated region
      $region13: #{tpu_custom_call.1} parent=11 // pred_check
        %p162 = pneg %p58
      $region14: #{tpu_custom_call.1} parent=11 // pred_check_branch
        %164 = sbr.rel (%p162) target = $region16
      $region15: #{tpu_custom_call.1} parent=11 // pred_region
        _
      $region16: #{tpu_custom_call.1} parent=11 // pred_fallthru
        _
      // Predicated region
      $region17: #{tpu_custom_call.1} parent=11 // pred_check
        %p165 = pneg %p79
      $region18: #{tpu_custom_call.1} parent=11 // pred_check_branch
        %167 = sbr.rel (%p165) target = $region20
      $region19: #{tpu_custom_call.1} parent=11 // pred_region
        _
      $region20: #{tpu_custom_call.1} parent=11 // pred_fallthru
        _
      // Predicated region
      $region21: #{tpu_custom_call.1} parent=11 // pred_check
        %p168 = pneg %p100
      $region22: #{tpu_custom_call.1} parent=11 // pred_check_branch
        %170 = sbr.rel (%p168) target = $region24
      $region23: #{tpu_custom_call.1} parent=11 // pred_region
        _
      $region24: #{tpu_custom_call.1} parent=11 // pred_fallthru
        _
      // Predicated region
      $region25: #{tpu_custom_call.1} parent=11 // pred_check
        %p171 = pneg %p121
      $region26: #{tpu_custom_call.1} parent=11 // pred_check_branch
        %173 = sbr.rel (%p171) target = $region28
      $region27: #{tpu_custom_call.1} parent=11 // pred_region
        _
      $region28: #{tpu_custom_call.1} parent=11 // pred_fallthru
        _
    $region12: #{tpu_custom_call.1} parent=5 // pred_fallthru
      _
    %p174 = scmp.lt.s32.totalorder %s11, 2
    // Predicated region
    $region29: #{tpu_custom_call.1} parent=5 // pred_check
      %p175 = pneg %p174
    $region30: #{tpu_custom_call.1} parent=5 // pred_check_branch
      %177 = sbr.rel (%p175) target = $region32
    $region31: #{tpu_custom_call.1} parent=5 // pred_region
      // Predicated region
      $region33: #{tpu_custom_call.1} parent=31 // pred_check
        %p178 = pneg %p31
      $region34: #{tpu_custom_call.1} parent=31 // pred_check_branch
        %180 = sbr.rel (%p178) target = $region36
      $region35: #{tpu_custom_call.1} parent=31 // pred_region
        %p181 = scmp.lt.s32.totalorder %s11, 1
        %s182 = scalar_select %p181, %s11, 1
        %s183 = smul.addr %s182, 32
        %s184 = smul.addr %s183, 8
        %s185 = scalar_lea.vmem %s0, %s184
      $region36: #{tpu_custom_call.1} parent=31 // pred_fallthru
        _
    $region32: #{tpu_custom_call.1} parent=5 // pred_fallthru
      _
    %p186 = scmp.le.s32.totalorder 1, %s11
    %p187 = scmp.lt.s32.totalorder %s11, 3
    %p188 = pnand %p186, %p187
    %p189 = pneg %p188
    // Predicated region
    $region37: #{tpu_custom_call.1} parent=5 // pred_check
      _
    $region38: #{tpu_custom_call.1} parent=5 // pred_check_branch
      %191 = sbr.rel (%p188) target = $region40
    $region39: #{tpu_custom_call.1} parent=5 // pred_region
      %s192 = ssub.s32 %s11, 1
      %p193 = scmp.lt.s32.totalorder %s16, 1
      %s194 = scalar_select %p193, %s16, 1
      %s195 = smul.addr %s194, 32
      %s196 = smul.addr %s195, 8
      %s197 = scalar_lea.vmem %s0, %s196
      %p198 = pneg %p37
      %p199 = pneg %p34
      %p200 = pneg %p58
      %p201 = pneg %p55
      %p202 = pneg %p79
      %p203 = pneg %p76
      %p204 = pneg %p100
      %p205 = pneg %p97
      %p206 = pneg %p121
      %p207 = pneg %p118
      %p208 = pneg %p147
      %p209 = pneg %p144
      %p210 = scmp.lt.s32.totalorder %s16, 1
      %s211 = scalar_select %p210, %s16, 1
      %s212 = smul.addr %s211, 32
      %s213 = smul.addr %s212, 8
      %s214 = scalar_lea.vmem %s5, %s213
      %p215 = scmp.lt.s32.totalorder %s16, 1
      %s216 = scalar_select %p215, %s16, 1
      %s217 = smul.addr %s216, 32
      %s218 = smul.addr %s217, 8
      %s219 = scalar_lea.vmem %s0, %s218
      %p220 = scmp.lt.s32.totalorder %s16, 1
      %s221 = scalar_select %p220, %s16, 1
      %s222 = smul.addr %s221, 32
      %s223 = smul.addr %s222, 8
      %s224 = scalar_lea.vmem %s5, %s223
      %vm225 = vcmask 31744
      %226 = vst.msk [vmem:[#allocation2] sm:$0xff] %vm225, 0.0
      %227 = vst.msk [vmem:[#allocation2 + $0x8] sm:$0xff] %vm225, 0.0
      %vm228 = vcmask 25600
      %229 = vst.msk [vmem:[#allocation2 + $0x10] sm:$0x3] %vm228, 0.0
      %s230 = scalar_lea.vmem [#allocation2], 408
      %231 = vst.msk [vmem:[%s230] sm:$0xff] %vm225, 0.0
      %232 = vst.msk [vmem:[%s230 + $0x8] sm:$0xff] %vm225, 0.0
      %233 = vst.msk [vmem:[%s230 + $0x10] sm:$0x3] %vm228, 0.0
      %vm234 = vcmask 24576
      %235 = vst.msk [vmem:[#allocation2] sm:$0x1] %vm234, 0.0
      %236 = vst.msk [vmem:[#allocation2 + $0x18] sm:$0x1] %vm234, 0.0
      %237 = vst.msk [vmem:[#allocation2 + $0x30] sm:$0x1] %vm234, 0.0
      %238 = vst.msk [vmem:[#allocation2 + $0x48] sm:$0x1] %vm234, 0.0
      %239 = vst.msk [vmem:[#allocation2 + $0x60] sm:$0x1] %vm234, 0.0
      %240 = vst.msk [vmem:[#allocation2 + $0x78] sm:$0x1] %vm234, 0.0
      %241 = vst.msk [vmem:[#allocation2 + $0x90] sm:$0x1] %vm234, 0.0
      %242 = vst.msk [vmem:[#allocation2 + $0xa8] sm:$0x1] %vm234, 0.0
      %243 = vst.msk [vmem:[#allocation2 + $0xc0] sm:$0x1] %vm234, 0.0
      %244 = vst.msk [vmem:[#allocation2 + $0xd8] sm:$0x1] %vm234, 0.0
      %245 = vst.msk [vmem:[#allocation2 + $0xf0] sm:$0x1] %vm234, 0.0
      %246 = vst.msk [vmem:[#allocation2 + $0x108] sm:$0x1] %vm234, 0.0
      %247 = vst.msk [vmem:[#allocation2 + $0x120] sm:$0x1] %vm234, 0.0
      %248 = vst.msk [vmem:[#allocation2 + $0x138] sm:$0x1] %vm234, 0.0
      %249 = vst.msk [vmem:[#allocation2 + $0x150] sm:$0x1] %vm234, 0.0
      %250 = vst.msk [vmem:[#allocation2 + $0x168] sm:$0x1] %vm234, 0.0
      %251 = vst.msk [vmem:[#allocation2 + $0x180] sm:$0x1] %vm234, 0.0
      %252 = vst.msk [vmem:[#allocation2 + $0x198] sm:$0x1] %vm234, 0.0
      %253 = vst.msk [vmem:[#allocation2 + $0x11] sm:$0x1] %vm234, 0.0
      %254 = vst.msk [vmem:[#allocation2 + $0x29] sm:$0x1] %vm234, 0.0
      %255 = vst.msk [vmem:[#allocation2 + $0x41] sm:$0x1] %vm234, 0.0
      %256 = vst.msk [vmem:[#allocation2 + $0x59] sm:$0x1] %vm234, 0.0
      %257 = vst.msk [vmem:[#allocation2 + $0x71] sm:$0x1] %vm234, 0.0
      %258 = vst.msk [vmem:[#allocation2 + $0x89] sm:$0x1] %vm234, 0.0
      %259 = vst.msk [vmem:[#allocation2 + $0xa1] sm:$0x1] %vm234, 0.0
      %260 = vst.msk [vmem:[#allocation2 + $0xb9] sm:$0x1] %vm234, 0.0
      %261 = vst.msk [vmem:[#allocation2 + $0xd1] sm:$0x1] %vm234, 0.0
      %262 = vst.msk [vmem:[#allocation2 + $0xe9] sm:$0x1] %vm234, 0.0
      %263 = vst.msk [vmem:[#allocation2 + $0x101] sm:$0x1] %vm234, 0.0
      %264 = vst.msk [vmem:[#allocation2 + $0x119] sm:$0x1] %vm234, 0.0
      %265 = vst.msk [vmem:[#allocation2 + $0x131] sm:$0x1] %vm234, 0.0
      %266 = vst.msk [vmem:[#allocation2 + $0x149] sm:$0x1] %vm234, 0.0
      %267 = vst.msk [vmem:[#allocation2 + $0x161] sm:$0x1] %vm234, 0.0
      %268 = vst.msk [vmem:[#allocation2 + $0x179] sm:$0x1] %vm234, 0.0
      %269 = vst.msk [vmem:[#allocation2 + $0x191] sm:$0x1] %vm234, 0.0
      %270 = vst.msk [vmem:[#allocation2 + $0x1a9] sm:$0x1] %vm234, 0.0
      %v271 = vld [vmem:[%s219] sm:$0xff]
      %v272 = vld [vmem:[%s219 + $0x8] sm:$0xff]
      %v273 = vld [vmem:[%s219 + $0x10] sm:$0xff]
      %v274 = vld [vmem:[%s219 + $0x18] sm:$0xff]
      %v275 = vld [vmem:[%s219 + $0x20] sm:$0xff]
      %v276 = vld [vmem:[%s219 + $0x28] sm:$0xff]
      %v277 = vld [vmem:[%s219 + $0x30] sm:$0xff]
      %v278 = vld [vmem:[%s219 + $0x38] sm:$0xff]
      %v279 = vld [vmem:[%s219 + $0x40] sm:$0xff]
      %v280 = vld [vmem:[%s219 + $0x48] sm:$0xff]
      %v281 = vld [vmem:[%s219 + $0x50] sm:$0xff]
      %v282 = vld [vmem:[%s219 + $0x58] sm:$0xff]
      %v283 = vld [vmem:[%s219 + $0x60] sm:$0xff]
      %v284 = vld [vmem:[%s219 + $0x68] sm:$0xff]
      %v285 = vld [vmem:[%s219 + $0x70] sm:$0xff]
      %v286 = vld [vmem:[%s219 + $0x78] sm:$0xff]
      %v287 = vld [vmem:[%s219 + $0x80] sm:$0xff]
      %v288 = vld [vmem:[%s219 + $0x88] sm:$0xff]
      %v289 = vld [vmem:[%s219 + $0x90] sm:$0xff]
      %v290 = vld [vmem:[%s219 + $0x98] sm:$0xff]
      %v291 = vld [vmem:[%s219 + $0xa0] sm:$0xff]
      %v292 = vld [vmem:[%s219 + $0xa8] sm:$0xff]
      %v293 = vld [vmem:[%s219 + $0xb0] sm:$0xff]
      %v294 = vld [vmem:[%s219 + $0xb8] sm:$0xff]
      %v295 = vld [vmem:[%s219 + $0xc0] sm:$0xff]
      %v296 = vld [vmem:[%s219 + $0xc8] sm:$0xff]
      %v297 = vld [vmem:[%s219 + $0xd0] sm:$0xff]
      %v298 = vld [vmem:[%s219 + $0xd8] sm:$0xff]
      %v299 = vld [vmem:[%s219 + $0xe0] sm:$0xff]
      %v300 = vld [vmem:[%s219 + $0xe8] sm:$0xff]
      %v301 = vld [vmem:[%s219 + $0xf0] sm:$0xff]
      %v302 = vld [vmem:[%s219 + $0xf8] sm:$0xff]
      %s303 = scalar_lea.vmem [#allocation2], 24
      %304 = vst.msk [vmem:[%s303 + $0x1] sm:$0xff] %vm225, %v271
      %305 = vst.msk [vmem:[%s303 + $0x9] sm:$0xff] %vm225, %v272
      %306 = vst.msk [vmem:[%s303 + $0x19] sm:$0xff] %vm225, %v273
      %307 = vst.msk [vmem:[%s303 + $0x21] sm:$0xff] %vm225, %v274
      %308 = vst.msk [vmem:[%s303 + $0x31] sm:$0xff] %vm225, %v275
      %309 = vst.msk [vmem:[%s303 + $0x39] sm:$0xff] %vm225, %v276
      %310 = vst.msk [vmem:[%s303 + $0x49] sm:$0xff] %vm225, %v277
      %311 = vst.msk [vmem:[%s303 + $0x51] sm:$0xff] %vm225, %v278
      %312 = vst.msk [vmem:[%s303 + $0x61] sm:$0xff] %vm225, %v279
      %313 = vst.msk [vmem:[%s303 + $0x69] sm:$0xff] %vm225, %v280
      %314 = vst.msk [vmem:[%s303 + $0x79] sm:$0xff] %vm225, %v281
      %315 = vst.msk [vmem:[%s303 + $0x81] sm:$0xff] %vm225, %v282
      %316 = vst.msk [vmem:[%s303 + $0x91] sm:$0xff] %vm225, %v283
      %317 = vst.msk [vmem:[%s303 + $0x99] sm:$0xff] %vm225, %v284
      %318 = vst.msk [vmem:[%s303 + $0xa9] sm:$0xff] %vm225, %v285
      %319 = vst.msk [vmem:[%s303 + $0xb1] sm:$0xff] %vm225, %v286
      %320 = vst.msk [vmem:[%s303 + $0xc1] sm:$0xff] %vm225, %v287
      %321 = vst.msk [vmem:[%s303 + $0xc9] sm:$0xff] %vm225, %v288
      %322 = vst.msk [vmem:[%s303 + $0xd9] sm:$0xff] %vm225, %v289
      %323 = vst.msk [vmem:[%s303 + $0xe1] sm:$0xff] %vm225, %v290
      %324 = vst.msk [vmem:[%s303 + $0xf1] sm:$0xff] %vm225, %v291
      %325 = vst.msk [vmem:[%s303 + $0xf9] sm:$0xff] %vm225, %v292
      %326 = vst.msk [vmem:[%s303 + $0x109] sm:$0xff] %vm225, %v293
      %327 = vst.msk [vmem:[%s303 + $0x111] sm:$0xff] %vm225, %v294
      %328 = vst.msk [vmem:[%s303 + $0x121] sm:$0xff] %vm225, %v295
      %329 = vst.msk [vmem:[%s303 + $0x129] sm:$0xff] %vm225, %v296
      %330 = vst.msk [vmem:[%s303 + $0x139] sm:$0xff] %vm225, %v297
      %331 = vst.msk [vmem:[%s303 + $0x141] sm:$0xff] %vm225, %v298
      %332 = vst.msk [vmem:[%s303 + $0x151] sm:$0xff] %vm225, %v299
      %333 = vst.msk [vmem:[%s303 + $0x159] sm:$0xff] %vm225, %v300
      %334 = vst.msk [vmem:[%s303 + $0x169] sm:$0xff] %vm225, %v301
      %335 = vst.msk [vmem:[%s303 + $0x171] sm:$0xff] %vm225, %v302
      %v336 = vld [vmem:[%s1] sm:$0xff]
      %v337 = vld [vmem:[%s1 + $0x8] sm:$0xff]
      %v338 = vld [vmem:[%s1 + $0x10] sm:$0xff]
      %v339 = vld [vmem:[%s1 + $0x18] sm:$0xff]
      %v340 = vld [vmem:[%s1 + $0x20] sm:$0xf]
      %v341 = vld [vmem:[#allocation2] sm:$0xff]
      %v342 = vld [vmem:[#allocation2 + $0x8] sm:$0xff]
      %v343 = vld [vmem:[#allocation2 + $0x18] sm:$0xff]
      %v344 = vld [vmem:[#allocation2 + $0x20] sm:$0xff]
      %v345 = vld [vmem:[#allocation2 + $0x30] sm:$0xff]
      %v346 = vld [vmem:[#allocation2 + $0x38] sm:$0xff]
      %v347 = vld [vmem:[#allocation2 + $0x48] sm:$0xff]
      %v348 = vld [vmem:[#allocation2 + $0x50] sm:$0xff]
      %v349 = vld [vmem:[#allocation2 + $0x60] sm:$0xff]
      %v350 = vld [vmem:[#allocation2 + $0x68] sm:$0xff]
      %v351 = vld [vmem:[#allocation2 + $0x78] sm:$0xff]
      %v352 = vld [vmem:[#allocation2 + $0x80] sm:$0xff]
      %v353 = vld [vmem:[#allocation2 + $0x90] sm:$0xff]
      %v354 = vld [vmem:[#allocation2 + $0x98] sm:$0xff]
      %v355 = vld [vmem:[#allocation2 + $0xa8] sm:$0xff]
      %v356 = vld [vmem:[#allocation2 + $0xb0] sm:$0xff]
      %v357 = vld [vmem:[#allocation2 + $0xc0] sm:$0xff]
      %v358 = vld [vmem:[#allocation2 + $0xc8] sm:$0xff]
      %v359 = vld [vmem:[#allocation2 + $0xd8] sm:$0xff]
      %v360 = vld [vmem:[#allocation2 + $0xe0] sm:$0xff]
      %v361 = vld [vmem:[#allocation2 + $0xf0] sm:$0xff]
      %v362 = vld [vmem:[#allocation2 + $0xf8] sm:$0xff]
      %v363 = vld [vmem:[#allocation2 + $0x108] sm:$0xff]
      %v364 = vld [vmem:[#allocation2 + $0x110] sm:$0xff]
      %v365 = vld [vmem:[#allocation2 + $0x120] sm:$0xff]
      %v366 = vld [vmem:[#allocation2 + $0x128] sm:$0xff]
      %v367 = vld [vmem:[#allocation2 + $0x138] sm:$0xff]
      %v368 = vld [vmem:[#allocation2 + $0x140] sm:$0xff]
      %v369 = vld [vmem:[#allocation2 + $0x150] sm:$0xff]
      %v370 = vld [vmem:[#allocation2 + $0x158] sm:$0xff]
      %v371 = vld [vmem:[#allocation2 + $0x168] sm:$0xff]
      %v372 = vld [vmem:[#allocation2 + $0x170] sm:$0xff]
      %v373 = vld [vmem:[#allocation2 + $0x1] sm:$0xff]
      %v374 = vld [vmem:[#allocation2 + $0x9] sm:$0xff]
      %v375 = vld [vmem:[#allocation2 + $0x19] sm:$0xff]
      %v376 = vld [vmem:[#allocation2 + $0x21] sm:$0xff]
      %v377 = vld [vmem:[#allocation2 + $0x31] sm:$0xff]
      %v378 = vld [vmem:[#allocation2 + $0x39] sm:$0xff]
      %v379 = vld [vmem:[#allocation2 + $0x49] sm:$0xff]
      %v380 = vld [vmem:[#allocation2 + $0x51] sm:$0xff]
      %v381 = vld [vmem:[#allocation2 + $0x61] sm:$0xff]
      %v382 = vld [vmem:[#allocation2 + $0x69] sm:$0xff]
      %v383 = vld [vmem:[#allocation2 + $0x79] sm:$0xff]
      %v384 = vld [vmem:[#allocation2 + $0x81] sm:$0xff]
      %v385 = vld [vmem:[#allocation2 + $0x91] sm:$0xff]
      %v386 = vld [vmem:[#allocation2 + $0x99] sm:$0xff]
      %v387 = vld [vmem:[#allocation2 + $0xa9] sm:$0xff]
      %v388 = vld [vmem:[#allocation2 + $0xb1] sm:$0xff]
      %v389 = vld [vmem:[#allocation2 + $0xc1] sm:$0xff]
      %v390 = vld [vmem:[#allocation2 + $0xc9] sm:$0xff]
      %v391 = vld [vmem:[#allocation2 + $0xd9] sm:$0xff]
      %v392 = vld [vmem:[#allocation2 + $0xe1] sm:$0xff]
      %v393 = vld [vmem:[#allocation2 + $0xf1] sm:$0xff]
      %v394 = vld [vmem:[#allocation2 + $0xf9] sm:$0xff]
      %v395 = vld [vmem:[#allocation2 + $0x109] sm:$0xff]
      %v396 = vld [vmem:[#allocation2 + $0x111] sm:$0xff]
      %v397 = vld [vmem:[#allocation2 + $0x121] sm:$0xff]
      %v398 = vld [vmem:[#allocation2 + $0x129] sm:$0xff]
      %v399 = vld [vmem:[#allocation2 + $0x139] sm:$0xff]
      %v400 = vld [vmem:[#allocation2 + $0x141] sm:$0xff]
      %v401 = vld [vmem:[#allocation2 + $0x151] sm:$0xff]
      %v402 = vld [vmem:[#allocation2 + $0x159] sm:$0xff]
      %v403 = vld [vmem:[#allocation2 + $0x169] sm:$0xff]
      %v404 = vld [vmem:[#allocation2 + $0x171] sm:$0xff]
      %v405 = vld [vmem:[#allocation2 + $0x2] sm:$0xff]
      %v406 = vld [vmem:[#allocation2 + $0xa] sm:$0xff]
      %v407 = vld [vmem:[#allocation2 + $0x1a] sm:$0xff]
      %v408 = vld [vmem:[#allocation2 + $0x22] sm:$0xff]
      %v409 = vld [vmem:[#allocation2 + $0x32] sm:$0xff]
      %v410 = vld [vmem:[#allocation2 + $0x3a] sm:$0xff]
      %v411 = vld [vmem:[#allocation2 + $0x4a] sm:$0xff]
      %v412 = vld [vmem:[#allocation2 + $0x52] sm:$0xff]
      %v413 = vld [vmem:[#allocation2 + $0x62] sm:$0xff]
      %v414 = vld [vmem:[#allocation2 + $0x6a] sm:$0xff]
      %v415 = vld [vmem:[#allocation2 + $0x7a] sm:$0xff]
      %v416 = vld [vmem:[#allocation2 + $0x82] sm:$0xff]
      %v417 = vld [vmem:[#allocation2 + $0x92] sm:$0xff]
      %v418 = vld [vmem:[#allocation2 + $0x9a] sm:$0xff]
      %v419 = vld [vmem:[#allocation2 + $0xaa] sm:$0xff]
      %v420 = vld [vmem:[#allocation2 + $0xb2] sm:$0xff]
      %v421 = vld [vmem:[#allocation2 + $0xc2] sm:$0xff]
      %v422 = vld [vmem:[#allocation2 + $0xca] sm:$0xff]
      %v423 = vld [vmem:[#allocation2 + $0xda] sm:$0xff]
      %v424 = vld [vmem:[#allocation2 + $0xe2] sm:$0xff]
      %v425 = vld [vmem:[#allocation2 + $0xf2] sm:$0xff]
      %v426 = vld [vmem:[#allocation2 + $0xfa] sm:$0xff]
      %v427 = vld [vmem:[#allocation2 + $0x10a] sm:$0xff]
      %v428 = vld [vmem:[#allocation2 + $0x112] sm:$0xff]
      %v429 = vld [vmem:[#allocation2 + $0x122] sm:$0xff]
      %v430 = vld [vmem:[#allocation2 + $0x12a] sm:$0xff]
      %v431 = vld [vmem:[#allocation2 + $0x13a] sm:$0xff]
      %v432 = vld [vmem:[#allocation2 + $0x142] sm:$0xff]
      %v433 = vld [vmem:[#allocation2 + $0x152] sm:$0xff]
      %v434 = vld [vmem:[#allocation2 + $0x15a] sm:$0xff]
      %v435 = vld [vmem:[#allocation2 + $0x16a] sm:$0xff]
      %v436 = vld [vmem:[#allocation2 + $0x172] sm:$0xff]
      %v437 = vld [vmem:[%s303] sm:$0xff]
      %v438 = vld [vmem:[%s303 + $0x8] sm:$0xff]
      %v439 = vld [vmem:[%s303 + $0x18] sm:$0xff]
      %v440 = vld [vmem:[%s303 + $0x20] sm:$0xff]
      %v441 = vld [vmem:[%s303 + $0x30] sm:$0xff]
      %v442 = vld [vmem:[%s303 + $0x38] sm:$0xff]
      %v443 = vld [vmem:[%s303 + $0x48] sm:$0xff]
      %v444 = vld [vmem:[%s303 + $0x50] sm:$0xff]
      %v445 = vld [vmem:[%s303 + $0x60] sm:$0xff]
      %v446 = vld [vmem:[%s303 + $0x68] sm:$0xff]
      %v447 = vld [vmem:[%s303 + $0x78] sm:$0xff]
      %v448 = vld [vmem:[%s303 + $0x80] sm:$0xff]
      %v449 = vld [vmem:[%s303 + $0x90] sm:$0xff]
      %v450 = vld [vmem:[%s303 + $0x98] sm:$0xff]
      %v451 = vld [vmem:[%s303 + $0xa8] sm:$0xff]
      %v452 = vld [vmem:[%s303 + $0xb0] sm:$0xff]
      %v453 = vld [vmem:[%s303 + $0xc0] sm:$0xff]
      %v454 = vld [vmem:[%s303 + $0xc8] sm:$0xff]
      %v455 = vld [vmem:[%s303 + $0xd8] sm:$0xff]
      %v456 = vld [vmem:[%s303 + $0xe0] sm:$0xff]
      %v457 = vld [vmem:[%s303 + $0xf0] sm:$0xff]
      %v458 = vld [vmem:[%s303 + $0xf8] sm:$0xff]
      %v459 = vld [vmem:[%s303 + $0x108] sm:$0xff]
      %v460 = vld [vmem:[%s303 + $0x110] sm:$0xff]
      %v461 = vld [vmem:[%s303 + $0x120] sm:$0xff]
      %v462 = vld [vmem:[%s303 + $0x128] sm:$0xff]
      %v463 = vld [vmem:[%s303 + $0x138] sm:$0xff]
      %v464 = vld [vmem:[%s303 + $0x140] sm:$0xff]
      %v465 = vld [vmem:[%s303 + $0x150] sm:$0xff]
      %v466 = vld [vmem:[%s303 + $0x158] sm:$0xff]
      %v467 = vld [vmem:[%s303 + $0x168] sm:$0xff]
      %v468 = vld [vmem:[%s303 + $0x170] sm:$0xff]
      %v469 = vld [vmem:[%s303 + $0x1] sm:$0xff]
      %v470 = vld [vmem:[%s303 + $0x9] sm:$0xff]
      %v471 = vld [vmem:[%s303 + $0x19] sm:$0xff]
      %v472 = vld [vmem:[%s303 + $0x21] sm:$0xff]
      %v473 = vld [vmem:[%s303 + $0x31] sm:$0xff]
      %v474 = vld [vmem:[%s303 + $0x39] sm:$0xff]
      %v475 = vld [vmem:[%s303 + $0x49] sm:$0xff]
      %v476 = vld [vmem:[%s303 + $0x51] sm:$0xff]
      %v477 = vld [vmem:[%s303 + $0x61] sm:$0xff]
      %v478 = vld [vmem:[%s303 + $0x69] sm:$0xff]
      %v479 = vld [vmem:[%s303 + $0x79] sm:$0xff]
      %v480 = vld [vmem:[%s303 + $0x81] sm:$0xff]
      %v481 = vld [vmem:[%s303 + $0x91] sm:$0xff]
      %v482 = vld [vmem:[%s303 + $0x99] sm:$0xff]
      %v483 = vld [vmem:[%s303 + $0xa9] sm:$0xff]
      %v484 = vld [vmem:[%s303 + $0xb1] sm:$0xff]
      %v485 = vld [vmem:[%s303 + $0xc1] sm:$0xff]
      %v486 = vld [vmem:[%s303 + $0xc9] sm:$0xff]
      %v487 = vld [vmem:[%s303 + $0xd9] sm:$0xff]
      %v488 = vld [vmem:[%s303 + $0xe1] sm:$0xff]
      %v489 = vld [vmem:[%s303 + $0xf1] sm:$0xff]
      %v490 = vld [vmem:[%s303 + $0xf9] sm:$0xff]
      %v491 = vld [vmem:[%s303 + $0x109] sm:$0xff]
      %v492 = vld [vmem:[%s303 + $0x111] sm:$0xff]
      %v493 = vld [vmem:[%s303 + $0x121] sm:$0xff]
      %v494 = vld [vmem:[%s303 + $0x129] sm:$0xff]
      %v495 = vld [vmem:[%s303 + $0x139] sm:$0xff]
      %v496 = vld [vmem:[%s303 + $0x141] sm:$0xff]
      %v497 = vld [vmem:[%s303 + $0x151] sm:$0xff]
      %v498 = vld [vmem:[%s303 + $0x159] sm:$0xff]
      %v499 = vld [vmem:[%s303 + $0x169] sm:$0xff]
      %v500 = vld [vmem:[%s303 + $0x171] sm:$0xff]
      %v501 = vld [vmem:[%s303 + $0x2] sm:$0xff]
      %v502 = vld [vmem:[%s303 + $0xa] sm:$0xff]
      %v503 = vld [vmem:[%s303 + $0x1a] sm:$0xff]
      %v504 = vld [vmem:[%s303 + $0x22] sm:$0xff]
      %v505 = vld [vmem:[%s303 + $0x32] sm:$0xff]
      %v506 = vld [vmem:[%s303 + $0x3a] sm:$0xff]
      %v507 = vld [vmem:[%s303 + $0x4a] sm:$0xff]
      %v508 = vld [vmem:[%s303 + $0x52] sm:$0xff]
      %v509 = vld [vmem:[%s303 + $0x62] sm:$0xff]
      %v510 = vld [vmem:[%s303 + $0x6a] sm:$0xff]
      %v511 = vld [vmem:[%s303 + $0x7a] sm:$0xff]
      %v512 = vld [vmem:[%s303 + $0x82] sm:$0xff]
      %v513 = vld [vmem:[%s303 + $0x92] sm:$0xff]
      %v514 = vld [vmem:[%s303 + $0x9a] sm:$0xff]
      %v515 = vld [vmem:[%s303 + $0xaa] sm:$0xff]
      %v516 = vld [vmem:[%s303 + $0xb2] sm:$0xff]
      %v517 = vld [vmem:[%s303 + $0xc2] sm:$0xff]
      %v518 = vld [vmem:[%s303 + $0xca] sm:$0xff]
      %v519 = vld [vmem:[%s303 + $0xda] sm:$0xff]
      %v520 = vld [vmem:[%s303 + $0xe2] sm:$0xff]
      %v521 = vld [vmem:[%s303 + $0xf2] sm:$0xff]
      %v522 = vld [vmem:[%s303 + $0xfa] sm:$0xff]
      %v523 = vld [vmem:[%s303 + $0x10a] sm:$0xff]
      %v524 = vld [vmem:[%s303 + $0x112] sm:$0xff]
      %v525 = vld [vmem:[%s303 + $0x122] sm:$0xff]
      %v526 = vld [vmem:[%s303 + $0x12a] sm:$0xff]
      %v527 = vld [vmem:[%s303 + $0x13a] sm:$0xff]
      %v528 = vld [vmem:[%s303 + $0x142] sm:$0xff]
      %v529 = vld [vmem:[%s303 + $0x152] sm:$0xff]
      %v530 = vld [vmem:[%s303 + $0x15a] sm:$0xff]
      %v531 = vld [vmem:[%s303 + $0x16a] sm:$0xff]
      %v532 = vld [vmem:[%s303 + $0x172] sm:$0xff]
      %s533 = scalar_lea.vmem [#allocation2], 48
      %v534 = vld [vmem:[%s533] sm:$0xff]
      %v535 = vld [vmem:[%s533 + $0x8] sm:$0xff]
      %v536 = vld [vmem:[%s533 + $0x18] sm:$0xff]
      %v537 = vld [vmem:[%s533 + $0x20] sm:$0xff]
      %v538 = vld [vmem:[%s533 + $0x30] sm:$0xff]
      %v539 = vld [vmem:[%s533 + $0x38] sm:$0xff]
      %v540 = vld [vmem:[%s533 + $0x48] sm:$0xff]
      %v541 = vld [vmem:[%s533 + $0x50] sm:$0xff]
      %v542 = vld [vmem:[%s533 + $0x60] sm:$0xff]
      %v543 = vld [vmem:[%s533 + $0x68] sm:$0xff]
      %v544 = vld [vmem:[%s533 + $0x78] sm:$0xff]
      %v545 = vld [vmem:[%s533 + $0x80] sm:$0xff]
      %v546 = vld [vmem:[%s533 + $0x90] sm:$0xff]
      %v547 = vld [vmem:[%s533 + $0x98] sm:$0xff]
      %v548 = vld [vmem:[%s533 + $0xa8] sm:$0xff]
      %v549 = vld [vmem:[%s533 + $0xb0] sm:$0xff]
      %v550 = vld [vmem:[%s533 + $0xc0] sm:$0xff]
      %v551 = vld [vmem:[%s533 + $0xc8] sm:$0xff]
      %v552 = vld [vmem:[%s533 + $0xd8] sm:$0xff]
      %v553 = vld [vmem:[%s533 + $0xe0] sm:$0xff]
      %v554 = vld [vmem:[%s533 + $0xf0] sm:$0xff]
      %v555 = vld [vmem:[%s533 + $0xf8] sm:$0xff]
      %v556 = vld [vmem:[%s533 + $0x108] sm:$0xff]
      %v557 = vld [vmem:[%s533 + $0x110] sm:$0xff]
      %v558 = vld [vmem:[%s533 + $0x120] sm:$0xff]
      %v559 = vld [vmem:[%s533 + $0x128] sm:$0xff]
      %v560 = vld [vmem:[%s533 + $0x138] sm:$0xff]
      %v561 = vld [vmem:[%s533 + $0x140] sm:$0xff]
      %v562 = vld [vmem:[%s533 + $0x150] sm:$0xff]
      %v563 = vld [vmem:[%s533 + $0x158] sm:$0xff]
      %v564 = vld [vmem:[%s533 + $0x168] sm:$0xff]
      %v565 = vld [vmem:[%s533 + $0x170] sm:$0xff]
      %v566 = vld [vmem:[%s533 + $0x1] sm:$0xff]
      %v567 = vld [vmem:[%s533 + $0x9] sm:$0xff]
      %v568 = vld [vmem:[%s533 + $0x19] sm:$0xff]
      %v569 = vld [vmem:[%s533 + $0x21] sm:$0xff]
      %v570 = vld [vmem:[%s533 + $0x31] sm:$0xff]
      %v571 = vld [vmem:[%s533 + $0x39] sm:$0xff]
      %v572 = vld [vmem:[%s533 + $0x49] sm:$0xff]
      %v573 = vld [vmem:[%s533 + $0x51] sm:$0xff]
      %v574 = vld [vmem:[%s533 + $0x61] sm:$0xff]
      %v575 = vld [vmem:[%s533 + $0x69] sm:$0xff]
      %v576 = vld [vmem:[%s533 + $0x79] sm:$0xff]
      %v577 = vld [vmem:[%s533 + $0x81] sm:$0xff]
      %v578 = vld [vmem:[%s533 + $0x91] sm:$0xff]
      %v579 = vld [vmem:[%s533 + $0x99] sm:$0xff]
      %v580 = vld [vmem:[%s533 + $0xa9] sm:$0xff]
      %v581 = vld [vmem:[%s533 + $0xb1] sm:$0xff]
      %v582 = vld [vmem:[%s533 + $0xc1] sm:$0xff]
      %v583 = vld [vmem:[%s533 + $0xc9] sm:$0xff]
      %v584 = vld [vmem:[%s533 + $0xd9] sm:$0xff]
      %v585 = vld [vmem:[%s533 + $0xe1] sm:$0xff]
      %v586 = vld [vmem:[%s533 + $0xf1] sm:$0xff]
      %v587 = vld [vmem:[%s533 + $0xf9] sm:$0xff]
      %v588 = vld [vmem:[%s533 + $0x109] sm:$0xff]
      %v589 = vld [vmem:[%s533 + $0x111] sm:$0xff]
      %v590 = vld [vmem:[%s533 + $0x121] sm:$0xff]
      %v591 = vld [vmem:[%s533 + $0x129] sm:$0xff]
      %v592 = vld [vmem:[%s533 + $0x139] sm:$0xff]
      %v593 = vld [vmem:[%s533 + $0x141] sm:$0xff]
      %v594 = vld [vmem:[%s533 + $0x151] sm:$0xff]
      %v595 = vld [vmem:[%s533 + $0x159] sm:$0xff]
      %v596 = vld [vmem:[%s533 + $0x169] sm:$0xff]
      %v597 = vld [vmem:[%s533 + $0x171] sm:$0xff]
      %v598 = vld [vmem:[%s533 + $0x2] sm:$0xff]
      %v599 = vld [vmem:[%s533 + $0xa] sm:$0xff]
      %v600 = vld [vmem:[%s533 + $0x1a] sm:$0xff]
      %v601 = vld [vmem:[%s533 + $0x22] sm:$0xff]
      %v602 = vld [vmem:[%s533 + $0x32] sm:$0xff]
      %v603 = vld [vmem:[%s533 + $0x3a] sm:$0xff]
      %v604 = vld [vmem:[%s533 + $0x4a] sm:$0xff]
      %v605 = vld [vmem:[%s533 + $0x52] sm:$0xff]
      %v606 = vld [vmem:[%s533 + $0x62] sm:$0xff]
      %v607 = vld [vmem:[%s533 + $0x6a] sm:$0xff]
      %v608 = vld [vmem:[%s533 + $0x7a] sm:$0xff]
      %v609 = vld [vmem:[%s533 + $0x82] sm:$0xff]
      %v610 = vld [vmem:[%s533 + $0x92] sm:$0xff]
      %v611 = vld [vmem:[%s533 + $0x9a] sm:$0xff]
      %v612 = vld [vmem:[%s533 + $0xaa] sm:$0xff]
      %v613 = vld [vmem:[%s533 + $0xb2] sm:$0xff]
      %v614 = vld [vmem:[%s533 + $0xc2] sm:$0xff]
      %v615 = vld [vmem:[%s533 + $0xca] sm:$0xff]
      %v616 = vld [vmem:[%s533 + $0xda] sm:$0xff]
      %v617 = vld [vmem:[%s533 + $0xe2] sm:$0xff]
      %v618 = vld [vmem:[%s533 + $0xf2] sm:$0xff]
      %v619 = vld [vmem:[%s533 + $0xfa] sm:$0xff]
      %v620 = vld [vmem:[%s533 + $0x10a] sm:$0xff]
      %v621 = vld [vmem:[%s533 + $0x112] sm:$0xff]
      %v622 = vld [vmem:[%s533 + $0x122] sm:$0xff]
      %v623 = vld [vmem:[%s533 + $0x12a] sm:$0xff]
      %v624 = vld [vmem:[%s533 + $0x13a] sm:$0xff]
      %v625 = vld [vmem:[%s533 + $0x142] sm:$0xff]
      %v626 = vld [vmem:[%s533 + $0x152] sm:$0xff]
      %v627 = vld [vmem:[%s533 + $0x15a] sm:$0xff]
      %v628 = vld [vmem:[%s533 + $0x16a] sm:$0xff]
      %v629 = vld [vmem:[%s533 + $0x172] sm:$0xff]
      %662 = vrot.lane.b32.xlu0 %v373, 4
      %v663 = vpop.permute.xlu0 %662
      %664 = vrot.lane.b32.xlu0 %v374, 4
      %v665 = vpop.permute.xlu0 %664
      %666 = vrot.lane.b32.xlu0 %v375, 4
      %v667 = vpop.permute.xlu0 %666
      %668 = vrot.lane.b32.xlu0 %v376, 4
      %v669 = vpop.permute.xlu0 %668
      %670 = vrot.lane.b32.xlu0 %v377, 4
      %v671 = vpop.permute.xlu0 %670
      %672 = vrot.lane.b32.xlu0 %v378, 4
      %v673 = vpop.permute.xlu0 %672
      %674 = vrot.lane.b32.xlu0 %v379, 4
      %v675 = vpop.permute.xlu0 %674
      %676 = vrot.lane.b32.xlu0 %v380, 4
      %v677 = vpop.permute.xlu0 %676
      %678 = vrot.lane.b32.xlu0 %v381, 4
      %v679 = vpop.permute.xlu0 %678
      %680 = vrot.lane.b32.xlu0 %v382, 4
      %v681 = vpop.permute.xlu0 %680
      %682 = vrot.lane.b32.xlu0 %v383, 4
      %v683 = vpop.permute.xlu0 %682
      %684 = vrot.lane.b32.xlu0 %v384, 4
      %v685 = vpop.permute.xlu0 %684
      %686 = vrot.lane.b32.xlu0 %v385, 4
      %v687 = vpop.permute.xlu0 %686
      %688 = vrot.lane.b32.xlu0 %v386, 4
      %v689 = vpop.permute.xlu0 %688
      %690 = vrot.lane.b32.xlu0 %v387, 4
      %v691 = vpop.permute.xlu0 %690
      %692 = vrot.lane.b32.xlu0 %v388, 4
      %v693 = vpop.permute.xlu0 %692
      %694 = vrot.lane.b32.xlu0 %v389, 4
      %v695 = vpop.permute.xlu0 %694
      %696 = vrot.lane.b32.xlu0 %v390, 4
      %v697 = vpop.permute.xlu0 %696
      %698 = vrot.lane.b32.xlu0 %v391, 4
      %v699 = vpop.permute.xlu0 %698
      %700 = vrot.lane.b32.xlu0 %v392, 4
      %v701 = vpop.permute.xlu0 %700
      %702 = vrot.lane.b32.xlu0 %v393, 4
      %v703 = vpop.permute.xlu0 %702
      %704 = vrot.lane.b32.xlu0 %v394, 4
      %v705 = vpop.permute.xlu0 %704
      %706 = vrot.lane.b32.xlu0 %v395, 4
      %v707 = vpop.permute.xlu0 %706
      %708 = vrot.lane.b32.xlu0 %v396, 4
      %v709 = vpop.permute.xlu0 %708
      %710 = vrot.lane.b32.xlu0 %v397, 4
      %v711 = vpop.permute.xlu0 %710
      %712 = vrot.lane.b32.xlu0 %v398, 4
      %v713 = vpop.permute.xlu0 %712
      %714 = vrot.lane.b32.xlu0 %v399, 4
      %v715 = vpop.permute.xlu0 %714
      %716 = vrot.lane.b32.xlu0 %v400, 4
      %v717 = vpop.permute.xlu0 %716
      %718 = vrot.lane.b32.xlu0 %v401, 4
      %v719 = vpop.permute.xlu0 %718
      %720 = vrot.lane.b32.xlu0 %v402, 4
      %v721 = vpop.permute.xlu0 %720
      %722 = vrot.lane.b32.xlu0 %v403, 4
      %v723 = vpop.permute.xlu0 %722
      %724 = vrot.lane.b32.xlu0 %v404, 4
      %v725 = vpop.permute.xlu0 %724
      %790 = vrot.lane.b32.xlu0 %v405, 8
      %v791 = vpop.permute.xlu0 %790
      %792 = vrot.lane.b32.xlu0 %v406, 8
      %v793 = vpop.permute.xlu0 %792
      %794 = vrot.lane.b32.xlu0 %v407, 8
      %v795 = vpop.permute.xlu0 %794
      %796 = vrot.lane.b32.xlu0 %v408, 8
      %v797 = vpop.permute.xlu0 %796
      %798 = vrot.lane.b32.xlu0 %v409, 8
      %v799 = vpop.permute.xlu0 %798
      %800 = vrot.lane.b32.xlu0 %v410, 8
      %v801 = vpop.permute.xlu0 %800
      %802 = vrot.lane.b32.xlu0 %v411, 8
      %v803 = vpop.permute.xlu0 %802
      %804 = vrot.lane.b32.xlu0 %v412, 8
      %v805 = vpop.permute.xlu0 %804
      %806 = vrot.lane.b32.xlu0 %v413, 8
      %v807 = vpop.permute.xlu0 %806
      %808 = vrot.lane.b32.xlu0 %v414, 8
      %v809 = vpop.permute.xlu0 %808
      %810 = vrot.lane.b32.xlu0 %v415, 8
      %v811 = vpop.permute.xlu0 %810
      %812 = vrot.lane.b32.xlu0 %v416, 8
      %v813 = vpop.permute.xlu0 %812
      %814 = vrot.lane.b32.xlu0 %v417, 8
      %v815 = vpop.permute.xlu0 %814
      %816 = vrot.lane.b32.xlu0 %v418, 8
      %v817 = vpop.permute.xlu0 %816
      %818 = vrot.lane.b32.xlu0 %v419, 8
      %v819 = vpop.permute.xlu0 %818
      %820 = vrot.lane.b32.xlu0 %v420, 8
      %v821 = vpop.permute.xlu0 %820
      %822 = vrot.lane.b32.xlu0 %v421, 8
      %v823 = vpop.permute.xlu0 %822
      %824 = vrot.lane.b32.xlu0 %v422, 8
      %v825 = vpop.permute.xlu0 %824
      %826 = vrot.lane.b32.xlu0 %v423, 8
      %v827 = vpop.permute.xlu0 %826
      %828 = vrot.lane.b32.xlu0 %v424, 8
      %v829 = vpop.permute.xlu0 %828
      %830 = vrot.lane.b32.xlu0 %v425, 8
      %v831 = vpop.permute.xlu0 %830
      %832 = vrot.lane.b32.xlu0 %v426, 8
      %v833 = vpop.permute.xlu0 %832
      %834 = vrot.lane.b32.xlu0 %v427, 8
      %v835 = vpop.permute.xlu0 %834
      %836 = vrot.lane.b32.xlu0 %v428, 8
      %v837 = vpop.permute.xlu0 %836
      %838 = vrot.lane.b32.xlu0 %v429, 8
      %v839 = vpop.permute.xlu0 %838
      %840 = vrot.lane.b32.xlu0 %v430, 8
      %v841 = vpop.permute.xlu0 %840
      %842 = vrot.lane.b32.xlu0 %v431, 8
      %v843 = vpop.permute.xlu0 %842
      %844 = vrot.lane.b32.xlu0 %v432, 8
      %v845 = vpop.permute.xlu0 %844
      %846 = vrot.lane.b32.xlu0 %v433, 8
      %v847 = vpop.permute.xlu0 %846
      %848 = vrot.lane.b32.xlu0 %v434, 8
      %v849 = vpop.permute.xlu0 %848
      %850 = vrot.lane.b32.xlu0 %v435, 8
      %v851 = vpop.permute.xlu0 %850
      %852 = vrot.lane.b32.xlu0 %v436, 8
      %v853 = vpop.permute.xlu0 %852
      %918 = vrot.lane.b32.xlu0 %v437, 12
      %v919 = vpop.permute.xlu0 %918
      %920 = vrot.lane.b32.xlu0 %v438, 12
      %v921 = vpop.permute.xlu0 %920
      %922 = vrot.lane.b32.xlu0 %v439, 12
      %v923 = vpop.permute.xlu0 %922
      %924 = vrot.lane.b32.xlu0 %v440, 12
      %v925 = vpop.permute.xlu0 %924
      %926 = vrot.lane.b32.xlu0 %v441, 12
      %v927 = vpop.permute.xlu0 %926
      %928 = vrot.lane.b32.xlu0 %v442, 12
      %v929 = vpop.permute.xlu0 %928
      %930 = vrot.lane.b32.xlu0 %v443, 12
      %v931 = vpop.permute.xlu0 %930
      %932 = vrot.lane.b32.xlu0 %v444, 12
      %v933 = vpop.permute.xlu0 %932
      %934 = vrot.lane.b32.xlu0 %v445, 12
      %v935 = vpop.permute.xlu0 %934
      %936 = vrot.lane.b32.xlu0 %v446, 12
      %v937 = vpop.permute.xlu0 %936
      %938 = vrot.lane.b32.xlu0 %v447, 12
      %v939 = vpop.permute.xlu0 %938
      %940 = vrot.lane.b32.xlu0 %v448, 12
      %v941 = vpop.permute.xlu0 %940
      %942 = vrot.lane.b32.xlu0 %v449, 12
      %v943 = vpop.permute.xlu0 %942
      %944 = vrot.lane.b32.xlu0 %v450, 12
      %v945 = vpop.permute.xlu0 %944
      %946 = vrot.lane.b32.xlu0 %v451, 12
      %v947 = vpop.permute.xlu0 %946
      %948 = vrot.lane.b32.xlu0 %v452, 12
      %v949 = vpop.permute.xlu0 %948
      %950 = vrot.lane.b32.xlu0 %v453, 12
      %v951 = vpop.permute.xlu0 %950
      %952 = vrot.lane.b32.xlu0 %v454, 12
      %v953 = vpop.permute.xlu0 %952
      %954 = vrot.lane.b32.xlu0 %v455, 12
      %v955 = vpop.permute.xlu0 %954
      %956 = vrot.lane.b32.xlu0 %v456, 12
      %v957 = vpop.permute.xlu0 %956
      %958 = vrot.lane.b32.xlu0 %v457, 12
      %v959 = vpop.permute.xlu0 %958
      %960 = vrot.lane.b32.xlu0 %v458, 12
      %v961 = vpop.permute.xlu0 %960
      %962 = vrot.lane.b32.xlu0 %v459, 12
      %v963 = vpop.permute.xlu0 %962
      %964 = vrot.lane.b32.xlu0 %v460, 12
      %v965 = vpop.permute.xlu0 %964
      %966 = vrot.lane.b32.xlu0 %v461, 12
      %v967 = vpop.permute.xlu0 %966
      %968 = vrot.lane.b32.xlu0 %v462, 12
      %v969 = vpop.permute.xlu0 %968
      %970 = vrot.lane.b32.xlu0 %v463, 12
      %v971 = vpop.permute.xlu0 %970
      %972 = vrot.lane.b32.xlu0 %v464, 12
      %v973 = vpop.permute.xlu0 %972
      %974 = vrot.lane.b32.xlu0 %v465, 12
      %v975 = vpop.permute.xlu0 %974
      %976 = vrot.lane.b32.xlu0 %v466, 12
      %v977 = vpop.permute.xlu0 %976
      %978 = vrot.lane.b32.xlu0 %v467, 12
      %v979 = vpop.permute.xlu0 %978
      %980 = vrot.lane.b32.xlu0 %v468, 12
      %v981 = vpop.permute.xlu0 %980
      %1046 = vrot.lane.b32.xlu0 %v469, 16
      %v1047 = vpop.permute.xlu0 %1046
      %1048 = vrot.lane.b32.xlu0 %v470, 16
      %v1049 = vpop.permute.xlu0 %1048
      %1050 = vrot.lane.b32.xlu0 %v471, 16
      %v1051 = vpop.permute.xlu0 %1050
      %1052 = vrot.lane.b32.xlu0 %v472, 16
      %v1053 = vpop.permute.xlu0 %1052
      %1054 = vrot.lane.b32.xlu0 %v473, 16
      %v1055 = vpop.permute.xlu0 %1054
      %1056 = vrot.lane.b32.xlu0 %v474, 16
      %v1057 = vpop.permute.xlu0 %1056
      %1058 = vrot.lane.b32.xlu0 %v475, 16
      %v1059 = vpop.permute.xlu0 %1058
      %1060 = vrot.lane.b32.xlu0 %v476, 16
      %v1061 = vpop.permute.xlu0 %1060
      %1062 = vrot.lane.b32.xlu0 %v477, 16
      %v1063 = vpop.permute.xlu0 %1062
      %1064 = vrot.lane.b32.xlu0 %v478, 16
      %v1065 = vpop.permute.xlu0 %1064
      %1066 = vrot.lane.b32.xlu0 %v479, 16
      %v1067 = vpop.permute.xlu0 %1066
      %1068 = vrot.lane.b32.xlu0 %v480, 16
      %v1069 = vpop.permute.xlu0 %1068
      %1070 = vrot.lane.b32.xlu0 %v481, 16
      %v1071 = vpop.permute.xlu0 %1070
      %1072 = vrot.lane.b32.xlu0 %v482, 16
      %v1073 = vpop.permute.xlu0 %1072
      %1074 = vrot.lane.b32.xlu0 %v483, 16
      %v1075 = vpop.permute.xlu0 %1074
      %1076 = vrot.lane.b32.xlu0 %v484, 16
      %v1077 = vpop.permute.xlu0 %1076
      %1078 = vrot.lane.b32.xlu0 %v485, 16
      %v1079 = vpop.permute.xlu0 %1078
      %1080 = vrot.lane.b32.xlu0 %v486, 16
      %v1081 = vpop.permute.xlu0 %1080
      %1082 = vrot.lane.b32.xlu0 %v487, 16
      %v1083 = vpop.permute.xlu0 %1082
      %1084 = vrot.lane.b32.xlu0 %v488, 16
      %v1085 = vpop.permute.xlu0 %1084
      %1086 = vrot.lane.b32.xlu0 %v489, 16
      %v1087 = vpop.permute.xlu0 %1086
      %1088 = vrot.lane.b32.xlu0 %v490, 16
      %v1089 = vpop.permute.xlu0 %1088
      %1090 = vrot.lane.b32.xlu0 %v491, 16
      %v1091 = vpop.permute.xlu0 %1090
      %1092 = vrot.lane.b32.xlu0 %v492, 16
      %v1093 = vpop.permute.xlu0 %1092
      %1094 = vrot.lane.b32.xlu0 %v493, 16
      %v1095 = vpop.permute.xlu0 %1094
      %1096 = vrot.lane.b32.xlu0 %v494, 16
      %v1097 = vpop.permute.xlu0 %1096
      %1098 = vrot.lane.b32.xlu0 %v495, 16
      %v1099 = vpop.permute.xlu0 %1098
      %1100 = vrot.lane.b32.xlu0 %v496, 16
      %v1101 = vpop.permute.xlu0 %1100
      %1102 = vrot.lane.b32.xlu0 %v497, 16
      %v1103 = vpop.permute.xlu0 %1102
      %1104 = vrot.lane.b32.xlu0 %v498, 16
      %v1105 = vpop.permute.xlu0 %1104
      %1106 = vrot.lane.b32.xlu0 %v499, 16
      %v1107 = vpop.permute.xlu0 %1106
      %1108 = vrot.lane.b32.xlu0 %v500, 16
      %v1109 = vpop.permute.xlu0 %1108
      %1174 = vrot.lane.b32.xlu0 %v501, 20
      %v1175 = vpop.permute.xlu0 %1174
      %1176 = vrot.lane.b32.xlu0 %v502, 20
      %v1177 = vpop.permute.xlu0 %1176
      %1178 = vrot.lane.b32.xlu0 %v503, 20
      %v1179 = vpop.permute.xlu0 %1178
      %1180 = vrot.lane.b32.xlu0 %v504, 20
      %v1181 = vpop.permute.xlu0 %1180
      %1182 = vrot.lane.b32.xlu0 %v505, 20
      %v1183 = vpop.permute.xlu0 %1182
      %1184 = vrot.lane.b32.xlu0 %v506, 20
      %v1185 = vpop.permute.xlu0 %1184
      %1186 = vrot.lane.b32.xlu0 %v507, 20
      %v1187 = vpop.permute.xlu0 %1186
      %1188 = vrot.lane.b32.xlu0 %v508, 20
      %v1189 = vpop.permute.xlu0 %1188
      %1190 = vrot.lane.b32.xlu0 %v509, 20
      %v1191 = vpop.permute.xlu0 %1190
      %1192 = vrot.lane.b32.xlu0 %v510, 20
      %v1193 = vpop.permute.xlu0 %1192
      %1194 = vrot.lane.b32.xlu0 %v511, 20
      %v1195 = vpop.permute.xlu0 %1194
      %1196 = vrot.lane.b32.xlu0 %v512, 20
      %v1197 = vpop.permute.xlu0 %1196
      %1198 = vrot.lane.b32.xlu0 %v513, 20
      %v1199 = vpop.permute.xlu0 %1198
      %1200 = vrot.lane.b32.xlu0 %v514, 20
      %v1201 = vpop.permute.xlu0 %1200
      %1202 = vrot.lane.b32.xlu0 %v515, 20
      %v1203 = vpop.permute.xlu0 %1202
      %1204 = vrot.lane.b32.xlu0 %v516, 20
      %v1205 = vpop.permute.xlu0 %1204
      %1206 = vrot.lane.b32.xlu0 %v517, 20
      %v1207 = vpop.permute.xlu0 %1206
      %1208 = vrot.lane.b32.xlu0 %v518, 20
      %v1209 = vpop.permute.xlu0 %1208
      %1210 = vrot.lane.b32.xlu0 %v519, 20
      %v1211 = vpop.permute.xlu0 %1210
      %1212 = vrot.lane.b32.xlu0 %v520, 20
      %v1213 = vpop.permute.xlu0 %1212
      %1214 = vrot.lane.b32.xlu0 %v521, 20
      %v1215 = vpop.permute.xlu0 %1214
      %1216 = vrot.lane.b32.xlu0 %v522, 20
      %v1217 = vpop.permute.xlu0 %1216
      %1218 = vrot.lane.b32.xlu0 %v523, 20
      %v1219 = vpop.permute.xlu0 %1218
      %1220 = vrot.lane.b32.xlu0 %v524, 20
      %v1221 = vpop.permute.xlu0 %1220
      %1222 = vrot.lane.b32.xlu0 %v525, 20
      %v1223 = vpop.permute.xlu0 %1222
      %1224 = vrot.lane.b32.xlu0 %v526, 20
      %v1225 = vpop.permute.xlu0 %1224
      %1226 = vrot.lane.b32.xlu0 %v527, 20
      %v1227 = vpop.permute.xlu0 %1226
      %1228 = vrot.lane.b32.xlu0 %v528, 20
      %v1229 = vpop.permute.xlu0 %1228
      %1230 = vrot.lane.b32.xlu0 %v529, 20
      %v1231 = vpop.permute.xlu0 %1230
      %1232 = vrot.lane.b32.xlu0 %v530, 20
      %v1233 = vpop.permute.xlu0 %1232
      %1234 = vrot.lane.b32.xlu0 %v531, 20
      %v1235 = vpop.permute.xlu0 %1234
      %1236 = vrot.lane.b32.xlu0 %v532, 20
      %v1237 = vpop.permute.xlu0 %1236
      %1302 = vrot.lane.b32.xlu0 %v534, 24
      %v1303 = vpop.permute.xlu0 %1302
      %1304 = vrot.lane.b32.xlu0 %v535, 24
      %v1305 = vpop.permute.xlu0 %1304
      %1306 = vrot.lane.b32.xlu0 %v536, 24
      %v1307 = vpop.permute.xlu0 %1306
      %1308 = vrot.lane.b32.xlu0 %v537, 24
      %v1309 = vpop.permute.xlu0 %1308
      %1310 = vrot.lane.b32.xlu0 %v538, 24
      %v1311 = vpop.permute.xlu0 %1310
      %1312 = vrot.lane.b32.xlu0 %v539, 24
      %v1313 = vpop.permute.xlu0 %1312
      %1314 = vrot.lane.b32.xlu0 %v540, 24
      %v1315 = vpop.permute.xlu0 %1314
      %1316 = vrot.lane.b32.xlu0 %v541, 24
      %v1317 = vpop.permute.xlu0 %1316
      %1318 = vrot.lane.b32.xlu0 %v542, 24
      %v1319 = vpop.permute.xlu0 %1318
      %1320 = vrot.lane.b32.xlu0 %v543, 24
      %v1321 = vpop.permute.xlu0 %1320
      %1322 = vrot.lane.b32.xlu0 %v544, 24
      %v1323 = vpop.permute.xlu0 %1322
      %1324 = vrot.lane.b32.xlu0 %v545, 24
      %v1325 = vpop.permute.xlu0 %1324
      %1326 = vrot.lane.b32.xlu0 %v546, 24
      %v1327 = vpop.permute.xlu0 %1326
      %1328 = vrot.lane.b32.xlu0 %v547, 24
      %v1329 = vpop.permute.xlu0 %1328
      %1330 = vrot.lane.b32.xlu0 %v548, 24
      %v1331 = vpop.permute.xlu0 %1330
      %1332 = vrot.lane.b32.xlu0 %v549, 24
      %v1333 = vpop.permute.xlu0 %1332
      %1334 = vrot.lane.b32.xlu0 %v550, 24
      %v1335 = vpop.permute.xlu0 %1334
      %1336 = vrot.lane.b32.xlu0 %v551, 24
      %v1337 = vpop.permute.xlu0 %1336
      %1338 = vrot.lane.b32.xlu0 %v552, 24
      %v1339 = vpop.permute.xlu0 %1338
      %1340 = vrot.lane.b32.xlu0 %v553, 24
      %v1341 = vpop.permute.xlu0 %1340
      %1342 = vrot.lane.b32.xlu0 %v554, 24
      %v1343 = vpop.permute.xlu0 %1342
      %1344 = vrot.lane.b32.xlu0 %v555, 24
      %v1345 = vpop.permute.xlu0 %1344
      %1346 = vrot.lane.b32.xlu0 %v556, 24
      %v1347 = vpop.permute.xlu0 %1346
      %1348 = vrot.lane.b32.xlu0 %v557, 24
      %v1349 = vpop.permute.xlu0 %1348
      %1350 = vrot.lane.b32.xlu0 %v558, 24
      %v1351 = vpop.permute.xlu0 %1350
      %1352 = vrot.lane.b32.xlu0 %v559, 24
      %v1353 = vpop.permute.xlu0 %1352
      %1354 = vrot.lane.b32.xlu0 %v560, 24
      %v1355 = vpop.permute.xlu0 %1354
      %1356 = vrot.lane.b32.xlu0 %v561, 24
      %v1357 = vpop.permute.xlu0 %1356
      %1358 = vrot.lane.b32.xlu0 %v562, 24
      %v1359 = vpop.permute.xlu0 %1358
      %1360 = vrot.lane.b32.xlu0 %v563, 24
      %v1361 = vpop.permute.xlu0 %1360
      %1362 = vrot.lane.b32.xlu0 %v564, 24
      %v1363 = vpop.permute.xlu0 %1362
      %1364 = vrot.lane.b32.xlu0 %v565, 24
      %v1365 = vpop.permute.xlu0 %1364
      %1430 = vrot.lane.b32.xlu0 %v566, 28
      %v1431 = vpop.permute.xlu0 %1430
      %1432 = vrot.lane.b32.xlu0 %v567, 28
      %v1433 = vpop.permute.xlu0 %1432
      %1434 = vrot.lane.b32.xlu0 %v568, 28
      %v1435 = vpop.permute.xlu0 %1434
      %1436 = vrot.lane.b32.xlu0 %v569, 28
      %v1437 = vpop.permute.xlu0 %1436
      %1438 = vrot.lane.b32.xlu0 %v570, 28
      %v1439 = vpop.permute.xlu0 %1438
      %1440 = vrot.lane.b32.xlu0 %v571, 28
      %v1441 = vpop.permute.xlu0 %1440
      %1442 = vrot.lane.b32.xlu0 %v572, 28
      %v1443 = vpop.permute.xlu0 %1442
      %1444 = vrot.lane.b32.xlu0 %v573, 28
      %v1445 = vpop.permute.xlu0 %1444
      %1446 = vrot.lane.b32.xlu0 %v574, 28
      %v1447 = vpop.permute.xlu0 %1446
      %1448 = vrot.lane.b32.xlu0 %v575, 28
      %v1449 = vpop.permute.xlu0 %1448
      %1450 = vrot.lane.b32.xlu0 %v576, 28
      %v1451 = vpop.permute.xlu0 %1450
      %1452 = vrot.lane.b32.xlu0 %v577, 28
      %v1453 = vpop.permute.xlu0 %1452
      %1454 = vrot.lane.b32.xlu0 %v578, 28
      %v1455 = vpop.permute.xlu0 %1454
      %1456 = vrot.lane.b32.xlu0 %v579, 28
      %v1457 = vpop.permute.xlu0 %1456
      %1458 = vrot.lane.b32.xlu0 %v580, 28
      %v1459 = vpop.permute.xlu0 %1458
      %1460 = vrot.lane.b32.xlu0 %v581, 28
      %v1461 = vpop.permute.xlu0 %1460
      %1462 = vrot.lane.b32.xlu0 %v582, 28
      %v1463 = vpop.permute.xlu0 %1462
      %1464 = vrot.lane.b32.xlu0 %v583, 28
      %v1465 = vpop.permute.xlu0 %1464
      %1466 = vrot.lane.b32.xlu0 %v584, 28
      %v1467 = vpop.permute.xlu0 %1466
      %1468 = vrot.lane.b32.xlu0 %v585, 28
      %v1469 = vpop.permute.xlu0 %1468
      %1470 = vrot.lane.b32.xlu0 %v586, 28
      %v1471 = vpop.permute.xlu0 %1470
      %1472 = vrot.lane.b32.xlu0 %v587, 28
      %v1473 = vpop.permute.xlu0 %1472
      %1474 = vrot.lane.b32.xlu0 %v588, 28
      %v1475 = vpop.permute.xlu0 %1474
      %1476 = vrot.lane.b32.xlu0 %v589, 28
      %v1477 = vpop.permute.xlu0 %1476
      %1478 = vrot.lane.b32.xlu0 %v590, 28
      %v1479 = vpop.permute.xlu0 %1478
      %1480 = vrot.lane.b32.xlu0 %v591, 28
      %v1481 = vpop.permute.xlu0 %1480
      %1482 = vrot.lane.b32.xlu0 %v592, 28
      %v1483 = vpop.permute.xlu0 %1482
      %1484 = vrot.lane.b32.xlu0 %v593, 28
      %v1485 = vpop.permute.xlu0 %1484
      %1486 = vrot.lane.b32.xlu0 %v594, 28
      %v1487 = vpop.permute.xlu0 %1486
      %1488 = vrot.lane.b32.xlu0 %v595, 28
      %v1489 = vpop.permute.xlu0 %1488
      %1490 = vrot.lane.b32.xlu0 %v596, 28
      %v1491 = vpop.permute.xlu0 %1490
      %1492 = vrot.lane.b32.xlu0 %v597, 28
      %v1493 = vpop.permute.xlu0 %1492
      %1558 = vrot.lane.b32.xlu0 %v598, 32
      %v1559 = vpop.permute.xlu0 %1558
      %1560 = vrot.lane.b32.xlu0 %v599, 32
      %v1561 = vpop.permute.xlu0 %1560
      %1562 = vrot.lane.b32.xlu0 %v600, 32
      %v1563 = vpop.permute.xlu0 %1562
      %1564 = vrot.lane.b32.xlu0 %v601, 32
      %v1565 = vpop.permute.xlu0 %1564
      %1566 = vrot.lane.b32.xlu0 %v602, 32
      %v1567 = vpop.permute.xlu0 %1566
      %1568 = vrot.lane.b32.xlu0 %v603, 32
      %v1569 = vpop.permute.xlu0 %1568
      %1570 = vrot.lane.b32.xlu0 %v604, 32
      %v1571 = vpop.permute.xlu0 %1570
      %1572 = vrot.lane.b32.xlu0 %v605, 32
      %v1573 = vpop.permute.xlu0 %1572
      %1574 = vrot.lane.b32.xlu0 %v606, 32
      %v1575 = vpop.permute.xlu0 %1574
      %1576 = vrot.lane.b32.xlu0 %v607, 32
      %v1577 = vpop.permute.xlu0 %1576
      %1578 = vrot.lane.b32.xlu0 %v608, 32
      %v1579 = vpop.permute.xlu0 %1578
      %1580 = vrot.lane.b32.xlu0 %v609, 32
      %v1581 = vpop.permute.xlu0 %1580
      %1582 = vrot.lane.b32.xlu0 %v610, 32
      %v1583 = vpop.permute.xlu0 %1582
      %1584 = vrot.lane.b32.xlu0 %v611, 32
      %v1585 = vpop.permute.xlu0 %1584
      %1586 = vrot.lane.b32.xlu0 %v612, 32
      %v1587 = vpop.permute.xlu0 %1586
      %1588 = vrot.lane.b32.xlu0 %v613, 32
      %v1589 = vpop.permute.xlu0 %1588
      %1590 = vrot.lane.b32.xlu0 %v614, 32
      %v1591 = vpop.permute.xlu0 %1590
      %1592 = vrot.lane.b32.xlu0 %v615, 32
      %v1593 = vpop.permute.xlu0 %1592
      %1594 = vrot.lane.b32.xlu0 %v616, 32
      %v1595 = vpop.permute.xlu0 %1594
      %1596 = vrot.lane.b32.xlu0 %v617, 32
      %v1597 = vpop.permute.xlu0 %1596
      %1598 = vrot.lane.b32.xlu0 %v618, 32
      %v1599 = vpop.permute.xlu0 %1598
      %1600 = vrot.lane.b32.xlu0 %v619, 32
      %v1601 = vpop.permute.xlu0 %1600
      %1602 = vrot.lane.b32.xlu0 %v620, 32
      %v1603 = vpop.permute.xlu0 %1602
      %1604 = vrot.lane.b32.xlu0 %v621, 32
      %v1605 = vpop.permute.xlu0 %1604
      %1606 = vrot.lane.b32.xlu0 %v622, 32
      %v1607 = vpop.permute.xlu0 %1606
      %1608 = vrot.lane.b32.xlu0 %v623, 32
      %v1609 = vpop.permute.xlu0 %1608
      %1610 = vrot.lane.b32.xlu0 %v624, 32
      %v1611 = vpop.permute.xlu0 %1610
      %1612 = vrot.lane.b32.xlu0 %v625, 32
      %v1613 = vpop.permute.xlu0 %1612
      %1614 = vrot.lane.b32.xlu0 %v626, 32
      %v1615 = vpop.permute.xlu0 %1614
      %1616 = vrot.lane.b32.xlu0 %v627, 32
      %v1617 = vpop.permute.xlu0 %1616
      %1618 = vrot.lane.b32.xlu0 %v628, 32
      %v1619 = vpop.permute.xlu0 %1618
      %1620 = vrot.lane.b32.xlu0 %v629, 32
      %v1621 = vpop.permute.xlu0 %1620
      %v1654 = vsel %vm225, %v341, %v663
      %v1655 = vsel %vm225, %v342, %v665
      %v1656 = vsel %vm225, %v343, %v667
      %v1657 = vsel %vm225, %v344, %v669
      %v1658 = vsel %vm225, %v345, %v671
      %v1659 = vsel %vm225, %v346, %v673
      %v1660 = vsel %vm225, %v347, %v675
      %v1661 = vsel %vm225, %v348, %v677
      %v1662 = vsel %vm225, %v349, %v679
      %v1663 = vsel %vm225, %v350, %v681
      %v1664 = vsel %vm225, %v351, %v683
      %v1665 = vsel %vm225, %v352, %v685
      %v1666 = vsel %vm225, %v353, %v687
      %v1667 = vsel %vm225, %v354, %v689
      %v1668 = vsel %vm225, %v355, %v691
      %v1669 = vsel %vm225, %v356, %v693
      %v1670 = vsel %vm225, %v357, %v695
      %v1671 = vsel %vm225, %v358, %v697
      %v1672 = vsel %vm225, %v359, %v699
      %v1673 = vsel %vm225, %v360, %v701
      %v1674 = vsel %vm225, %v361, %v703
      %v1675 = vsel %vm225, %v362, %v705
      %v1676 = vsel %vm225, %v363, %v707
      %v1677 = vsel %vm225, %v364, %v709
      %v1678 = vsel %vm225, %v365, %v711
      %v1679 = vsel %vm225, %v366, %v713
      %v1680 = vsel %vm225, %v367, %v715
      %v1681 = vsel %vm225, %v368, %v717
      %v1682 = vsel %vm225, %v369, %v719
      %v1683 = vsel %vm225, %v370, %v721
      %v1684 = vsel %vm225, %v371, %v723
      %v1685 = vsel %vm225, %v372, %v725
      %vm1686 = vcmask 64512
      %v1687 = vsel %vm1686, %v1654, %v791
      %v1688 = vsel %vm1686, %v1655, %v793
      %v1689 = vsel %vm1686, %v1656, %v795
      %v1690 = vsel %vm1686, %v1657, %v797
      %v1691 = vsel %vm1686, %v1658, %v799
      %v1692 = vsel %vm1686, %v1659, %v801
      %v1693 = vsel %vm1686, %v1660, %v803
      %v1694 = vsel %vm1686, %v1661, %v805
      %v1695 = vsel %vm1686, %v1662, %v807
      %v1696 = vsel %vm1686, %v1663, %v809
      %v1697 = vsel %vm1686, %v1664, %v811
      %v1698 = vsel %vm1686, %v1665, %v813
      %v1699 = vsel %vm1686, %v1666, %v815
      %v1700 = vsel %vm1686, %v1667, %v817
      %v1701 = vsel %vm1686, %v1668, %v819
      %v1702 = vsel %vm1686, %v1669, %v821
      %v1703 = vsel %vm1686, %v1670, %v823
      %v1704 = vsel %vm1686, %v1671, %v825
      %v1705 = vsel %vm1686, %v1672, %v827
      %v1706 = vsel %vm1686, %v1673, %v829
      %v1707 = vsel %vm1686, %v1674, %v831
      %v1708 = vsel %vm1686, %v1675, %v833
      %v1709 = vsel %vm1686, %v1676, %v835
      %v1710 = vsel %vm1686, %v1677, %v837
      %v1711 = vsel %vm1686, %v1678, %v839
      %v1712 = vsel %vm1686, %v1679, %v841
      %v1713 = vsel %vm1686, %v1680, %v843
      %v1714 = vsel %vm1686, %v1681, %v845
      %v1715 = vsel %vm1686, %v1682, %v847
      %v1716 = vsel %vm1686, %v1683, %v849
      %v1717 = vsel %vm1686, %v1684, %v851
      %v1718 = vsel %vm1686, %v1685, %v853
      %vm1719 = vcmask 97280
      %v1720 = vsel %vm1719, %v1687, %v919
      %v1721 = vsel %vm1719, %v1688, %v921
      %v1722 = vsel %vm1719, %v1689, %v923
      %v1723 = vsel %vm1719, %v1690, %v925
      %v1724 = vsel %vm1719, %v1691, %v927
      %v1725 = vsel %vm1719, %v1692, %v929
      %v1726 = vsel %vm1719, %v1693, %v931
      %v1727 = vsel %vm1719, %v1694, %v933
      %v1728 = vsel %vm1719, %v1695, %v935
      %v1729 = vsel %vm1719, %v1696, %v937
      %v1730 = vsel %vm1719, %v1697, %v939
      %v1731 = vsel %vm1719, %v1698, %v941
      %v1732 = vsel %vm1719, %v1699, %v943
      %v1733 = vsel %vm1719, %v1700, %v945
      %v1734 = vsel %vm1719, %v1701, %v947
      %v1735 = vsel %vm1719, %v1702, %v949
      %v1736 = vsel %vm1719, %v1703, %v951
      %v1737 = vsel %vm1719, %v1704, %v953
      %v1738 = vsel %vm1719, %v1705, %v955
      %v1739 = vsel %vm1719, %v1706, %v957
      %v1740 = vsel %vm1719, %v1707, %v959
      %v1741 = vsel %vm1719, %v1708, %v961
      %v1742 = vsel %vm1719, %v1709, %v963
      %v1743 = vsel %vm1719, %v1710, %v965
      %v1744 = vsel %vm1719, %v1711, %v967
      %v1745 = vsel %vm1719, %v1712, %v969
      %v1746 = vsel %vm1719, %v1713, %v971
      %v1747 = vsel %vm1719, %v1714, %v973
      %v1748 = vsel %vm1719, %v1715, %v975
      %v1749 = vsel %vm1719, %v1716, %v977
      %v1750 = vsel %vm1719, %v1717, %v979
      %v1751 = vsel %vm1719, %v1718, %v981
      %vm1752 = vcmask 130048
      %v1753 = vsel %vm1752, %v1720, %v1047
      %v1754 = vsel %vm1752, %v1721, %v1049
      %v1755 = vsel %vm1752, %v1722, %v1051
      %v1756 = vsel %vm1752, %v1723, %v1053
      %v1757 = vsel %vm1752, %v1724, %v1055
      %v1758 = vsel %vm1752, %v1725, %v1057
      %v1759 = vsel %vm1752, %v1726, %v1059
      %v1760 = vsel %vm1752, %v1727, %v1061
      %v1761 = vsel %vm1752, %v1728, %v1063
      %v1762 = vsel %vm1752, %v1729, %v1065
      %v1763 = vsel %vm1752, %v1730, %v1067
      %v1764 = vsel %vm1752, %v1731, %v1069
      %v1765 = vsel %vm1752, %v1732, %v1071
      %v1766 = vsel %vm1752, %v1733, %v1073
      %v1767 = vsel %vm1752, %v1734, %v1075
      %v1768 = vsel %vm1752, %v1735, %v1077
      %v1769 = vsel %vm1752, %v1736, %v1079
      %v1770 = vsel %vm1752, %v1737, %v1081
      %v1771 = vsel %vm1752, %v1738, %v1083
      %v1772 = vsel %vm1752, %v1739, %v1085
      %v1773 = vsel %vm1752, %v1740, %v1087
      %v1774 = vsel %vm1752, %v1741, %v1089
      %v1775 = vsel %vm1752, %v1742, %v1091
      %v1776 = vsel %vm1752, %v1743, %v1093
      %v1777 = vsel %vm1752, %v1744, %v1095
      %v1778 = vsel %vm1752, %v1745, %v1097
      %v1779 = vsel %vm1752, %v1746, %v1099
      %v1780 = vsel %vm1752, %v1747, %v1101
      %v1781 = vsel %vm1752, %v1748, %v1103
      %v1782 = vsel %vm1752, %v1749, %v1105
      %v1783 = vsel %vm1752, %v1750, %v1107
      %v1784 = vsel %vm1752, %v1751, %v1109
      %vm1785 = vcmask 162816
      %v1786 = vsel %vm1785, %v1753, %v1175
      %v1787 = vsel %vm1785, %v1754, %v1177
      %v1788 = vsel %vm1785, %v1755, %v1179
      %v1789 = vsel %vm1785, %v1756, %v1181
      %v1790 = vsel %vm1785, %v1757, %v1183
      %v1791 = vsel %vm1785, %v1758, %v1185
      %v1792 = vsel %vm1785, %v1759, %v1187
      %v1793 = vsel %vm1785, %v1760, %v1189
      %v1794 = vsel %vm1785, %v1761, %v1191
      %v1795 = vsel %vm1785, %v1762, %v1193
      %v1796 = vsel %vm1785, %v1763, %v1195
      %v1797 = vsel %vm1785, %v1764, %v1197
      %v1798 = vsel %vm1785, %v1765, %v1199
      %v1799 = vsel %vm1785, %v1766, %v1201
      %v1800 = vsel %vm1785, %v1767, %v1203
      %v1801 = vsel %vm1785, %v1768, %v1205
      %v1802 = vsel %vm1785, %v1769, %v1207
      %v1803 = vsel %vm1785, %v1770, %v1209
      %v1804 = vsel %vm1785, %v1771, %v1211
      %v1805 = vsel %vm1785, %v1772, %v1213
      %v1806 = vsel %vm1785, %v1773, %v1215
      %v1807 = vsel %vm1785, %v1774, %v1217
      %v1808 = vsel %vm1785, %v1775, %v1219
      %v1809 = vsel %vm1785, %v1776, %v1221
      %v1810 = vsel %vm1785, %v1777, %v1223
      %v1811 = vsel %vm1785, %v1778, %v1225
      %v1812 = vsel %vm1785, %v1779, %v1227
      %v1813 = vsel %vm1785, %v1780, %v1229
      %v1814 = vsel %vm1785, %v1781, %v1231
      %v1815 = vsel %vm1785, %v1782, %v1233
      %v1816 = vsel %vm1785, %v1783, %v1235
      %v1817 = vsel %vm1785, %v1784, %v1237
      %vm1818 = vcmask 195584
      %v1819 = vsel %vm1818, %v1786, %v1303
      %v1820 = vsel %vm1818, %v1787, %v1305
      %v1821 = vsel %vm1818, %v1788, %v1307
      %v1822 = vsel %vm1818, %v1789, %v1309
      %v1823 = vsel %vm1818, %v1790, %v1311
      %v1824 = vsel %vm1818, %v1791, %v1313
      %v1825 = vsel %vm1818, %v1792, %v1315
      %v1826 = vsel %vm1818, %v1793, %v1317
      %v1827 = vsel %vm1818, %v1794, %v1319
      %v1828 = vsel %vm1818, %v1795, %v1321
      %v1829 = vsel %vm1818, %v1796, %v1323
      %v1830 = vsel %vm1818, %v1797, %v1325
      %v1831 = vsel %vm1818, %v1798, %v1327
      %v1832 = vsel %vm1818, %v1799, %v1329
      %v1833 = vsel %vm1818, %v1800, %v1331
      %v1834 = vsel %vm1818, %v1801, %v1333
      %v1835 = vsel %vm1818, %v1802, %v1335
      %v1836 = vsel %vm1818, %v1803, %v1337
      %v1837 = vsel %vm1818, %v1804, %v1339
      %v1838 = vsel %vm1818, %v1805, %v1341
      %v1839 = vsel %vm1818, %v1806, %v1343
      %v1840 = vsel %vm1818, %v1807, %v1345
      %v1841 = vsel %vm1818, %v1808, %v1347
      %v1842 = vsel %vm1818, %v1809, %v1349
      %v1843 = vsel %vm1818, %v1810, %v1351
      %v1844 = vsel %vm1818, %v1811, %v1353
      %v1845 = vsel %vm1818, %v1812, %v1355
      %v1846 = vsel %vm1818, %v1813, %v1357
      %v1847 = vsel %vm1818, %v1814, %v1359
      %v1848 = vsel %vm1818, %v1815, %v1361
      %v1849 = vsel %vm1818, %v1816, %v1363
      %v1850 = vsel %vm1818, %v1817, %v1365
      %vm1851 = vcmask 228352
      %v1852 = vsel %vm1851, %v1819, %v1431
      %v1853 = vsel %vm1851, %v1820, %v1433
      %v1854 = vsel %vm1851, %v1821, %v1435
      %v1855 = vsel %vm1851, %v1822, %v1437
      %v1856 = vsel %vm1851, %v1823, %v1439
      %v1857 = vsel %vm1851, %v1824, %v1441
      %v1858 = vsel %vm1851, %v1825, %v1443
      %v1859 = vsel %vm1851, %v1826, %v1445
      %v1860 = vsel %vm1851, %v1827, %v1447
      %v1861 = vsel %vm1851, %v1828, %v1449
      %v1862 = vsel %vm1851, %v1829, %v1451
      %v1863 = vsel %vm1851, %v1830, %v1453
      %v1864 = vsel %vm1851, %v1831, %v1455
      %v1865 = vsel %vm1851, %v1832, %v1457
      %v1866 = vsel %vm1851, %v1833, %v1459
      %v1867 = vsel %vm1851, %v1834, %v1461
      %v1868 = vsel %vm1851, %v1835, %v1463
      %v1869 = vsel %vm1851, %v1836, %v1465
      %v1870 = vsel %vm1851, %v1837, %v1467
      %v1871 = vsel %vm1851, %v1838, %v1469
      %v1872 = vsel %vm1851, %v1839, %v1471
      %v1873 = vsel %vm1851, %v1840, %v1473
      %v1874 = vsel %vm1851, %v1841, %v1475
      %v1875 = vsel %vm1851, %v1842, %v1477
      %v1876 = vsel %vm1851, %v1843, %v1479
      %v1877 = vsel %vm1851, %v1844, %v1481
      %v1878 = vsel %vm1851, %v1845, %v1483
      %v1879 = vsel %vm1851, %v1846, %v1485
      %v1880 = vsel %vm1851, %v1847, %v1487
      %v1881 = vsel %vm1851, %v1848, %v1489
      %v1882 = vsel %vm1851, %v1849, %v1491
      %v1883 = vsel %vm1851, %v1850, %v1493
      %vm1884 = vcmask 261120
      %v1885 = vsel %vm1884, %v1852, %v1559
      %v1886 = vsel %vm1884, %v1853, %v1561
      %v1887 = vsel %vm1884, %v1854, %v1563
      %v1888 = vsel %vm1884, %v1855, %v1565
      %v1889 = vsel %vm1884, %v1856, %v1567
      %v1890 = vsel %vm1884, %v1857, %v1569
      %v1891 = vsel %vm1884, %v1858, %v1571
      %v1892 = vsel %vm1884, %v1859, %v1573
      %v1893 = vsel %vm1884, %v1860, %v1575
      %v1894 = vsel %vm1884, %v1861, %v1577
      %v1895 = vsel %vm1884, %v1862, %v1579
      %v1896 = vsel %vm1884, %v1863, %v1581
      %v1897 = vsel %vm1884, %v1864, %v1583
      %v1898 = vsel %vm1884, %v1865, %v1585
      %v1899 = vsel %vm1884, %v1866, %v1587
      %v1900 = vsel %vm1884, %v1867, %v1589
      %v1901 = vsel %vm1884, %v1868, %v1591
      %v1902 = vsel %vm1884, %v1869, %v1593
      %v1903 = vsel %vm1884, %v1870, %v1595
      %v1904 = vsel %vm1884, %v1871, %v1597
      %v1905 = vsel %vm1884, %v1872, %v1599
      %v1906 = vsel %vm1884, %v1873, %v1601
      %v1907 = vsel %vm1884, %v1874, %v1603
      %v1908 = vsel %vm1884, %v1875, %v1605
      %v1909 = vsel %vm1884, %v1876, %v1607
      %v1910 = vsel %vm1884, %v1877, %v1609
      %v1911 = vsel %vm1884, %v1878, %v1611
      %v1912 = vsel %vm1884, %v1879, %v1613
      %v1913 = vsel %vm1884, %v1880, %v1615
      %v1914 = vsel %vm1884, %v1881, %v1617
      %v1915 = vsel %vm1884, %v1882, %v1619
      %v1916 = vsel %vm1884, %v1883, %v1621
      %v1917 = vld [vmem:[%s2] sm:$0x1]
      %v1919 = vlaneseq
      %v1920 = vshrl.u32 %v1919, 7
      %v1921 = vsub.s32 0, %v1920
      %v1922 = vrot.slane %v1917, %v1921
      %vm1924 = vcmask 293888
      %v1926 = vsel %vm1924, %v1885, 0
      %v1929 = vsel %vm1924, %v1886, 0
      %v1932 = vsel %vm1924, %v1887, 0
      %v1935 = vsel %vm1924, %v1888, 0
      %v1938 = vsel %vm1924, %v1889, 0
      %v1941 = vsel %vm1924, %v1890, 0
      %v1944 = vsel %vm1924, %v1891, 0
      %v1947 = vsel %vm1924, %v1892, 0
      %v1950 = vsel %vm1924, %v1893, 0
      %v1953 = vsel %vm1924, %v1894, 0
      %v1956 = vsel %vm1924, %v1895, 0
      %v1959 = vsel %vm1924, %v1896, 0
      %v1962 = vsel %vm1924, %v1897, 0
      %v1965 = vsel %vm1924, %v1898, 0
      %v1968 = vsel %vm1924, %v1899, 0
      %v1971 = vsel %vm1924, %v1900, 0
      %v1974 = vsel %vm1924, %v1901, 0
      %v1977 = vsel %vm1924, %v1902, 0
      %v1980 = vsel %vm1924, %v1903, 0
      %v1983 = vsel %vm1924, %v1904, 0
      %v1986 = vsel %vm1924, %v1905, 0
      %v1989 = vsel %vm1924, %v1906, 0
      %v1992 = vsel %vm1924, %v1907, 0
      %v1995 = vsel %vm1924, %v1908, 0
      %v1998 = vsel %vm1924, %v1909, 0
      %v2001 = vsel %vm1924, %v1910, 0
      %v2004 = vsel %vm1924, %v1911, 0
      %v2007 = vsel %vm1924, %v1912, 0
      %v2010 = vsel %vm1924, %v1913, 0
      %v2013 = vsel %vm1924, %v1914, 0
      %v2016 = vsel %vm1924, %v1915, 0
      %v2019 = vsel %vm1924, %v1916, 0
      %vm2021 = vcmask 1043456
      %v2023 = vsel %vm2021, %v340, 0
      %2025 = vmatprep.subr.mxu0 0.0
      %2026 = vmatpush1.msra.mxu0 %v336
      %2027 = vmatprep.subr.mxu0 0.0
      %2028 = vmatpush1.msra.mxu0 %v337
      %2029 = vmatprep.subr.mxu0 0.0
      %2030 = vmatpush1.msra.mxu0 %v338
      %2031 = vmatprep.subr.mxu0 0.0
      %2032 = vmatpush1.msra.mxu0 %v339
      %2033 = vmatprep.subr.mxu0 0.0
      %2034 = vmatpush1.msra.mxu0 %v2023
      %2035 = vmatprep.subr.mxu0 0.0
      %2036 = vmatpush1.msra.mxu0 0.0
      %2037 = vmatprep.subr.mxu0 0.0
      %2038 = vmatpush1.msra.mxu0 0.0
      %2039 = vmatprep.subr.mxu0 0.0
      %2040 = vmatpush1.msra.mxu0 0.0
      %2041 = vmatprep.subr.mxu0 0.0
      %2042 = vmatpush1.msra.mxu0 0.0
      %2043 = vmatprep.subr.mxu0 0.0
      %2044 = vmatpush1.msra.mxu0 0.0
      %2045 = vmatprep.subr.mxu0 0.0
      %2046 = vmatpush1.msra.mxu0 0.0
      %2047 = vmatprep.subr.mxu0 0.0
      %2048 = vmatpush1.msra.mxu0 0.0
      %2049 = vmatprep.subr.mxu0 0.0
      %2050 = vmatpush1.msra.mxu0 0.0
      %2051 = vmatprep.subr.mxu0 0.0
      %2052 = vmatpush1.msra.mxu0 0.0
      %2053 = vmatprep.subr.mxu0 0.0
      %2054 = vmatpush1.msra.mxu0 0.0
      %2055 = vmatprep.subr.mxu0 0.0
      %2056 = vmatpush1.msra.mxu0 0.0
      %2057 = vmatprep.subr.mxu0 0.0
      %2058 = vmatpush1.msra.mxu0 0.0
      %2059 = vmatprep.subr.mxu0 0.0
      %2060 = vmatpush1.msra.mxu0 0.0
      %2061 = vmatprep.subr.mxu0 0.0
      %2062 = vmatpush1.msra.mxu0 0.0
      %2063 = vmatprep.subr.mxu0 0.0
      %2064 = vmatpush1.msra.mxu0 0.0
      %2065 = vmatprep.subr.mxu0 0.0
      %2066 = vmatpush1.msra.mxu0 0.0
      %2067 = vmatprep.subr.mxu0 0.0
      %2068 = vmatpush1.msra.mxu0 0.0
      %2069 = vmatprep.subr.mxu0 0.0
      %2070 = vmatpush1.msra.mxu0 0.0
      %2071 = vmatprep.subr.mxu0 0.0
      %2072 = vmatpush1.msra.mxu0 0.0
      %2073 = vmatprep.subr.mxu0 0.0
      %2074 = vmatpush1.msra.mxu0 0.0
      %2075 = vmatprep.subr.mxu0 0.0
      %2076 = vmatpush1.msra.mxu0 0.0
      %2077 = vmatprep.subr.mxu0 0.0
      %2078 = vmatpush1.msra.mxu0 0.0
      %2079 = vmatprep.subr.mxu0 0.0
      %2080 = vmatpush1.msra.mxu0 0.0
      %2081 = vmatprep.subr.mxu0 0.0
      %2082 = vmatpush1.msra.mxu0 0.0
      %2083 = vmatprep.subr.mxu0 0.0
      %2084 = vmatpush1.msra.mxu0 0.0
      %2085 = vmatprep.subr.mxu0 0.0
      %2086 = vmatpush1.msra.mxu0 0.0
      %2087 = vmatprep.subr.mxu0 0.0
      %2088 = vmatpush1.msra.mxu0 0.0
      %2089 = vmatprep.mubr.f32.mxu0 0.0
      %2090 = vmatmul.mubr.f32.gmra.mrb[0].mxu0 %v1926
      %v2091 = vpop.f32.mrb[0].mxu0
      %v2092 = vadd.f32 %v1922, %v2091
      %v2093 = vpop.f32.mrb[0].mxu0
      %2094 = vmatprep.mubr.f32.mxu0 0.0
      %2095 = vmatmul.mubr.f32.gmra.mrb[0].mxu0 %v1929
      %v2096 = vpop.f32.mrb[0].mxu0
      %v2097 = vadd.f32 %v1922, %v2096
      %v2098 = vpop.f32.mrb[0].mxu0
      %2099 = vmatprep.mubr.f32.mxu0 0.0
      %2100 = vmatmul.mubr.f32.gmra.mrb[0].mxu0 %v1932
      %v2101 = vpop.f32.mrb[0].mxu0
      %v2102 = vadd.f32 %v1922, %v2101
      %v2103 = vpop.f32.mrb[0].mxu0
      %2104 = vmatprep.mubr.f32.mxu0 0.0
      %2105 = vmatmul.mubr.f32.gmra.mrb[0].mxu0 %v1935
      %v2106 = vpop.f32.mrb[0].mxu0
      %v2107 = vadd.f32 %v1922, %v2106
      %v2108 = vpop.f32.mrb[0].mxu0
      %2109 = vmatprep.mubr.f32.mxu0 0.0
      %2110 = vmatmul.mubr.f32.gmra.mrb[0].mxu0 %v1938
      %v2111 = vpop.f32.mrb[0].mxu0
      %v2112 = vadd.f32 %v1922, %v2111
      %v2113 = vpop.f32.mrb[0].mxu0
      %2114 = vmatprep.mubr.f32.mxu0 0.0
      %2115 = vmatmul.mubr.f32.gmra.mrb[0].mxu0 %v1941
      %v2116 = vpop.f32.mrb[0].mxu0
      %v2117 = vadd.f32 %v1922, %v2116
      %v2118 = vpop.f32.mrb[0].mxu0
      %2119 = vmatprep.mubr.f32.mxu0 0.0
      %2120 = vmatmul.mubr.f32.gmra.mrb[0].mxu0 %v1944
      %v2121 = vpop.f32.mrb[0].mxu0
      %v2122 = vadd.f32 %v1922, %v2121
      %v2123 = vpop.f32.mrb[0].mxu0
      %2124 = vmatprep.mubr.f32.mxu0 0.0
      %2125 = vmatmul.mubr.f32.gmra.mrb[0].mxu0 %v1947
      %v2126 = vpop.f32.mrb[0].mxu0
      %v2127 = vadd.f32 %v1922, %v2126
      %v2128 = vpop.f32.mrb[0].mxu0
      %2129 = vmatprep.mubr.f32.mxu0 0.0
      %2130 = vmatmul.mubr.f32.gmra.mrb[0].mxu0 %v1950
      %v2131 = vpop.f32.mrb[0].mxu0
      %v2132 = vadd.f32 %v1922, %v2131
      %v2133 = vpop.f32.mrb[0].mxu0
      %2134 = vmatprep.mubr.f32.mxu0 0.0
      %2135 = vmatmul.mubr.f32.gmra.mrb[0].mxu0 %v1953
      %v2136 = vpop.f32.mrb[0].mxu0
      %v2137 = vadd.f32 %v1922, %v2136
      %v2138 = vpop.f32.mrb[0].mxu0
      %2139 = vmatprep.mubr.f32.mxu0 0.0
      %2140 = vmatmul.mubr.f32.gmra.mrb[0].mxu0 %v1956
      %v2141 = vpop.f32.mrb[0].mxu0
      %v2142 = vadd.f32 %v1922, %v2141
      %v2143 = vpop.f32.mrb[0].mxu0
      %2144 = vmatprep.mubr.f32.mxu0 0.0
      %2145 = vmatmul.mubr.f32.gmra.mrb[0].mxu0 %v1959
      %v2146 = vpop.f32.mrb[0].mxu0
      %v2147 = vadd.f32 %v1922, %v2146
      %v2148 = vpop.f32.mrb[0].mxu0
      %2149 = vmatprep.mubr.f32.mxu0 0.0
      %2150 = vmatmul.mubr.f32.gmra.mrb[0].mxu0 %v1962
      %v2151 = vpop.f32.mrb[0].mxu0
      %v2152 = vadd.f32 %v1922, %v2151
      %v2153 = vpop.f32.mrb[0].mxu0
      %2154 = vmatprep.mubr.f32.mxu0 0.0
      %2155 = vmatmul.mubr.f32.gmra.mrb[0].mxu0 %v1965
      %v2156 = vpop.f32.mrb[0].mxu0
      %v2157 = vadd.f32 %v1922, %v2156
      %v2158 = vpop.f32.mrb[0].mxu0
      %2159 = vmatprep.mubr.f32.mxu0 0.0
      %2160 = vmatmul.mubr.f32.gmra.mrb[0].mxu0 %v1968
      %v2161 = vpop.f32.mrb[0].mxu0
      %v2162 = vadd.f32 %v1922, %v2161
      %v2163 = vpop.f32.mrb[0].mxu0
      %2164 = vmatprep.mubr.f32.mxu0 0.0
      %2165 = vmatmul.mubr.f32.gmra.mrb[0].mxu0 %v1971
      %v2166 = vpop.f32.mrb[0].mxu0
      %v2167 = vadd.f32 %v1922, %v2166
      %v2168 = vpop.f32.mrb[0].mxu0
      %2169 = vmatprep.mubr.f32.mxu0 0.0
      %2170 = vmatmul.mubr.f32.gmra.mrb[0].mxu0 %v1974
      %v2171 = vpop.f32.mrb[0].mxu0
      %v2172 = vadd.f32 %v1922, %v2171
      %v2173 = vpop.f32.mrb[0].mxu0
      %2174 = vmatprep.mubr.f32.mxu0 0.0
      %2175 = vmatmul.mubr.f32.gmra.mrb[0].mxu0 %v1977
      %v2176 = vpop.f32.mrb[0].mxu0
      %v2177 = vadd.f32 %v1922, %v2176
      %v2178 = vpop.f32.mrb[0].mxu0
      %2179 = vmatprep.mubr.f32.mxu0 0.0
      %2180 = vmatmul.mubr.f32.gmra.mrb[0].mxu0 %v1980
      %v2181 = vpop.f32.mrb[0].mxu0
      %v2182 = vadd.f32 %v1922, %v2181
      %v2183 = vpop.f32.mrb[0].mxu0
      %2184 = vmatprep.mubr.f32.mxu0 0.0
      %2185 = vmatmul.mubr.f32.gmra.mrb[0].mxu0 %v1983
      %v2186 = vpop.f32.mrb[0].mxu0
      %v2187 = vadd.f32 %v1922, %v2186
      %v2188 = vpop.f32.mrb[0].mxu0
      %2189 = vmatprep.mubr.f32.mxu0 0.0
      %2190 = vmatmul.mubr.f32.gmra.mrb[0].mxu0 %v1986
      %v2191 = vpop.f32.mrb[0].mxu0
      %v2192 = vadd.f32 %v1922, %v2191
      %v2193 = vpop.f32.mrb[0].mxu0
      %2194 = vmatprep.mubr.f32.mxu0 0.0
      %2195 = vmatmul.mubr.f32.gmra.mrb[0].mxu0 %v1989
      %v2196 = vpop.f32.mrb[0].mxu0
      %v2197 = vadd.f32 %v1922, %v2196
      %v2198 = vpop.f32.mrb[0].mxu0
      %2199 = vmatprep.mubr.f32.mxu0 0.0
      %2200 = vmatmul.mubr.f32.gmra.mrb[0].mxu0 %v1992
      %v2201 = vpop.f32.mrb[0].mxu0
      %v2202 = vadd.f32 %v1922, %v2201
      %v2203 = vpop.f32.mrb[0].mxu0
      %2204 = vmatprep.mubr.f32.mxu0 0.0
      %2205 = vmatmul.mubr.f32.gmra.mrb[0].mxu0 %v1995
      %v2206 = vpop.f32.mrb[0].mxu0
      %v2207 = vadd.f32 %v1922, %v2206
      %v2208 = vpop.f32.mrb[0].mxu0
      %2209 = vmatprep.mubr.f32.mxu0 0.0
      %2210 = vmatmul.mubr.f32.gmra.mrb[0].mxu0 %v1998
      %v2211 = vpop.f32.mrb[0].mxu0
      %v2212 = vadd.f32 %v1922, %v2211
      %v2213 = vpop.f32.mrb[0].mxu0
      %2214 = vmatprep.mubr.f32.mxu0 0.0
      %2215 = vmatmul.mubr.f32.gmra.mrb[0].mxu0 %v2001
      %v2216 = vpop.f32.mrb[0].mxu0
      %v2217 = vadd.f32 %v1922, %v2216
      %v2218 = vpop.f32.mrb[0].mxu0
      %2219 = vmatprep.mubr.f32.mxu0 0.0
      %2220 = vmatmul.mubr.f32.gmra.mrb[0].mxu0 %v2004
      %v2221 = vpop.f32.mrb[0].mxu0
      %v2222 = vadd.f32 %v1922, %v2221
      %v2223 = vpop.f32.mrb[0].mxu0
      %2224 = vmatprep.mubr.f32.mxu0 0.0
      %2225 = vmatmul.mubr.f32.gmra.mrb[0].mxu0 %v2007
      %v2226 = vpop.f32.mrb[0].mxu0
      %v2227 = vadd.f32 %v1922, %v2226
      %v2228 = vpop.f32.mrb[0].mxu0
      %2229 = vmatprep.mubr.f32.mxu0 0.0
      %2230 = vmatmul.mubr.f32.gmra.mrb[0].mxu0 %v2010
      %v2231 = vpop.f32.mrb[0].mxu0
      %v2232 = vadd.f32 %v1922, %v2231
      %v2233 = vpop.f32.mrb[0].mxu0
      %2234 = vmatprep.mubr.f32.mxu0 0.0
      %2235 = vmatmul.mubr.f32.gmra.mrb[0].mxu0 %v2013
      %v2236 = vpop.f32.mrb[0].mxu0
      %v2237 = vadd.f32 %v1922, %v2236
      %v2238 = vpop.f32.mrb[0].mxu0
      %2239 = vmatprep.mubr.f32.mxu0 0.0
      %2240 = vmatmul.mubr.f32.gmra.mrb[0].mxu0 %v2016
      %v2241 = vpop.f32.mrb[0].mxu0
      %v2242 = vadd.f32 %v1922, %v2241
      %v2243 = vpop.f32.mrb[0].mxu0
      %2244 = vmatprep.mubr.f32.mxu0 0.0
      %2245 = vmatmul.mubr.f32.gmra.mrb[0].mxu0 %v2019
      %v2246 = vpop.f32.mrb[0].mxu0
      %v2247 = vadd.f32 %v1922, %v2246
      %v2248 = vpop.f32.mrb[0].mxu0
      %2249 = vdwg.mxu0
      %v2250 = vmax.f32 %v2092, 0.0
      %v2251 = vmax.f32 %v2097, 0.0
      %v2252 = vmax.f32 %v2102, 0.0
      %v2253 = vmax.f32 %v2107, 0.0
      %v2254 = vmax.f32 %v2112, 0.0
      %v2255 = vmax.f32 %v2117, 0.0
      %v2256 = vmax.f32 %v2122, 0.0
      %v2257 = vmax.f32 %v2127, 0.0
      %v2258 = vmax.f32 %v2132, 0.0
      %v2259 = vmax.f32 %v2137, 0.0
      %v2260 = vmax.f32 %v2142, 0.0
      %v2261 = vmax.f32 %v2147, 0.0
      %v2262 = vmax.f32 %v2152, 0.0
      %v2263 = vmax.f32 %v2157, 0.0
      %v2264 = vmax.f32 %v2162, 0.0
      %v2265 = vmax.f32 %v2167, 0.0
      %v2266 = vmax.f32 %v2172, 0.0
      %v2267 = vmax.f32 %v2177, 0.0
      %v2268 = vmax.f32 %v2182, 0.0
      %v2269 = vmax.f32 %v2187, 0.0
      %v2270 = vmax.f32 %v2192, 0.0
      %v2271 = vmax.f32 %v2197, 0.0
      %v2272 = vmax.f32 %v2202, 0.0
      %v2273 = vmax.f32 %v2207, 0.0
      %v2274 = vmax.f32 %v2212, 0.0
      %v2275 = vmax.f32 %v2217, 0.0
      %v2276 = vmax.f32 %v2222, 0.0
      %v2277 = vmax.f32 %v2227, 0.0
      %v2278 = vmax.f32 %v2232, 0.0
      %v2279 = vmax.f32 %v2237, 0.0
      %v2280 = vmax.f32 %v2242, 0.0
      %v2281 = vmax.f32 %v2247, 0.0
      %2282 = vst.msk [vmem:[%s303 + $0x1] sm:$0xff] %vm225, %v2250
      %2283 = vst.msk [vmem:[%s303 + $0x9] sm:$0xff] %vm225, %v2251
      %2284 = vst.msk [vmem:[%s303 + $0x19] sm:$0xff] %vm225, %v2252
      %2285 = vst.msk [vmem:[%s303 + $0x21] sm:$0xff] %vm225, %v2253
      %2286 = vst.msk [vmem:[%s303 + $0x31] sm:$0xff] %vm225, %v2254
      %2287 = vst.msk [vmem:[%s303 + $0x39] sm:$0xff] %vm225, %v2255
      %2288 = vst.msk [vmem:[%s303 + $0x49] sm:$0xff] %vm225, %v2256
      %2289 = vst.msk [vmem:[%s303 + $0x51] sm:$0xff] %vm225, %v2257
      %2290 = vst.msk [vmem:[%s303 + $0x61] sm:$0xff] %vm225, %v2258
      %2291 = vst.msk [vmem:[%s303 + $0x69] sm:$0xff] %vm225, %v2259
      %2292 = vst.msk [vmem:[%s303 + $0x79] sm:$0xff] %vm225, %v2260
      %2293 = vst.msk [vmem:[%s303 + $0x81] sm:$0xff] %vm225, %v2261
      %2294 = vst.msk [vmem:[%s303 + $0x91] sm:$0xff] %vm225, %v2262
      %2295 = vst.msk [vmem:[%s303 + $0x99] sm:$0xff] %vm225, %v2263
      %2296 = vst.msk [vmem:[%s303 + $0xa9] sm:$0xff] %vm225, %v2264
      %2297 = vst.msk [vmem:[%s303 + $0xb1] sm:$0xff] %vm225, %v2265
      %2298 = vst.msk [vmem:[%s303 + $0xc1] sm:$0xff] %vm225, %v2266
      %2299 = vst.msk [vmem:[%s303 + $0xc9] sm:$0xff] %vm225, %v2267
      %2300 = vst.msk [vmem:[%s303 + $0xd9] sm:$0xff] %vm225, %v2268
      %2301 = vst.msk [vmem:[%s303 + $0xe1] sm:$0xff] %vm225, %v2269
      %2302 = vst.msk [vmem:[%s303 + $0xf1] sm:$0xff] %vm225, %v2270
      %2303 = vst.msk [vmem:[%s303 + $0xf9] sm:$0xff] %vm225, %v2271
      %2304 = vst.msk [vmem:[%s303 + $0x109] sm:$0xff] %vm225, %v2272
      %2305 = vst.msk [vmem:[%s303 + $0x111] sm:$0xff] %vm225, %v2273
      %2306 = vst.msk [vmem:[%s303 + $0x121] sm:$0xff] %vm225, %v2274
      %2307 = vst.msk [vmem:[%s303 + $0x129] sm:$0xff] %vm225, %v2275
      %2308 = vst.msk [vmem:[%s303 + $0x139] sm:$0xff] %vm225, %v2276
      %2309 = vst.msk [vmem:[%s303 + $0x141] sm:$0xff] %vm225, %v2277
      %2310 = vst.msk [vmem:[%s303 + $0x151] sm:$0xff] %vm225, %v2278
      %2311 = vst.msk [vmem:[%s303 + $0x159] sm:$0xff] %vm225, %v2279
      %2312 = vst.msk [vmem:[%s303 + $0x169] sm:$0xff] %vm225, %v2280
      %2313 = vst.msk [vmem:[%s303 + $0x171] sm:$0xff] %vm225, %v2281
      %v2314 = vld [vmem:[%s3] sm:$0xff]
      %v2315 = vld [vmem:[%s3 + $0x8] sm:$0xff]
      %v2316 = vld [vmem:[%s3 + $0x10] sm:$0xff]
      %v2317 = vld [vmem:[%s3 + $0x18] sm:$0xff]
      %v2318 = vld [vmem:[%s3 + $0x20] sm:$0xf]
      %v2319 = vld [vmem:[#allocation2] sm:$0xff]
      %v2320 = vld [vmem:[#allocation2 + $0x8] sm:$0xff]
      %v2321 = vld [vmem:[#allocation2 + $0x18] sm:$0xff]
      %v2322 = vld [vmem:[#allocation2 + $0x20] sm:$0xff]
      %v2323 = vld [vmem:[#allocation2 + $0x30] sm:$0xff]
      %v2324 = vld [vmem:[#allocation2 + $0x38] sm:$0xff]
      %v2325 = vld [vmem:[#allocation2 + $0x48] sm:$0xff]
      %v2326 = vld [vmem:[#allocation2 + $0x50] sm:$0xff]
      %v2327 = vld [vmem:[#allocation2 + $0x60] sm:$0xff]
      %v2328 = vld [vmem:[#allocation2 + $0x68] sm:$0xff]
      %v2329 = vld [vmem:[#allocation2 + $0x78] sm:$0xff]
      %v2330 = vld [vmem:[#allocation2 + $0x80] sm:$0xff]
      %v2331 = vld [vmem:[#allocation2 + $0x90] sm:$0xff]
      %v2332 = vld [vmem:[#allocation2 + $0x98] sm:$0xff]
      %v2333 = vld [vmem:[#allocation2 + $0xa8] sm:$0xff]
      %v2334 = vld [vmem:[#allocation2 + $0xb0] sm:$0xff]
      %v2335 = vld [vmem:[#allocation2 + $0xc0] sm:$0xff]
      %v2336 = vld [vmem:[#allocation2 + $0xc8] sm:$0xff]
      %v2337 = vld [vmem:[#allocation2 + $0xd8] sm:$0xff]
      %v2338 = vld [vmem:[#allocation2 + $0xe0] sm:$0xff]
      %v2339 = vld [vmem:[#allocation2 + $0xf0] sm:$0xff]
      %v2340 = vld [vmem:[#allocation2 + $0xf8] sm:$0xff]
      %v2341 = vld [vmem:[#allocation2 + $0x108] sm:$0xff]
      %v2342 = vld [vmem:[#allocation2 + $0x110] sm:$0xff]
      %v2343 = vld [vmem:[#allocation2 + $0x120] sm:$0xff]
      %v2344 = vld [vmem:[#allocation2 + $0x128] sm:$0xff]
      %v2345 = vld [vmem:[#allocation2 + $0x138] sm:$0xff]
      %v2346 = vld [vmem:[#allocation2 + $0x140] sm:$0xff]
      %v2347 = vld [vmem:[#allocation2 + $0x150] sm:$0xff]
      %v2348 = vld [vmem:[#allocation2 + $0x158] sm:$0xff]
      %v2349 = vld [vmem:[#allocation2 + $0x168] sm:$0xff]
      %v2350 = vld [vmem:[#allocation2 + $0x170] sm:$0xff]
      %v2351 = vld [vmem:[#allocation2 + $0x1] sm:$0xff]
      %v2352 = vld [vmem:[#allocation2 + $0x9] sm:$0xff]
      %v2353 = vld [vmem:[#allocation2 + $0x19] sm:$0xff]
      %v2354 = vld [vmem:[#allocation2 + $0x21] sm:$0xff]
      %v2355 = vld [vmem:[#allocation2 + $0x31] sm:$0xff]
      %v2356 = vld [vmem:[#allocation2 + $0x39] sm:$0xff]
      %v2357 = vld [vmem:[#allocation2 + $0x49] sm:$0xff]
      %v2358 = vld [vmem:[#allocation2 + $0x51] sm:$0xff]
      %v2359 = vld [vmem:[#allocation2 + $0x61] sm:$0xff]
      %v2360 = vld [vmem:[#allocation2 + $0x69] sm:$0xff]
      %v2361 = vld [vmem:[#allocation2 + $0x79] sm:$0xff]
      %v2362 = vld [vmem:[#allocation2 + $0x81] sm:$0xff]
      %v2363 = vld [vmem:[#allocation2 + $0x91] sm:$0xff]
      %v2364 = vld [vmem:[#allocation2 + $0x99] sm:$0xff]
      %v2365 = vld [vmem:[#allocation2 + $0xa9] sm:$0xff]
      %v2366 = vld [vmem:[#allocation2 + $0xb1] sm:$0xff]
      %v2367 = vld [vmem:[#allocation2 + $0xc1] sm:$0xff]
      %v2368 = vld [vmem:[#allocation2 + $0xc9] sm:$0xff]
      %v2369 = vld [vmem:[#allocation2 + $0xd9] sm:$0xff]
      %v2370 = vld [vmem:[#allocation2 + $0xe1] sm:$0xff]
      %v2371 = vld [vmem:[#allocation2 + $0xf1] sm:$0xff]
      %v2372 = vld [vmem:[#allocation2 + $0xf9] sm:$0xff]
      %v2373 = vld [vmem:[#allocation2 + $0x109] sm:$0xff]
      %v2374 = vld [vmem:[#allocation2 + $0x111] sm:$0xff]
      %v2375 = vld [vmem:[#allocation2 + $0x121] sm:$0xff]
      %v2376 = vld [vmem:[#allocation2 + $0x129] sm:$0xff]
      %v2377 = vld [vmem:[#allocation2 + $0x139] sm:$0xff]
      %v2378 = vld [vmem:[#allocation2 + $0x141] sm:$0xff]
      %v2379 = vld [vmem:[#allocation2 + $0x151] sm:$0xff]
      %v2380 = vld [vmem:[#allocation2 + $0x159] sm:$0xff]
      %v2381 = vld [vmem:[#allocation2 + $0x169] sm:$0xff]
      %v2382 = vld [vmem:[#allocation2 + $0x171] sm:$0xff]
      %v2383 = vld [vmem:[#allocation2 + $0x2] sm:$0xff]
      %v2384 = vld [vmem:[#allocation2 + $0xa] sm:$0xff]
      %v2385 = vld [vmem:[#allocation2 + $0x1a] sm:$0xff]
      %v2386 = vld [vmem:[#allocation2 + $0x22] sm:$0xff]
      %v2387 = vld [vmem:[#allocation2 + $0x32] sm:$0xff]
      %v2388 = vld [vmem:[#allocation2 + $0x3a] sm:$0xff]
      %v2389 = vld [vmem:[#allocation2 + $0x4a] sm:$0xff]
      %v2390 = vld [vmem:[#allocation2 + $0x52] sm:$0xff]
      %v2391 = vld [vmem:[#allocation2 + $0x62] sm:$0xff]
      %v2392 = vld [vmem:[#allocation2 + $0x6a] sm:$0xff]
      %v2393 = vld [vmem:[#allocation2 + $0x7a] sm:$0xff]
      %v2394 = vld [vmem:[#allocation2 + $0x82] sm:$0xff]
      %v2395 = vld [vmem:[#allocation2 + $0x92] sm:$0xff]
      %v2396 = vld [vmem:[#allocation2 + $0x9a] sm:$0xff]
      %v2397 = vld [vmem:[#allocation2 + $0xaa] sm:$0xff]
      %v2398 = vld [vmem:[#allocation2 + $0xb2] sm:$0xff]
      %v2399 = vld [vmem:[#allocation2 + $0xc2] sm:$0xff]
      %v2400 = vld [vmem:[#allocation2 + $0xca] sm:$0xff]
      %v2401 = vld [vmem:[#allocation2 + $0xda] sm:$0xff]
      %v2402 = vld [vmem:[#allocation2 + $0xe2] sm:$0xff]
      %v2403 = vld [vmem:[#allocation2 + $0xf2] sm:$0xff]
      %v2404 = vld [vmem:[#allocation2 + $0xfa] sm:$0xff]
      %v2405 = vld [vmem:[#allocation2 + $0x10a] sm:$0xff]
      %v2406 = vld [vmem:[#allocation2 + $0x112] sm:$0xff]
      %v2407 = vld [vmem:[#allocation2 + $0x122] sm:$0xff]
      %v2408 = vld [vmem:[#allocation2 + $0x12a] sm:$0xff]
      %v2409 = vld [vmem:[#allocation2 + $0x13a] sm:$0xff]
      %v2410 = vld [vmem:[#allocation2 + $0x142] sm:$0xff]
      %v2411 = vld [vmem:[#allocation2 + $0x152] sm:$0xff]
      %v2412 = vld [vmem:[#allocation2 + $0x15a] sm:$0xff]
      %v2413 = vld [vmem:[#allocation2 + $0x16a] sm:$0xff]
      %v2414 = vld [vmem:[#allocation2 + $0x172] sm:$0xff]
      %v2415 = vld [vmem:[%s303] sm:$0xff]
      %v2416 = vld [vmem:[%s303 + $0x8] sm:$0xff]
      %v2417 = vld [vmem:[%s303 + $0x18] sm:$0xff]
      %v2418 = vld [vmem:[%s303 + $0x20] sm:$0xff]
      %v2419 = vld [vmem:[%s303 + $0x30] sm:$0xff]
      %v2420 = vld [vmem:[%s303 + $0x38] sm:$0xff]
      %v2421 = vld [vmem:[%s303 + $0x48] sm:$0xff]
      %v2422 = vld [vmem:[%s303 + $0x50] sm:$0xff]
      %v2423 = vld [vmem:[%s303 + $0x60] sm:$0xff]
      %v2424 = vld [vmem:[%s303 + $0x68] sm:$0xff]
      %v2425 = vld [vmem:[%s303 + $0x78] sm:$0xff]
      %v2426 = vld [vmem:[%s303 + $0x80] sm:$0xff]
      %v2427 = vld [vmem:[%s303 + $0x90] sm:$0xff]
      %v2428 = vld [vmem:[%s303 + $0x98] sm:$0xff]
      %v2429 = vld [vmem:[%s303 + $0xa8] sm:$0xff]
      %v2430 = vld [vmem:[%s303 + $0xb0] sm:$0xff]
      %v2431 = vld [vmem:[%s303 + $0xc0] sm:$0xff]
      %v2432 = vld [vmem:[%s303 + $0xc8] sm:$0xff]
      %v2433 = vld [vmem:[%s303 + $0xd8] sm:$0xff]
      %v2434 = vld [vmem:[%s303 + $0xe0] sm:$0xff]
      %v2435 = vld [vmem:[%s303 + $0xf0] sm:$0xff]
      %v2436 = vld [vmem:[%s303 + $0xf8] sm:$0xff]
      %v2437 = vld [vmem:[%s303 + $0x108] sm:$0xff]
      %v2438 = vld [vmem:[%s303 + $0x110] sm:$0xff]
      %v2439 = vld [vmem:[%s303 + $0x120] sm:$0xff]
      %v2440 = vld [vmem:[%s303 + $0x128] sm:$0xff]
      %v2441 = vld [vmem:[%s303 + $0x138] sm:$0xff]
      %v2442 = vld [vmem:[%s303 + $0x140] sm:$0xff]
      %v2443 = vld [vmem:[%s303 + $0x150] sm:$0xff]
      %v2444 = vld [vmem:[%s303 + $0x158] sm:$0xff]
      %v2445 = vld [vmem:[%s303 + $0x168] sm:$0xff]
      %v2446 = vld [vmem:[%s303 + $0x170] sm:$0xff]
      %v2447 = vld [vmem:[%s303 + $0x1] sm:$0xff]
      %v2448 = vld [vmem:[%s303 + $0x9] sm:$0xff]
      %v2449 = vld [vmem:[%s303 + $0x19] sm:$0xff]
      %v2450 = vld [vmem:[%s303 + $0x21] sm:$0xff]
      %v2451 = vld [vmem:[%s303 + $0x31] sm:$0xff]
      %v2452 = vld [vmem:[%s303 + $0x39] sm:$0xff]
      %v2453 = vld [vmem:[%s303 + $0x49] sm:$0xff]
      %v2454 = vld [vmem:[%s303 + $0x51] sm:$0xff]
      %v2455 = vld [vmem:[%s303 + $0x61] sm:$0xff]
      %v2456 = vld [vmem:[%s303 + $0x69] sm:$0xff]
      %v2457 = vld [vmem:[%s303 + $0x79] sm:$0xff]
      %v2458 = vld [vmem:[%s303 + $0x81] sm:$0xff]
      %v2459 = vld [vmem:[%s303 + $0x91] sm:$0xff]
      %v2460 = vld [vmem:[%s303 + $0x99] sm:$0xff]
      %v2461 = vld [vmem:[%s303 + $0xa9] sm:$0xff]
      %v2462 = vld [vmem:[%s303 + $0xb1] sm:$0xff]
      %v2463 = vld [vmem:[%s303 + $0xc1] sm:$0xff]
      %v2464 = vld [vmem:[%s303 + $0xc9] sm:$0xff]
      %v2465 = vld [vmem:[%s303 + $0xd9] sm:$0xff]
      %v2466 = vld [vmem:[%s303 + $0xe1] sm:$0xff]
      %v2467 = vld [vmem:[%s303 + $0xf1] sm:$0xff]
      %v2468 = vld [vmem:[%s303 + $0xf9] sm:$0xff]
      %v2469 = vld [vmem:[%s303 + $0x109] sm:$0xff]
      %v2470 = vld [vmem:[%s303 + $0x111] sm:$0xff]
      %v2471 = vld [vmem:[%s303 + $0x121] sm:$0xff]
      %v2472 = vld [vmem:[%s303 + $0x129] sm:$0xff]
      %v2473 = vld [vmem:[%s303 + $0x139] sm:$0xff]
      %v2474 = vld [vmem:[%s303 + $0x141] sm:$0xff]
      %v2475 = vld [vmem:[%s303 + $0x151] sm:$0xff]
      %v2476 = vld [vmem:[%s303 + $0x159] sm:$0xff]
      %v2477 = vld [vmem:[%s303 + $0x169] sm:$0xff]
      %v2478 = vld [vmem:[%s303 + $0x171] sm:$0xff]
      %v2479 = vld [vmem:[%s303 + $0x2] sm:$0xff]
      %v2480 = vld [vmem:[%s303 + $0xa] sm:$0xff]
      %v2481 = vld [vmem:[%s303 + $0x1a] sm:$0xff]
      %v2482 = vld [vmem:[%s303 + $0x22] sm:$0xff]
      %v2483 = vld [vmem:[%s303 + $0x32] sm:$0xff]
      %v2484 = vld [vmem:[%s303 + $0x3a] sm:$0xff]
      %v2485 = vld [vmem:[%s303 + $0x4a] sm:$0xff]
      %v2486 = vld [vmem:[%s303 + $0x52] sm:$0xff]
      %v2487 = vld [vmem:[%s303 + $0x62] sm:$0xff]
      %v2488 = vld [vmem:[%s303 + $0x6a] sm:$0xff]
      %v2489 = vld [vmem:[%s303 + $0x7a] sm:$0xff]
      %v2490 = vld [vmem:[%s303 + $0x82] sm:$0xff]
      %v2491 = vld [vmem:[%s303 + $0x92] sm:$0xff]
      %v2492 = vld [vmem:[%s303 + $0x9a] sm:$0xff]
      %v2493 = vld [vmem:[%s303 + $0xaa] sm:$0xff]
      %v2494 = vld [vmem:[%s303 + $0xb2] sm:$0xff]
      %v2495 = vld [vmem:[%s303 + $0xc2] sm:$0xff]
      %v2496 = vld [vmem:[%s303 + $0xca] sm:$0xff]
      %v2497 = vld [vmem:[%s303 + $0xda] sm:$0xff]
      %v2498 = vld [vmem:[%s303 + $0xe2] sm:$0xff]
      %v2499 = vld [vmem:[%s303 + $0xf2] sm:$0xff]
      %v2500 = vld [vmem:[%s303 + $0xfa] sm:$0xff]
      %v2501 = vld [vmem:[%s303 + $0x10a] sm:$0xff]
      %v2502 = vld [vmem:[%s303 + $0x112] sm:$0xff]
      %v2503 = vld [vmem:[%s303 + $0x122] sm:$0xff]
      %v2504 = vld [vmem:[%s303 + $0x12a] sm:$0xff]
      %v2505 = vld [vmem:[%s303 + $0x13a] sm:$0xff]
      %v2506 = vld [vmem:[%s303 + $0x142] sm:$0xff]
      %v2507 = vld [vmem:[%s303 + $0x152] sm:$0xff]
      %v2508 = vld [vmem:[%s303 + $0x15a] sm:$0xff]
      %v2509 = vld [vmem:[%s303 + $0x16a] sm:$0xff]
      %v2510 = vld [vmem:[%s303 + $0x172] sm:$0xff]
      %v2511 = vld [vmem:[%s533] sm:$0xff]
      %v2512 = vld [vmem:[%s533 + $0x8] sm:$0xff]
      %v2513 = vld [vmem:[%s533 + $0x18] sm:$0xff]
      %v2514 = vld [vmem:[%s533 + $0x20] sm:$0xff]
      %v2515 = vld [vmem:[%s533 + $0x30] sm:$0xff]
      %v2516 = vld [vmem:[%s533 + $0x38] sm:$0xff]
      %v2517 = vld [vmem:[%s533 + $0x48] sm:$0xff]
      %v2518 = vld [vmem:[%s533 + $0x50] sm:$0xff]
      %v2519 = vld [vmem:[%s533 + $0x60] sm:$0xff]
      %v2520 = vld [vmem:[%s533 + $0x68] sm:$0xff]
      %v2521 = vld [vmem:[%s533 + $0x78] sm:$0xff]
      %v2522 = vld [vmem:[%s533 + $0x80] sm:$0xff]
      %v2523 = vld [vmem:[%s533 + $0x90] sm:$0xff]
      %v2524 = vld [vmem:[%s533 + $0x98] sm:$0xff]
      %v2525 = vld [vmem:[%s533 + $0xa8] sm:$0xff]
      %v2526 = vld [vmem:[%s533 + $0xb0] sm:$0xff]
      %v2527 = vld [vmem:[%s533 + $0xc0] sm:$0xff]
      %v2528 = vld [vmem:[%s533 + $0xc8] sm:$0xff]
      %v2529 = vld [vmem:[%s533 + $0xd8] sm:$0xff]
      %v2530 = vld [vmem:[%s533 + $0xe0] sm:$0xff]
      %v2531 = vld [vmem:[%s533 + $0xf0] sm:$0xff]
      %v2532 = vld [vmem:[%s533 + $0xf8] sm:$0xff]
      %v2533 = vld [vmem:[%s533 + $0x108] sm:$0xff]
      %v2534 = vld [vmem:[%s533 + $0x110] sm:$0xff]
      %v2535 = vld [vmem:[%s533 + $0x120] sm:$0xff]
      %v2536 = vld [vmem:[%s533 + $0x128] sm:$0xff]
      %v2537 = vld [vmem:[%s533 + $0x138] sm:$0xff]
      %v2538 = vld [vmem:[%s533 + $0x140] sm:$0xff]
      %v2539 = vld [vmem:[%s533 + $0x150] sm:$0xff]
      %v2540 = vld [vmem:[%s533 + $0x158] sm:$0xff]
      %v2541 = vld [vmem:[%s533 + $0x168] sm:$0xff]
      %v2542 = vld [vmem:[%s533 + $0x170] sm:$0xff]
      %v2543 = vld [vmem:[%s533 + $0x1] sm:$0xff]
      %v2544 = vld [vmem:[%s533 + $0x9] sm:$0xff]
      %v2545 = vld [vmem:[%s533 + $0x19] sm:$0xff]
      %v2546 = vld [vmem:[%s533 + $0x21] sm:$0xff]
      %v2547 = vld [vmem:[%s533 + $0x31] sm:$0xff]
      %v2548 = vld [vmem:[%s533 + $0x39] sm:$0xff]
      %v2549 = vld [vmem:[%s533 + $0x49] sm:$0xff]
      %v2550 = vld [vmem:[%s533 + $0x51] sm:$0xff]
      %v2551 = vld [vmem:[%s533 + $0x61] sm:$0xff]
      %v2552 = vld [vmem:[%s533 + $0x69] sm:$0xff]
      %v2553 = vld [vmem:[%s533 + $0x79] sm:$0xff]
      %v2554 = vld [vmem:[%s533 + $0x81] sm:$0xff]
      %v2555 = vld [vmem:[%s533 + $0x91] sm:$0xff]
      %v2556 = vld [vmem:[%s533 + $0x99] sm:$0xff]
      %v2557 = vld [vmem:[%s533 + $0xa9] sm:$0xff]
      %v2558 = vld [vmem:[%s533 + $0xb1] sm:$0xff]
      %v2559 = vld [vmem:[%s533 + $0xc1] sm:$0xff]
      %v2560 = vld [vmem:[%s533 + $0xc9] sm:$0xff]
      %v2561 = vld [vmem:[%s533 + $0xd9] sm:$0xff]
      %v2562 = vld [vmem:[%s533 + $0xe1] sm:$0xff]
      %v2563 = vld [vmem:[%s533 + $0xf1] sm:$0xff]
      %v2564 = vld [vmem:[%s533 + $0xf9] sm:$0xff]
      %v2565 = vld [vmem:[%s533 + $0x109] sm:$0xff]
      %v2566 = vld [vmem:[%s533 + $0x111] sm:$0xff]
      %v2567 = vld [vmem:[%s533 + $0x121] sm:$0xff]
      %v2568 = vld [vmem:[%s533 + $0x129] sm:$0xff]
      %v2569 = vld [vmem:[%s533 + $0x139] sm:$0xff]
      %v2570 = vld [vmem:[%s533 + $0x141] sm:$0xff]
      %v2571 = vld [vmem:[%s533 + $0x151] sm:$0xff]
      %v2572 = vld [vmem:[%s533 + $0x159] sm:$0xff]
      %v2573 = vld [vmem:[%s533 + $0x169] sm:$0xff]
      %v2574 = vld [vmem:[%s533 + $0x171] sm:$0xff]
      %v2575 = vld [vmem:[%s533 + $0x2] sm:$0xff]
      %v2576 = vld [vmem:[%s533 + $0xa] sm:$0xff]
      %v2577 = vld [vmem:[%s533 + $0x1a] sm:$0xff]
      %v2578 = vld [vmem:[%s533 + $0x22] sm:$0xff]
      %v2579 = vld [vmem:[%s533 + $0x32] sm:$0xff]
      %v2580 = vld [vmem:[%s533 + $0x3a] sm:$0xff]
      %v2581 = vld [vmem:[%s533 + $0x4a] sm:$0xff]
      %v2582 = vld [vmem:[%s533 + $0x52] sm:$0xff]
      %v2583 = vld [vmem:[%s533 + $0x62] sm:$0xff]
      %v2584 = vld [vmem:[%s533 + $0x6a] sm:$0xff]
      %v2585 = vld [vmem:[%s533 + $0x7a] sm:$0xff]
      %v2586 = vld [vmem:[%s533 + $0x82] sm:$0xff]
      %v2587 = vld [vmem:[%s533 + $0x92] sm:$0xff]
      %v2588 = vld [vmem:[%s533 + $0x9a] sm:$0xff]
      %v2589 = vld [vmem:[%s533 + $0xaa] sm:$0xff]
      %v2590 = vld [vmem:[%s533 + $0xb2] sm:$0xff]
      %v2591 = vld [vmem:[%s533 + $0xc2] sm:$0xff]
      %v2592 = vld [vmem:[%s533 + $0xca] sm:$0xff]
      %v2593 = vld [vmem:[%s533 + $0xda] sm:$0xff]
      %v2594 = vld [vmem:[%s533 + $0xe2] sm:$0xff]
      %v2595 = vld [vmem:[%s533 + $0xf2] sm:$0xff]
      %v2596 = vld [vmem:[%s533 + $0xfa] sm:$0xff]
      %v2597 = vld [vmem:[%s533 + $0x10a] sm:$0xff]
      %v2598 = vld [vmem:[%s533 + $0x112] sm:$0xff]
      %v2599 = vld [vmem:[%s533 + $0x122] sm:$0xff]
      %v2600 = vld [vmem:[%s533 + $0x12a] sm:$0xff]
      %v2601 = vld [vmem:[%s533 + $0x13a] sm:$0xff]
      %v2602 = vld [vmem:[%s533 + $0x142] sm:$0xff]
      %v2603 = vld [vmem:[%s533 + $0x152] sm:$0xff]
      %v2604 = vld [vmem:[%s533 + $0x15a] sm:$0xff]
      %v2605 = vld [vmem:[%s533 + $0x16a] sm:$0xff]
      %v2606 = vld [vmem:[%s533 + $0x172] sm:$0xff]
      %2639 = vrot.lane.b32.xlu0 %v2351, 4
      %v2640 = vpop.permute.xlu0 %2639
      %2641 = vrot.lane.b32.xlu0 %v2352, 4
      %v2642 = vpop.permute.xlu0 %2641
      %2643 = vrot.lane.b32.xlu0 %v2353, 4
      %v2644 = vpop.permute.xlu0 %2643
      %2645 = vrot.lane.b32.xlu0 %v2354, 4
      %v2646 = vpop.permute.xlu0 %2645
      %2647 = vrot.lane.b32.xlu0 %v2355, 4
      %v2648 = vpop.permute.xlu0 %2647
      %2649 = vrot.lane.b32.xlu0 %v2356, 4
      %v2650 = vpop.permute.xlu0 %2649
      %2651 = vrot.lane.b32.xlu0 %v2357, 4
      %v2652 = vpop.permute.xlu0 %2651
      %2653 = vrot.lane.b32.xlu0 %v2358, 4
      %v2654 = vpop.permute.xlu0 %2653
      %2655 = vrot.lane.b32.xlu0 %v2359, 4
      %v2656 = vpop.permute.xlu0 %2655
      %2657 = vrot.lane.b32.xlu0 %v2360, 4
      %v2658 = vpop.permute.xlu0 %2657
      %2659 = vrot.lane.b32.xlu0 %v2361, 4
      %v2660 = vpop.permute.xlu0 %2659
      %2661 = vrot.lane.b32.xlu0 %v2362, 4
      %v2662 = vpop.permute.xlu0 %2661
      %2663 = vrot.lane.b32.xlu0 %v2363, 4
      %v2664 = vpop.permute.xlu0 %2663
      %2665 = vrot.lane.b32.xlu0 %v2364, 4
      %v2666 = vpop.permute.xlu0 %2665
      %2667 = vrot.lane.b32.xlu0 %v2365, 4
      %v2668 = vpop.permute.xlu0 %2667
      %2669 = vrot.lane.b32.xlu0 %v2366, 4
      %v2670 = vpop.permute.xlu0 %2669
      %2671 = vrot.lane.b32.xlu0 %v2367, 4
      %v2672 = vpop.permute.xlu0 %2671
      %2673 = vrot.lane.b32.xlu0 %v2368, 4
      %v2674 = vpop.permute.xlu0 %2673
      %2675 = vrot.lane.b32.xlu0 %v2369, 4
      %v2676 = vpop.permute.xlu0 %2675
      %2677 = vrot.lane.b32.xlu0 %v2370, 4
      %v2678 = vpop.permute.xlu0 %2677
      %2679 = vrot.lane.b32.xlu0 %v2371, 4
      %v2680 = vpop.permute.xlu0 %2679
      %2681 = vrot.lane.b32.xlu0 %v2372, 4
      %v2682 = vpop.permute.xlu0 %2681
      %2683 = vrot.lane.b32.xlu0 %v2373, 4
      %v2684 = vpop.permute.xlu0 %2683
      %2685 = vrot.lane.b32.xlu0 %v2374, 4
      %v2686 = vpop.permute.xlu0 %2685
      %2687 = vrot.lane.b32.xlu0 %v2375, 4
      %v2688 = vpop.permute.xlu0 %2687
      %2689 = vrot.lane.b32.xlu0 %v2376, 4
      %v2690 = vpop.permute.xlu0 %2689
      %2691 = vrot.lane.b32.xlu0 %v2377, 4
      %v2692 = vpop.permute.xlu0 %2691
      %2693 = vrot.lane.b32.xlu0 %v2378, 4
      %v2694 = vpop.permute.xlu0 %2693
      %2695 = vrot.lane.b32.xlu0 %v2379, 4
      %v2696 = vpop.permute.xlu0 %2695
      %2697 = vrot.lane.b32.xlu0 %v2380, 4
      %v2698 = vpop.permute.xlu0 %2697
      %2699 = vrot.lane.b32.xlu0 %v2381, 4
      %v2700 = vpop.permute.xlu0 %2699
      %2701 = vrot.lane.b32.xlu0 %v2382, 4
      %v2702 = vpop.permute.xlu0 %2701
      %2767 = vrot.lane.b32.xlu0 %v2383, 8
      %v2768 = vpop.permute.xlu0 %2767
      %2769 = vrot.lane.b32.xlu0 %v2384, 8
      %v2770 = vpop.permute.xlu0 %2769
      %2771 = vrot.lane.b32.xlu0 %v2385, 8
      %v2772 = vpop.permute.xlu0 %2771
      %2773 = vrot.lane.b32.xlu0 %v2386, 8
      %v2774 = vpop.permute.xlu0 %2773
      %2775 = vrot.lane.b32.xlu0 %v2387, 8
      %v2776 = vpop.permute.xlu0 %2775
      %2777 = vrot.lane.b32.xlu0 %v2388, 8
      %v2778 = vpop.permute.xlu0 %2777
      %2779 = vrot.lane.b32.xlu0 %v2389, 8
      %v2780 = vpop.permute.xlu0 %2779
      %2781 = vrot.lane.b32.xlu0 %v2390, 8
      %v2782 = vpop.permute.xlu0 %2781
      %2783 = vrot.lane.b32.xlu0 %v2391, 8
      %v2784 = vpop.permute.xlu0 %2783
      %2785 = vrot.lane.b32.xlu0 %v2392, 8
      %v2786 = vpop.permute.xlu0 %2785
      %2787 = vrot.lane.b32.xlu0 %v2393, 8
      %v2788 = vpop.permute.xlu0 %2787
      %2789 = vrot.lane.b32.xlu0 %v2394, 8
      %v2790 = vpop.permute.xlu0 %2789
      %2791 = vrot.lane.b32.xlu0 %v2395, 8
      %v2792 = vpop.permute.xlu0 %2791
      %2793 = vrot.lane.b32.xlu0 %v2396, 8
      %v2794 = vpop.permute.xlu0 %2793
      %2795 = vrot.lane.b32.xlu0 %v2397, 8
      %v2796 = vpop.permute.xlu0 %2795
      %2797 = vrot.lane.b32.xlu0 %v2398, 8
      %v2798 = vpop.permute.xlu0 %2797
      %2799 = vrot.lane.b32.xlu0 %v2399, 8
      %v2800 = vpop.permute.xlu0 %2799
      %2801 = vrot.lane.b32.xlu0 %v2400, 8
      %v2802 = vpop.permute.xlu0 %2801
      %2803 = vrot.lane.b32.xlu0 %v2401, 8
      %v2804 = vpop.permute.xlu0 %2803
      %2805 = vrot.lane.b32.xlu0 %v2402, 8
      %v2806 = vpop.permute.xlu0 %2805
      %2807 = vrot.lane.b32.xlu0 %v2403, 8
      %v2808 = vpop.permute.xlu0 %2807
      %2809 = vrot.lane.b32.xlu0 %v2404, 8
      %v2810 = vpop.permute.xlu0 %2809
      %2811 = vrot.lane.b32.xlu0 %v2405, 8
      %v2812 = vpop.permute.xlu0 %2811
      %2813 = vrot.lane.b32.xlu0 %v2406, 8
      %v2814 = vpop.permute.xlu0 %2813
      %2815 = vrot.lane.b32.xlu0 %v2407, 8
      %v2816 = vpop.permute.xlu0 %2815
      %2817 = vrot.lane.b32.xlu0 %v2408, 8
      %v2818 = vpop.permute.xlu0 %2817
      %2819 = vrot.lane.b32.xlu0 %v2409, 8
      %v2820 = vpop.permute.xlu0 %2819
      %2821 = vrot.lane.b32.xlu0 %v2410, 8
      %v2822 = vpop.permute.xlu0 %2821
      %2823 = vrot.lane.b32.xlu0 %v2411, 8
      %v2824 = vpop.permute.xlu0 %2823
      %2825 = vrot.lane.b32.xlu0 %v2412, 8
      %v2826 = vpop.permute.xlu0 %2825
      %2827 = vrot.lane.b32.xlu0 %v2413, 8
      %v2828 = vpop.permute.xlu0 %2827
      %2829 = vrot.lane.b32.xlu0 %v2414, 8
      %v2830 = vpop.permute.xlu0 %2829
      %2895 = vrot.lane.b32.xlu0 %v2415, 12
      %v2896 = vpop.permute.xlu0 %2895
      %2897 = vrot.lane.b32.xlu0 %v2416, 12
      %v2898 = vpop.permute.xlu0 %2897
      %2899 = vrot.lane.b32.xlu0 %v2417, 12
      %v2900 = vpop.permute.xlu0 %2899
      %2901 = vrot.lane.b32.xlu0 %v2418, 12
      %v2902 = vpop.permute.xlu0 %2901
      %2903 = vrot.lane.b32.xlu0 %v2419, 12
      %v2904 = vpop.permute.xlu0 %2903
      %2905 = vrot.lane.b32.xlu0 %v2420, 12
      %v2906 = vpop.permute.xlu0 %2905
      %2907 = vrot.lane.b32.xlu0 %v2421, 12
      %v2908 = vpop.permute.xlu0 %2907
      %2909 = vrot.lane.b32.xlu0 %v2422, 12
      %v2910 = vpop.permute.xlu0 %2909
      %2911 = vrot.lane.b32.xlu0 %v2423, 12
      %v2912 = vpop.permute.xlu0 %2911
      %2913 = vrot.lane.b32.xlu0 %v2424, 12
      %v2914 = vpop.permute.xlu0 %2913
      %2915 = vrot.lane.b32.xlu0 %v2425, 12
      %v2916 = vpop.permute.xlu0 %2915
      %2917 = vrot.lane.b32.xlu0 %v2426, 12
      %v2918 = vpop.permute.xlu0 %2917
      %2919 = vrot.lane.b32.xlu0 %v2427, 12
      %v2920 = vpop.permute.xlu0 %2919
      %2921 = vrot.lane.b32.xlu0 %v2428, 12
      %v2922 = vpop.permute.xlu0 %2921
      %2923 = vrot.lane.b32.xlu0 %v2429, 12
      %v2924 = vpop.permute.xlu0 %2923
      %2925 = vrot.lane.b32.xlu0 %v2430, 12
      %v2926 = vpop.permute.xlu0 %2925
      %2927 = vrot.lane.b32.xlu0 %v2431, 12
      %v2928 = vpop.permute.xlu0 %2927
      %2929 = vrot.lane.b32.xlu0 %v2432, 12
      %v2930 = vpop.permute.xlu0 %2929
      %2931 = vrot.lane.b32.xlu0 %v2433, 12
      %v2932 = vpop.permute.xlu0 %2931
      %2933 = vrot.lane.b32.xlu0 %v2434, 12
      %v2934 = vpop.permute.xlu0 %2933
      %2935 = vrot.lane.b32.xlu0 %v2435, 12
      %v2936 = vpop.permute.xlu0 %2935
      %2937 = vrot.lane.b32.xlu0 %v2436, 12
      %v2938 = vpop.permute.xlu0 %2937
      %2939 = vrot.lane.b32.xlu0 %v2437, 12
      %v2940 = vpop.permute.xlu0 %2939
      %2941 = vrot.lane.b32.xlu0 %v2438, 12
      %v2942 = vpop.permute.xlu0 %2941
      %2943 = vrot.lane.b32.xlu0 %v2439, 12
      %v2944 = vpop.permute.xlu0 %2943
      %2945 = vrot.lane.b32.xlu0 %v2440, 12
      %v2946 = vpop.permute.xlu0 %2945
      %2947 = vrot.lane.b32.xlu0 %v2441, 12
      %v2948 = vpop.permute.xlu0 %2947
      %2949 = vrot.lane.b32.xlu0 %v2442, 12
      %v2950 = vpop.permute.xlu0 %2949
      %2951 = vrot.lane.b32.xlu0 %v2443, 12
      %v2952 = vpop.permute.xlu0 %2951
      %2953 = vrot.lane.b32.xlu0 %v2444, 12
      %v2954 = vpop.permute.xlu0 %2953
      %2955 = vrot.lane.b32.xlu0 %v2445, 12
      %v2956 = vpop.permute.xlu0 %2955
      %2957 = vrot.lane.b32.xlu0 %v2446, 12
      %v2958 = vpop.permute.xlu0 %2957
      %3023 = vrot.lane.b32.xlu0 %v2447, 16
      %v3024 = vpop.permute.xlu0 %3023
      %3025 = vrot.lane.b32.xlu0 %v2448, 16
      %v3026 = vpop.permute.xlu0 %3025
      %3027 = vrot.lane.b32.xlu0 %v2449, 16
      %v3028 = vpop.permute.xlu0 %3027
      %3029 = vrot.lane.b32.xlu0 %v2450, 16
      %v3030 = vpop.permute.xlu0 %3029
      %3031 = vrot.lane.b32.xlu0 %v2451, 16
      %v3032 = vpop.permute.xlu0 %3031
      %3033 = vrot.lane.b32.xlu0 %v2452, 16
      %v3034 = vpop.permute.xlu0 %3033
      %3035 = vrot.lane.b32.xlu0 %v2453, 16
      %v3036 = vpop.permute.xlu0 %3035
      %3037 = vrot.lane.b32.xlu0 %v2454, 16
      %v3038 = vpop.permute.xlu0 %3037
      %3039 = vrot.lane.b32.xlu0 %v2455, 16
      %v3040 = vpop.permute.xlu0 %3039
      %3041 = vrot.lane.b32.xlu0 %v2456, 16
      %v3042 = vpop.permute.xlu0 %3041
      %3043 = vrot.lane.b32.xlu0 %v2457, 16
      %v3044 = vpop.permute.xlu0 %3043
      %3045 = vrot.lane.b32.xlu0 %v2458, 16
      %v3046 = vpop.permute.xlu0 %3045
      %3047 = vrot.lane.b32.xlu0 %v2459, 16
      %v3048 = vpop.permute.xlu0 %3047
      %3049 = vrot.lane.b32.xlu0 %v2460, 16
      %v3050 = vpop.permute.xlu0 %3049
      %3051 = vrot.lane.b32.xlu0 %v2461, 16
      %v3052 = vpop.permute.xlu0 %3051
      %3053 = vrot.lane.b32.xlu0 %v2462, 16
      %v3054 = vpop.permute.xlu0 %3053
      %3055 = vrot.lane.b32.xlu0 %v2463, 16
      %v3056 = vpop.permute.xlu0 %3055
      %3057 = vrot.lane.b32.xlu0 %v2464, 16
      %v3058 = vpop.permute.xlu0 %3057
      %3059 = vrot.lane.b32.xlu0 %v2465, 16
      %v3060 = vpop.permute.xlu0 %3059
      %3061 = vrot.lane.b32.xlu0 %v2466, 16
      %v3062 = vpop.permute.xlu0 %3061
      %3063 = vrot.lane.b32.xlu0 %v2467, 16
      %v3064 = vpop.permute.xlu0 %3063
      %3065 = vrot.lane.b32.xlu0 %v2468, 16
      %v3066 = vpop.permute.xlu0 %3065
      %3067 = vrot.lane.b32.xlu0 %v2469, 16
      %v3068 = vpop.permute.xlu0 %3067
      %3069 = vrot.lane.b32.xlu0 %v2470, 16
      %v3070 = vpop.permute.xlu0 %3069
      %3071 = vrot.lane.b32.xlu0 %v2471, 16
      %v3072 = vpop.permute.xlu0 %3071
      %3073 = vrot.lane.b32.xlu0 %v2472, 16
      %v3074 = vpop.permute.xlu0 %3073
      %3075 = vrot.lane.b32.xlu0 %v2473, 16
      %v3076 = vpop.permute.xlu0 %3075
      %3077 = vrot.lane.b32.xlu0 %v2474, 16
      %v3078 = vpop.permute.xlu0 %3077
      %3079 = vrot.lane.b32.xlu0 %v2475, 16
      %v3080 = vpop.permute.xlu0 %3079
      %3081 = vrot.lane.b32.xlu0 %v2476, 16
      %v3082 = vpop.permute.xlu0 %3081
      %3083 = vrot.lane.b32.xlu0 %v2477, 16
      %v3084 = vpop.permute.xlu0 %3083
      %3085 = vrot.lane.b32.xlu0 %v2478, 16
      %v3086 = vpop.permute.xlu0 %3085
      %3151 = vrot.lane.b32.xlu0 %v2479, 20
      %v3152 = vpop.permute.xlu0 %3151
      %3153 = vrot.lane.b32.xlu0 %v2480, 20
      %v3154 = vpop.permute.xlu0 %3153
      %3155 = vrot.lane.b32.xlu0 %v2481, 20
      %v3156 = vpop.permute.xlu0 %3155
      %3157 = vrot.lane.b32.xlu0 %v2482, 20
      %v3158 = vpop.permute.xlu0 %3157
      %3159 = vrot.lane.b32.xlu0 %v2483, 20
      %v3160 = vpop.permute.xlu0 %3159
      %3161 = vrot.lane.b32.xlu0 %v2484, 20
      %v3162 = vpop.permute.xlu0 %3161
      %3163 = vrot.lane.b32.xlu0 %v2485, 20
      %v3164 = vpop.permute.xlu0 %3163
      %3165 = vrot.lane.b32.xlu0 %v2486, 20
      %v3166 = vpop.permute.xlu0 %3165
      %3167 = vrot.lane.b32.xlu0 %v2487, 20
      %v3168 = vpop.permute.xlu0 %3167
      %3169 = vrot.lane.b32.xlu0 %v2488, 20
      %v3170 = vpop.permute.xlu0 %3169
      %3171 = vrot.lane.b32.xlu0 %v2489, 20
      %v3172 = vpop.permute.xlu0 %3171
      %3173 = vrot.lane.b32.xlu0 %v2490, 20
      %v3174 = vpop.permute.xlu0 %3173
      %3175 = vrot.lane.b32.xlu0 %v2491, 20
      %v3176 = vpop.permute.xlu0 %3175
      %3177 = vrot.lane.b32.xlu0 %v2492, 20
      %v3178 = vpop.permute.xlu0 %3177
      %3179 = vrot.lane.b32.xlu0 %v2493, 20
      %v3180 = vpop.permute.xlu0 %3179
      %3181 = vrot.lane.b32.xlu0 %v2494, 20
      %v3182 = vpop.permute.xlu0 %3181
      %3183 = vrot.lane.b32.xlu0 %v2495, 20
      %v3184 = vpop.permute.xlu0 %3183
      %3185 = vrot.lane.b32.xlu0 %v2496, 20
      %v3186 = vpop.permute.xlu0 %3185
      %3187 = vrot.lane.b32.xlu0 %v2497, 20
      %v3188 = vpop.permute.xlu0 %3187
      %3189 = vrot.lane.b32.xlu0 %v2498, 20
      %v3190 = vpop.permute.xlu0 %3189
      %3191 = vrot.lane.b32.xlu0 %v2499, 20
      %v3192 = vpop.permute.xlu0 %3191
      %3193 = vrot.lane.b32.xlu0 %v2500, 20
      %v3194 = vpop.permute.xlu0 %3193
      %3195 = vrot.lane.b32.xlu0 %v2501, 20
      %v3196 = vpop.permute.xlu0 %3195
      %3197 = vrot.lane.b32.xlu0 %v2502, 20
      %v3198 = vpop.permute.xlu0 %3197
      %3199 = vrot.lane.b32.xlu0 %v2503, 20
      %v3200 = vpop.permute.xlu0 %3199
      %3201 = vrot.lane.b32.xlu0 %v2504, 20
      %v3202 = vpop.permute.xlu0 %3201
      %3203 = vrot.lane.b32.xlu0 %v2505, 20
      %v3204 = vpop.permute.xlu0 %3203
      %3205 = vrot.lane.b32.xlu0 %v2506, 20
      %v3206 = vpop.permute.xlu0 %3205
      %3207 = vrot.lane.b32.xlu0 %v2507, 20
      %v3208 = vpop.permute.xlu0 %3207
      %3209 = vrot.lane.b32.xlu0 %v2508, 20
      %v3210 = vpop.permute.xlu0 %3209
      %3211 = vrot.lane.b32.xlu0 %v2509, 20
      %v3212 = vpop.permute.xlu0 %3211
      %3213 = vrot.lane.b32.xlu0 %v2510, 20
      %v3214 = vpop.permute.xlu0 %3213
      %3279 = vrot.lane.b32.xlu0 %v2511, 24
      %v3280 = vpop.permute.xlu0 %3279
      %3281 = vrot.lane.b32.xlu0 %v2512, 24
      %v3282 = vpop.permute.xlu0 %3281
      %3283 = vrot.lane.b32.xlu0 %v2513, 24
      %v3284 = vpop.permute.xlu0 %3283
      %3285 = vrot.lane.b32.xlu0 %v2514, 24
      %v3286 = vpop.permute.xlu0 %3285
      %3287 = vrot.lane.b32.xlu0 %v2515, 24
      %v3288 = vpop.permute.xlu0 %3287
      %3289 = vrot.lane.b32.xlu0 %v2516, 24
      %v3290 = vpop.permute.xlu0 %3289
      %3291 = vrot.lane.b32.xlu0 %v2517, 24
      %v3292 = vpop.permute.xlu0 %3291
      %3293 = vrot.lane.b32.xlu0 %v2518, 24
      %v3294 = vpop.permute.xlu0 %3293
      %3295 = vrot.lane.b32.xlu0 %v2519, 24
      %v3296 = vpop.permute.xlu0 %3295
      %3297 = vrot.lane.b32.xlu0 %v2520, 24
      %v3298 = vpop.permute.xlu0 %3297
      %3299 = vrot.lane.b32.xlu0 %v2521, 24
      %v3300 = vpop.permute.xlu0 %3299
      %3301 = vrot.lane.b32.xlu0 %v2522, 24
      %v3302 = vpop.permute.xlu0 %3301
      %3303 = vrot.lane.b32.xlu0 %v2523, 24
      %v3304 = vpop.permute.xlu0 %3303
      %3305 = vrot.lane.b32.xlu0 %v2524, 24
      %v3306 = vpop.permute.xlu0 %3305
      %3307 = vrot.lane.b32.xlu0 %v2525, 24
      %v3308 = vpop.permute.xlu0 %3307
      %3309 = vrot.lane.b32.xlu0 %v2526, 24
      %v3310 = vpop.permute.xlu0 %3309
      %3311 = vrot.lane.b32.xlu0 %v2527, 24
      %v3312 = vpop.permute.xlu0 %3311
      %3313 = vrot.lane.b32.xlu0 %v2528, 24
      %v3314 = vpop.permute.xlu0 %3313
      %3315 = vrot.lane.b32.xlu0 %v2529, 24
      %v3316 = vpop.permute.xlu0 %3315
      %3317 = vrot.lane.b32.xlu0 %v2530, 24
      %v3318 = vpop.permute.xlu0 %3317
      %3319 = vrot.lane.b32.xlu0 %v2531, 24
      %v3320 = vpop.permute.xlu0 %3319
      %3321 = vrot.lane.b32.xlu0 %v2532, 24
      %v3322 = vpop.permute.xlu0 %3321
      %3323 = vrot.lane.b32.xlu0 %v2533, 24
      %v3324 = vpop.permute.xlu0 %3323
      %3325 = vrot.lane.b32.xlu0 %v2534, 24
      %v3326 = vpop.permute.xlu0 %3325
      %3327 = vrot.lane.b32.xlu0 %v2535, 24
      %v3328 = vpop.permute.xlu0 %3327
      %3329 = vrot.lane.b32.xlu0 %v2536, 24
      %v3330 = vpop.permute.xlu0 %3329
      %3331 = vrot.lane.b32.xlu0 %v2537, 24
      %v3332 = vpop.permute.xlu0 %3331
      %3333 = vrot.lane.b32.xlu0 %v2538, 24
      %v3334 = vpop.permute.xlu0 %3333
      %3335 = vrot.lane.b32.xlu0 %v2539, 24
      %v3336 = vpop.permute.xlu0 %3335
      %3337 = vrot.lane.b32.xlu0 %v2540, 24
      %v3338 = vpop.permute.xlu0 %3337
      %3339 = vrot.lane.b32.xlu0 %v2541, 24
      %v3340 = vpop.permute.xlu0 %3339
      %3341 = vrot.lane.b32.xlu0 %v2542, 24
      %v3342 = vpop.permute.xlu0 %3341
      %3407 = vrot.lane.b32.xlu0 %v2543, 28
      %v3408 = vpop.permute.xlu0 %3407
      %3409 = vrot.lane.b32.xlu0 %v2544, 28
      %v3410 = vpop.permute.xlu0 %3409
      %3411 = vrot.lane.b32.xlu0 %v2545, 28
      %v3412 = vpop.permute.xlu0 %3411
      %3413 = vrot.lane.b32.xlu0 %v2546, 28
      %v3414 = vpop.permute.xlu0 %3413
      %3415 = vrot.lane.b32.xlu0 %v2547, 28
      %v3416 = vpop.permute.xlu0 %3415
      %3417 = vrot.lane.b32.xlu0 %v2548, 28
      %v3418 = vpop.permute.xlu0 %3417
      %3419 = vrot.lane.b32.xlu0 %v2549, 28
      %v3420 = vpop.permute.xlu0 %3419
      %3421 = vrot.lane.b32.xlu0 %v2550, 28
      %v3422 = vpop.permute.xlu0 %3421
      %3423 = vrot.lane.b32.xlu0 %v2551, 28
      %v3424 = vpop.permute.xlu0 %3423
      %3425 = vrot.lane.b32.xlu0 %v2552, 28
      %v3426 = vpop.permute.xlu0 %3425
      %3427 = vrot.lane.b32.xlu0 %v2553, 28
      %v3428 = vpop.permute.xlu0 %3427
      %3429 = vrot.lane.b32.xlu0 %v2554, 28
      %v3430 = vpop.permute.xlu0 %3429
      %3431 = vrot.lane.b32.xlu0 %v2555, 28
      %v3432 = vpop.permute.xlu0 %3431
      %3433 = vrot.lane.b32.xlu0 %v2556, 28
      %v3434 = vpop.permute.xlu0 %3433
      %3435 = vrot.lane.b32.xlu0 %v2557, 28
      %v3436 = vpop.permute.xlu0 %3435
      %3437 = vrot.lane.b32.xlu0 %v2558, 28
      %v3438 = vpop.permute.xlu0 %3437
      %3439 = vrot.lane.b32.xlu0 %v2559, 28
      %v3440 = vpop.permute.xlu0 %3439
      %3441 = vrot.lane.b32.xlu0 %v2560, 28
      %v3442 = vpop.permute.xlu0 %3441
      %3443 = vrot.lane.b32.xlu0 %v2561, 28
      %v3444 = vpop.permute.xlu0 %3443
      %3445 = vrot.lane.b32.xlu0 %v2562, 28
      %v3446 = vpop.permute.xlu0 %3445
      %3447 = vrot.lane.b32.xlu0 %v2563, 28
      %v3448 = vpop.permute.xlu0 %3447
      %3449 = vrot.lane.b32.xlu0 %v2564, 28
      %v3450 = vpop.permute.xlu0 %3449
      %3451 = vrot.lane.b32.xlu0 %v2565, 28
      %v3452 = vpop.permute.xlu0 %3451
      %3453 = vrot.lane.b32.xlu0 %v2566, 28
      %v3454 = vpop.permute.xlu0 %3453
      %3455 = vrot.lane.b32.xlu0 %v2567, 28
      %v3456 = vpop.permute.xlu0 %3455
      %3457 = vrot.lane.b32.xlu0 %v2568, 28
      %v3458 = vpop.permute.xlu0 %3457
      %3459 = vrot.lane.b32.xlu0 %v2569, 28
      %v3460 = vpop.permute.xlu0 %3459
      %3461 = vrot.lane.b32.xlu0 %v2570, 28
      %v3462 = vpop.permute.xlu0 %3461
      %3463 = vrot.lane.b32.xlu0 %v2571, 28
      %v3464 = vpop.permute.xlu0 %3463
      %3465 = vrot.lane.b32.xlu0 %v2572, 28
      %v3466 = vpop.permute.xlu0 %3465
      %3467 = vrot.lane.b32.xlu0 %v2573, 28
      %v3468 = vpop.permute.xlu0 %3467
      %3469 = vrot.lane.b32.xlu0 %v2574, 28
      %v3470 = vpop.permute.xlu0 %3469
      %3535 = vrot.lane.b32.xlu0 %v2575, 32
      %v3536 = vpop.permute.xlu0 %3535
      %3537 = vrot.lane.b32.xlu0 %v2576, 32
      %v3538 = vpop.permute.xlu0 %3537
      %3539 = vrot.lane.b32.xlu0 %v2577, 32
      %v3540 = vpop.permute.xlu0 %3539
      %3541 = vrot.lane.b32.xlu0 %v2578, 32
      %v3542 = vpop.permute.xlu0 %3541
      %3543 = vrot.lane.b32.xlu0 %v2579, 32
      %v3544 = vpop.permute.xlu0 %3543
      %3545 = vrot.lane.b32.xlu0 %v2580, 32
      %v3546 = vpop.permute.xlu0 %3545
      %3547 = vrot.lane.b32.xlu0 %v2581, 32
      %v3548 = vpop.permute.xlu0 %3547
      %3549 = vrot.lane.b32.xlu0 %v2582, 32
      %v3550 = vpop.permute.xlu0 %3549
      %3551 = vrot.lane.b32.xlu0 %v2583, 32
      %v3552 = vpop.permute.xlu0 %3551
      %3553 = vrot.lane.b32.xlu0 %v2584, 32
      %v3554 = vpop.permute.xlu0 %3553
      %3555 = vrot.lane.b32.xlu0 %v2585, 32
      %v3556 = vpop.permute.xlu0 %3555
      %3557 = vrot.lane.b32.xlu0 %v2586, 32
      %v3558 = vpop.permute.xlu0 %3557
      %3559 = vrot.lane.b32.xlu0 %v2587, 32
      %v3560 = vpop.permute.xlu0 %3559
      %3561 = vrot.lane.b32.xlu0 %v2588, 32
      %v3562 = vpop.permute.xlu0 %3561
      %3563 = vrot.lane.b32.xlu0 %v2589, 32
      %v3564 = vpop.permute.xlu0 %3563
      %3565 = vrot.lane.b32.xlu0 %v2590, 32
      %v3566 = vpop.permute.xlu0 %3565
      %3567 = vrot.lane.b32.xlu0 %v2591, 32
      %v3568 = vpop.permute.xlu0 %3567
      %3569 = vrot.lane.b32.xlu0 %v2592, 32
      %v3570 = vpop.permute.xlu0 %3569
      %3571 = vrot.lane.b32.xlu0 %v2593, 32
      %v3572 = vpop.permute.xlu0 %3571
      %3573 = vrot.lane.b32.xlu0 %v2594, 32
      %v3574 = vpop.permute.xlu0 %3573
      %3575 = vrot.lane.b32.xlu0 %v2595, 32
      %v3576 = vpop.permute.xlu0 %3575
      %3577 = vrot.lane.b32.xlu0 %v2596, 32
      %v3578 = vpop.permute.xlu0 %3577
      %3579 = vrot.lane.b32.xlu0 %v2597, 32
      %v3580 = vpop.permute.xlu0 %3579
      %3581 = vrot.lane.b32.xlu0 %v2598, 32
      %v3582 = vpop.permute.xlu0 %3581
      %3583 = vrot.lane.b32.xlu0 %v2599, 32
      %v3584 = vpop.permute.xlu0 %3583
      %3585 = vrot.lane.b32.xlu0 %v2600, 32
      %v3586 = vpop.permute.xlu0 %3585
      %3587 = vrot.lane.b32.xlu0 %v2601, 32
      %v3588 = vpop.permute.xlu0 %3587
      %3589 = vrot.lane.b32.xlu0 %v2602, 32
      %v3590 = vpop.permute.xlu0 %3589
      %3591 = vrot.lane.b32.xlu0 %v2603, 32
      %v3592 = vpop.permute.xlu0 %3591
      %3593 = vrot.lane.b32.xlu0 %v2604, 32
      %v3594 = vpop.permute.xlu0 %3593
      %3595 = vrot.lane.b32.xlu0 %v2605, 32
      %v3596 = vpop.permute.xlu0 %3595
      %3597 = vrot.lane.b32.xlu0 %v2606, 32
      %v3598 = vpop.permute.xlu0 %3597
      %v3631 = vsel %vm225, %v2319, %v2640
      %v3632 = vsel %vm225, %v2320, %v2642
      %v3633 = vsel %vm225, %v2321, %v2644
      %v3634 = vsel %vm225, %v2322, %v2646
      %v3635 = vsel %vm225, %v2323, %v2648
      %v3636 = vsel %vm225, %v2324, %v2650
      %v3637 = vsel %vm225, %v2325, %v2652
      %v3638 = vsel %vm225, %v2326, %v2654
      %v3639 = vsel %vm225, %v2327, %v2656
      %v3640 = vsel %vm225, %v2328, %v2658
      %v3641 = vsel %vm225, %v2329, %v2660
      %v3642 = vsel %vm225, %v2330, %v2662
      %v3643 = vsel %vm225, %v2331, %v2664
      %v3644 = vsel %vm225, %v2332, %v2666
      %v3645 = vsel %vm225, %v2333, %v2668
      %v3646 = vsel %vm225, %v2334, %v2670
      %v3647 = vsel %vm225, %v2335, %v2672
      %v3648 = vsel %vm225, %v2336, %v2674
      %v3649 = vsel %vm225, %v2337, %v2676
      %v3650 = vsel %vm225, %v2338, %v2678
      %v3651 = vsel %vm225, %v2339, %v2680
      %v3652 = vsel %vm225, %v2340, %v2682
      %v3653 = vsel %vm225, %v2341, %v2684
      %v3654 = vsel %vm225, %v2342, %v2686
      %v3655 = vsel %vm225, %v2343, %v2688
      %v3656 = vsel %vm225, %v2344, %v2690
      %v3657 = vsel %vm225, %v2345, %v2692
      %v3658 = vsel %vm225, %v2346, %v2694
      %v3659 = vsel %vm225, %v2347, %v2696
      %v3660 = vsel %vm225, %v2348, %v2698
      %v3661 = vsel %vm225, %v2349, %v2700
      %v3662 = vsel %vm225, %v2350, %v2702
      %v3663 = vsel %vm1686, %v3631, %v2768
      %v3664 = vsel %vm1686, %v3632, %v2770
      %v3665 = vsel %vm1686, %v3633, %v2772
      %v3666 = vsel %vm1686, %v3634, %v2774
      %v3667 = vsel %vm1686, %v3635, %v2776
      %v3668 = vsel %vm1686, %v3636, %v2778
      %v3669 = vsel %vm1686, %v3637, %v2780
      %v3670 = vsel %vm1686, %v3638, %v2782
      %v3671 = vsel %vm1686, %v3639, %v2784
      %v3672 = vsel %vm1686, %v3640, %v2786
      %v3673 = vsel %vm1686, %v3641, %v2788
      %v3674 = vsel %vm1686, %v3642, %v2790
      %v3675 = vsel %vm1686, %v3643, %v2792
      %v3676 = vsel %vm1686, %v3644, %v2794
      %v3677 = vsel %vm1686, %v3645, %v2796
      %v3678 = vsel %vm1686, %v3646, %v2798
      %v3679 = vsel %vm1686, %v3647, %v2800
      %v3680 = vsel %vm1686, %v3648, %v2802
      %v3681 = vsel %vm1686, %v3649, %v2804
      %v3682 = vsel %vm1686, %v3650, %v2806
      %v3683 = vsel %vm1686, %v3651, %v2808
      %v3684 = vsel %vm1686, %v3652, %v2810
      %v3685 = vsel %vm1686, %v3653, %v2812
      %v3686 = vsel %vm1686, %v3654, %v2814
      %v3687 = vsel %vm1686, %v3655, %v2816
      %v3688 = vsel %vm1686, %v3656, %v2818
      %v3689 = vsel %vm1686, %v3657, %v2820
      %v3690 = vsel %vm1686, %v3658, %v2822
      %v3691 = vsel %vm1686, %v3659, %v2824
      %v3692 = vsel %vm1686, %v3660, %v2826
      %v3693 = vsel %vm1686, %v3661, %v2828
      %v3694 = vsel %vm1686, %v3662, %v2830
      %v3695 = vsel %vm1719, %v3663, %v2896
      %v3696 = vsel %vm1719, %v3664, %v2898
      %v3697 = vsel %vm1719, %v3665, %v2900
      %v3698 = vsel %vm1719, %v3666, %v2902
      %v3699 = vsel %vm1719, %v3667, %v2904
      %v3700 = vsel %vm1719, %v3668, %v2906
      %v3701 = vsel %vm1719, %v3669, %v2908
      %v3702 = vsel %vm1719, %v3670, %v2910
      %v3703 = vsel %vm1719, %v3671, %v2912
      %v3704 = vsel %vm1719, %v3672, %v2914
      %v3705 = vsel %vm1719, %v3673, %v2916
      %v3706 = vsel %vm1719, %v3674, %v2918
      %v3707 = vsel %vm1719, %v3675, %v2920
      %v3708 = vsel %vm1719, %v3676, %v2922
      %v3709 = vsel %vm1719, %v3677, %v2924
      %v3710 = vsel %vm1719, %v3678, %v2926
      %v3711 = vsel %vm1719, %v3679, %v2928
      %v3712 = vsel %vm1719, %v3680, %v2930
      %v3713 = vsel %vm1719, %v3681, %v2932
      %v3714 = vsel %vm1719, %v3682, %v2934
      %v3715 = vsel %vm1719, %v3683, %v2936
      %v3716 = vsel %vm1719, %v3684, %v2938
      %v3717 = vsel %vm1719, %v3685, %v2940
      %v3718 = vsel %vm1719, %v3686, %v2942
      %v3719 = vsel %vm1719, %v3687, %v2944
      %v3720 = vsel %vm1719, %v3688, %v2946
      %v3721 = vsel %vm1719, %v3689, %v2948
      %v3722 = vsel %vm1719, %v3690, %v2950
      %v3723 = vsel %vm1719, %v3691, %v2952
      %v3724 = vsel %vm1719, %v3692, %v2954
      %v3725 = vsel %vm1719, %v3693, %v2956
      %v3726 = vsel %vm1719, %v3694, %v2958
      %v3727 = vsel %vm1752, %v3695, %v3024
      %v3728 = vsel %vm1752, %v3696, %v3026
      %v3729 = vsel %vm1752, %v3697, %v3028
      %v3730 = vsel %vm1752, %v3698, %v3030
      %v3731 = vsel %vm1752, %v3699, %v3032
      %v3732 = vsel %vm1752, %v3700, %v3034
      %v3733 = vsel %vm1752, %v3701, %v3036
      %v3734 = vsel %vm1752, %v3702, %v3038
      %v3735 = vsel %vm1752, %v3703, %v3040
      %v3736 = vsel %vm1752, %v3704, %v3042
      %v3737 = vsel %vm1752, %v3705, %v3044
      %v3738 = vsel %vm1752, %v3706, %v3046
      %v3739 = vsel %vm1752, %v3707, %v3048
      %v3740 = vsel %vm1752, %v3708, %v3050
      %v3741 = vsel %vm1752, %v3709, %v3052
      %v3742 = vsel %vm1752, %v3710, %v3054
      %v3743 = vsel %vm1752, %v3711, %v3056
      %v3744 = vsel %vm1752, %v3712, %v3058
      %v3745 = vsel %vm1752, %v3713, %v3060
      %v3746 = vsel %vm1752, %v3714, %v3062
      %v3747 = vsel %vm1752, %v3715, %v3064
      %v3748 = vsel %vm1752, %v3716, %v3066
      %v3749 = vsel %vm1752, %v3717, %v3068
      %v3750 = vsel %vm1752, %v3718, %v3070
      %v3751 = vsel %vm1752, %v3719, %v3072
      %v3752 = vsel %vm1752, %v3720, %v3074
      %v3753 = vsel %vm1752, %v3721, %v3076
      %v3754 = vsel %vm1752, %v3722, %v3078
      %v3755 = vsel %vm1752, %v3723, %v3080
      %v3756 = vsel %vm1752, %v3724, %v3082
      %v3757 = vsel %vm1752, %v3725, %v3084
      %v3758 = vsel %vm1752, %v3726, %v3086
      %v3759 = vsel %vm1785, %v3727, %v3152
      %v3760 = vsel %vm1785, %v3728, %v3154
      %v3761 = vsel %vm1785, %v3729, %v3156
      %v3762 = vsel %vm1785, %v3730, %v3158
      %v3763 = vsel %vm1785, %v3731, %v3160
      %v3764 = vsel %vm1785, %v3732, %v3162
      %v3765 = vsel %vm1785, %v3733, %v3164
      %v3766 = vsel %vm1785, %v3734, %v3166
      %v3767 = vsel %vm1785, %v3735, %v3168
      %v3768 = vsel %vm1785, %v3736, %v3170
      %v3769 = vsel %vm1785, %v3737, %v3172
      %v3770 = vsel %vm1785, %v3738, %v3174
      %v3771 = vsel %vm1785, %v3739, %v3176
      %v3772 = vsel %vm1785, %v3740, %v3178
      %v3773 = vsel %vm1785, %v3741, %v3180
      %v3774 = vsel %vm1785, %v3742, %v3182
      %v3775 = vsel %vm1785, %v3743, %v3184
      %v3776 = vsel %vm1785, %v3744, %v3186
      %v3777 = vsel %vm1785, %v3745, %v3188
      %v3778 = vsel %vm1785, %v3746, %v3190
      %v3779 = vsel %vm1785, %v3747, %v3192
      %v3780 = vsel %vm1785, %v3748, %v3194
      %v3781 = vsel %vm1785, %v3749, %v3196
      %v3782 = vsel %vm1785, %v3750, %v3198
      %v3783 = vsel %vm1785, %v3751, %v3200
      %v3784 = vsel %vm1785, %v3752, %v3202
      %v3785 = vsel %vm1785, %v3753, %v3204
      %v3786 = vsel %vm1785, %v3754, %v3206
      %v3787 = vsel %vm1785, %v3755, %v3208
      %v3788 = vsel %vm1785, %v3756, %v3210
      %v3789 = vsel %vm1785, %v3757, %v3212
      %v3790 = vsel %vm1785, %v3758, %v3214
      %v3791 = vsel %vm1818, %v3759, %v3280
      %v3792 = vsel %vm1818, %v3760, %v3282
      %v3793 = vsel %vm1818, %v3761, %v3284
      %v3794 = vsel %vm1818, %v3762, %v3286
      %v3795 = vsel %vm1818, %v3763, %v3288
      %v3796 = vsel %vm1818, %v3764, %v3290
      %v3797 = vsel %vm1818, %v3765, %v3292
      %v3798 = vsel %vm1818, %v3766, %v3294
      %v3799 = vsel %vm1818, %v3767, %v3296
      %v3800 = vsel %vm1818, %v3768, %v3298
      %v3801 = vsel %vm1818, %v3769, %v3300
      %v3802 = vsel %vm1818, %v3770, %v3302
      %v3803 = vsel %vm1818, %v3771, %v3304
      %v3804 = vsel %vm1818, %v3772, %v3306
      %v3805 = vsel %vm1818, %v3773, %v3308
      %v3806 = vsel %vm1818, %v3774, %v3310
      %v3807 = vsel %vm1818, %v3775, %v3312
      %v3808 = vsel %vm1818, %v3776, %v3314
      %v3809 = vsel %vm1818, %v3777, %v3316
      %v3810 = vsel %vm1818, %v3778, %v3318
      %v3811 = vsel %vm1818, %v3779, %v3320
      %v3812 = vsel %vm1818, %v3780, %v3322
      %v3813 = vsel %vm1818, %v3781, %v3324
      %v3814 = vsel %vm1818, %v3782, %v3326
      %v3815 = vsel %vm1818, %v3783, %v3328
      %v3816 = vsel %vm1818, %v3784, %v3330
      %v3817 = vsel %vm1818, %v3785, %v3332
      %v3818 = vsel %vm1818, %v3786, %v3334
      %v3819 = vsel %vm1818, %v3787, %v3336
      %v3820 = vsel %vm1818, %v3788, %v3338
      %v3821 = vsel %vm1818, %v3789, %v3340
      %v3822 = vsel %vm1818, %v3790, %v3342
      %v3823 = vsel %vm1851, %v3791, %v3408
      %v3824 = vsel %vm1851, %v3792, %v3410
      %v3825 = vsel %vm1851, %v3793, %v3412
      %v3826 = vsel %vm1851, %v3794, %v3414
      %v3827 = vsel %vm1851, %v3795, %v3416
      %v3828 = vsel %vm1851, %v3796, %v3418
      %v3829 = vsel %vm1851, %v3797, %v3420
      %v3830 = vsel %vm1851, %v3798, %v3422
      %v3831 = vsel %vm1851, %v3799, %v3424
      %v3832 = vsel %vm1851, %v3800, %v3426
      %v3833 = vsel %vm1851, %v3801, %v3428
      %v3834 = vsel %vm1851, %v3802, %v3430
      %v3835 = vsel %vm1851, %v3803, %v3432
      %v3836 = vsel %vm1851, %v3804, %v3434
      %v3837 = vsel %vm1851, %v3805, %v3436
      %v3838 = vsel %vm1851, %v3806, %v3438
      %v3839 = vsel %vm1851, %v3807, %v3440
      %v3840 = vsel %vm1851, %v3808, %v3442
      %v3841 = vsel %vm1851, %v3809, %v3444
      %v3842 = vsel %vm1851, %v3810, %v3446
      %v3843 = vsel %vm1851, %v3811, %v3448
      %v3844 = vsel %vm1851, %v3812, %v3450
      %v3845 = vsel %vm1851, %v3813, %v3452
      %v3846 = vsel %vm1851, %v3814, %v3454
      %v3847 = vsel %vm1851, %v3815, %v3456
      %v3848 = vsel %vm1851, %v3816, %v3458
      %v3849 = vsel %vm1851, %v3817, %v3460
      %v3850 = vsel %vm1851, %v3818, %v3462
      %v3851 = vsel %vm1851, %v3819, %v3464
      %v3852 = vsel %vm1851, %v3820, %v3466
      %v3853 = vsel %vm1851, %v3821, %v3468
      %v3854 = vsel %vm1851, %v3822, %v3470
      %v3855 = vsel %vm1884, %v3823, %v3536
      %v3856 = vsel %vm1884, %v3824, %v3538
      %v3857 = vsel %vm1884, %v3825, %v3540
      %v3858 = vsel %vm1884, %v3826, %v3542
      %v3859 = vsel %vm1884, %v3827, %v3544
      %v3860 = vsel %vm1884, %v3828, %v3546
      %v3861 = vsel %vm1884, %v3829, %v3548
      %v3862 = vsel %vm1884, %v3830, %v3550
      %v3863 = vsel %vm1884, %v3831, %v3552
      %v3864 = vsel %vm1884, %v3832, %v3554
      %v3865 = vsel %vm1884, %v3833, %v3556
      %v3866 = vsel %vm1884, %v3834, %v3558
      %v3867 = vsel %vm1884, %v3835, %v3560
      %v3868 = vsel %vm1884, %v3836, %v3562
      %v3869 = vsel %vm1884, %v3837, %v3564
      %v3870 = vsel %vm1884, %v3838, %v3566
      %v3871 = vsel %vm1884, %v3839, %v3568
      %v3872 = vsel %vm1884, %v3840, %v3570
      %v3873 = vsel %vm1884, %v3841, %v3572
      %v3874 = vsel %vm1884, %v3842, %v3574
      %v3875 = vsel %vm1884, %v3843, %v3576
      %v3876 = vsel %vm1884, %v3844, %v3578
      %v3877 = vsel %vm1884, %v3845, %v3580
      %v3878 = vsel %vm1884, %v3846, %v3582
      %v3879 = vsel %vm1884, %v3847, %v3584
      %v3880 = vsel %vm1884, %v3848, %v3586
      %v3881 = vsel %vm1884, %v3849, %v3588
      %v3882 = vsel %vm1884, %v3850, %v3590
      %v3883 = vsel %vm1884, %v3851, %v3592
      %v3884 = vsel %vm1884, %v3852, %v3594
      %v3885 = vsel %vm1884, %v3853, %v3596
      %v3886 = vsel %vm1884, %v3854, %v3598
      %v3887 = vld [vmem:[%s4] sm:$0x1]
      %v3889 = vlaneseq
      %v3890 = vshrl.u32 %v3889, 7
      %v3891 = vsub.s32 0, %v3890
      %v3892 = vrot.slane %v3887, %v3891
      %v3895 = vsel %vm1924, %v3855, 0
      %v3898 = vsel %vm1924, %v3856, 0
      %v3901 = vsel %vm1924, %v3857, 0
      %v3904 = vsel %vm1924, %v3858, 0
      %v3907 = vsel %vm1924, %v3859, 0
      %v3910 = vsel %vm1924, %v3860, 0
      %v3913 = vsel %vm1924, %v3861, 0
      %v3916 = vsel %vm1924, %v3862, 0
      %v3919 = vsel %vm1924, %v3863, 0
      %v3922 = vsel %vm1924, %v3864, 0
      %v3925 = vsel %vm1924, %v3865, 0
      %v3928 = vsel %vm1924, %v3866, 0
      %v3931 = vsel %vm1924, %v3867, 0
      %v3934 = vsel %vm1924, %v3868, 0
      %v3937 = vsel %vm1924, %v3869, 0
      %v3940 = vsel %vm1924, %v3870, 0
      %v3943 = vsel %vm1924, %v3871, 0
      %v3946 = vsel %vm1924, %v3872, 0
      %v3949 = vsel %vm1924, %v3873, 0
      %v3952 = vsel %vm1924, %v3874, 0
      %v3955 = vsel %vm1924, %v3875, 0
      %v3958 = vsel %vm1924, %v3876, 0
      %v3961 = vsel %vm1924, %v3877, 0
      %v3964 = vsel %vm1924, %v3878, 0
      %v3967 = vsel %vm1924, %v3879, 0
      %v3970 = vsel %vm1924, %v3880, 0
      %v3973 = vsel %vm1924, %v3881, 0
      %v3976 = vsel %vm1924, %v3882, 0
      %v3979 = vsel %vm1924, %v3883, 0
      %v3982 = vsel %vm1924, %v3884, 0
      %v3985 = vsel %vm1924, %v3885, 0
      %v3988 = vsel %vm1924, %v3886, 0
      %v3991 = vsel %vm2021, %v2318, 0
      %3993 = vmatprep.subr.mxu0 0.0
      %3994 = vmatpush1.msra.mxu0 %v2314
      %3995 = vmatprep.subr.mxu0 0.0
      %3996 = vmatpush1.msra.mxu0 %v2315
      %3997 = vmatprep.subr.mxu0 0.0
      %3998 = vmatpush1.msra.mxu0 %v2316
      %3999 = vmatprep.subr.mxu0 0.0
      %4000 = vmatpush1.msra.mxu0 %v2317
      %4001 = vmatprep.subr.mxu0 0.0
      %4002 = vmatpush1.msra.mxu0 %v3991
      %4003 = vmatprep.subr.mxu0 0.0
      %4004 = vmatpush1.msra.mxu0 0.0
      %4005 = vmatprep.subr.mxu0 0.0
      %4006 = vmatpush1.msra.mxu0 0.0
      %4007 = vmatprep.subr.mxu0 0.0
      %4008 = vmatpush1.msra.mxu0 0.0
      %4009 = vmatprep.subr.mxu0 0.0
      %4010 = vmatpush1.msra.mxu0 0.0
      %4011 = vmatprep.subr.mxu0 0.0
      %4012 = vmatpush1.msra.mxu0 0.0
      %4013 = vmatprep.subr.mxu0 0.0
      %4014 = vmatpush1.msra.mxu0 0.0
      %4015 = vmatprep.subr.mxu0 0.0
      %4016 = vmatpush1.msra.mxu0 0.0
      %4017 = vmatprep.subr.mxu0 0.0
      %4018 = vmatpush1.msra.mxu0 0.0
      %4019 = vmatprep.subr.mxu0 0.0
      %4020 = vmatpush1.msra.mxu0 0.0
      %4021 = vmatprep.subr.mxu0 0.0
      %4022 = vmatpush1.msra.mxu0 0.0
      %4023 = vmatprep.subr.mxu0 0.0
      %4024 = vmatpush1.msra.mxu0 0.0
      %4025 = vmatprep.subr.mxu0 0.0
      %4026 = vmatpush1.msra.mxu0 0.0
      %4027 = vmatprep.subr.mxu0 0.0
      %4028 = vmatpush1.msra.mxu0 0.0
      %4029 = vmatprep.subr.mxu0 0.0
      %4030 = vmatpush1.msra.mxu0 0.0
      %4031 = vmatprep.subr.mxu0 0.0
      %4032 = vmatpush1.msra.mxu0 0.0
      %4033 = vmatprep.subr.mxu0 0.0
      %4034 = vmatpush1.msra.mxu0 0.0
      %4035 = vmatprep.subr.mxu0 0.0
      %4036 = vmatpush1.msra.mxu0 0.0
      %4037 = vmatprep.subr.mxu0 0.0
      %4038 = vmatpush1.msra.mxu0 0.0
      %4039 = vmatprep.subr.mxu0 0.0
      %4040 = vmatpush1.msra.mxu0 0.0
      %4041 = vmatprep.subr.mxu0 0.0
      %4042 = vmatpush1.msra.mxu0 0.0
      %4043 = vmatprep.subr.mxu0 0.0
      %4044 = vmatpush1.msra.mxu0 0.0
      %4045 = vmatprep.subr.mxu0 0.0
      %4046 = vmatpush1.msra.mxu0 0.0
      %4047 = vmatprep.subr.mxu0 0.0
      %4048 = vmatpush1.msra.mxu0 0.0
      %4049 = vmatprep.subr.mxu0 0.0
      %4050 = vmatpush1.msra.mxu0 0.0
      %4051 = vmatprep.subr.mxu0 0.0
      %4052 = vmatpush1.msra.mxu0 0.0
      %4053 = vmatprep.subr.mxu0 0.0
      %4054 = vmatpush1.msra.mxu0 0.0
      %4055 = vmatprep.subr.mxu0 0.0
      %4056 = vmatpush1.msra.mxu0 0.0
      %4057 = vmatprep.mubr.f32.mxu0 0.0
      %4058 = vmatmul.mubr.f32.gmra.mrb[0].mxu0 %v3895
      %v4059 = vpop.f32.mrb[0].mxu0
      %v4060 = vadd.f32 %v3892, %v4059
      %v4061 = vpop.f32.mrb[0].mxu0
      %4062 = vmatprep.mubr.f32.mxu0 0.0
      %4063 = vmatmul.mubr.f32.gmra.mrb[0].mxu0 %v3898
      %v4064 = vpop.f32.mrb[0].mxu0
      %v4065 = vadd.f32 %v3892, %v4064
      %v4066 = vpop.f32.mrb[0].mxu0
      %4067 = vmatprep.mubr.f32.mxu0 0.0
      %4068 = vmatmul.mubr.f32.gmra.mrb[0].mxu0 %v3901
      %v4069 = vpop.f32.mrb[0].mxu0
      %v4070 = vadd.f32 %v3892, %v4069
      %v4071 = vpop.f32.mrb[0].mxu0
      %4072 = vmatprep.mubr.f32.mxu0 0.0
      %4073 = vmatmul.mubr.f32.gmra.mrb[0].mxu0 %v3904
      %v4074 = vpop.f32.mrb[0].mxu0
      %v4075 = vadd.f32 %v3892, %v4074
      %v4076 = vpop.f32.mrb[0].mxu0
      %4077 = vmatprep.mubr.f32.mxu0 0.0
      %4078 = vmatmul.mubr.f32.gmra.mrb[0].mxu0 %v3907
      %v4079 = vpop.f32.mrb[0].mxu0
      %v4080 = vadd.f32 %v3892, %v4079
      %v4081 = vpop.f32.mrb[0].mxu0
      %4082 = vmatprep.mubr.f32.mxu0 0.0
      %4083 = vmatmul.mubr.f32.gmra.mrb[0].mxu0 %v3910
      %v4084 = vpop.f32.mrb[0].mxu0
      %v4085 = vadd.f32 %v3892, %v4084
      %v4086 = vpop.f32.mrb[0].mxu0
      %4087 = vmatprep.mubr.f32.mxu0 0.0
      %4088 = vmatmul.mubr.f32.gmra.mrb[0].mxu0 %v3913
      %v4089 = vpop.f32.mrb[0].mxu0
      %v4090 = vadd.f32 %v3892, %v4089
      %v4091 = vpop.f32.mrb[0].mxu0
      %4092 = vmatprep.mubr.f32.mxu0 0.0
      %4093 = vmatmul.mubr.f32.gmra.mrb[0].mxu0 %v3916
      %v4094 = vpop.f32.mrb[0].mxu0
      %v4095 = vadd.f32 %v3892, %v4094
      %v4096 = vpop.f32.mrb[0].mxu0
      %4097 = vmatprep.mubr.f32.mxu0 0.0
      %4098 = vmatmul.mubr.f32.gmra.mrb[0].mxu0 %v3919
      %v4099 = vpop.f32.mrb[0].mxu0
      %v4100 = vadd.f32 %v3892, %v4099
      %v4101 = vpop.f32.mrb[0].mxu0
      %4102 = vmatprep.mubr.f32.mxu0 0.0
      %4103 = vmatmul.mubr.f32.gmra.mrb[0].mxu0 %v3922
      %v4104 = vpop.f32.mrb[0].mxu0
      %v4105 = vadd.f32 %v3892, %v4104
      %v4106 = vpop.f32.mrb[0].mxu0
      %4107 = vmatprep.mubr.f32.mxu0 0.0
      %4108 = vmatmul.mubr.f32.gmra.mrb[0].mxu0 %v3925
      %v4109 = vpop.f32.mrb[0].mxu0
      %v4110 = vadd.f32 %v3892, %v4109
      %v4111 = vpop.f32.mrb[0].mxu0
      %4112 = vmatprep.mubr.f32.mxu0 0.0
      %4113 = vmatmul.mubr.f32.gmra.mrb[0].mxu0 %v3928
      %v4114 = vpop.f32.mrb[0].mxu0
      %v4115 = vadd.f32 %v3892, %v4114
      %v4116 = vpop.f32.mrb[0].mxu0
      %4117 = vmatprep.mubr.f32.mxu0 0.0
      %4118 = vmatmul.mubr.f32.gmra.mrb[0].mxu0 %v3931
      %v4119 = vpop.f32.mrb[0].mxu0
      %v4120 = vadd.f32 %v3892, %v4119
      %v4121 = vpop.f32.mrb[0].mxu0
      %4122 = vmatprep.mubr.f32.mxu0 0.0
      %4123 = vmatmul.mubr.f32.gmra.mrb[0].mxu0 %v3934
      %v4124 = vpop.f32.mrb[0].mxu0
      %v4125 = vadd.f32 %v3892, %v4124
      %v4126 = vpop.f32.mrb[0].mxu0
      %4127 = vmatprep.mubr.f32.mxu0 0.0
      %4128 = vmatmul.mubr.f32.gmra.mrb[0].mxu0 %v3937
      %v4129 = vpop.f32.mrb[0].mxu0
      %v4130 = vadd.f32 %v3892, %v4129
      %v4131 = vpop.f32.mrb[0].mxu0
      %4132 = vmatprep.mubr.f32.mxu0 0.0
      %4133 = vmatmul.mubr.f32.gmra.mrb[0].mxu0 %v3940
      %v4134 = vpop.f32.mrb[0].mxu0
      %v4135 = vadd.f32 %v3892, %v4134
      %v4136 = vpop.f32.mrb[0].mxu0
      %4137 = vmatprep.mubr.f32.mxu0 0.0
      %4138 = vmatmul.mubr.f32.gmra.mrb[0].mxu0 %v3943
      %v4139 = vpop.f32.mrb[0].mxu0
      %v4140 = vadd.f32 %v3892, %v4139
      %v4141 = vpop.f32.mrb[0].mxu0
      %4142 = vmatprep.mubr.f32.mxu0 0.0
      %4143 = vmatmul.mubr.f32.gmra.mrb[0].mxu0 %v3946
      %v4144 = vpop.f32.mrb[0].mxu0
      %v4145 = vadd.f32 %v3892, %v4144
      %v4146 = vpop.f32.mrb[0].mxu0
      %4147 = vmatprep.mubr.f32.mxu0 0.0
      %4148 = vmatmul.mubr.f32.gmra.mrb[0].mxu0 %v3949
      %v4149 = vpop.f32.mrb[0].mxu0
      %v4150 = vadd.f32 %v3892, %v4149
      %v4151 = vpop.f32.mrb[0].mxu0
      %4152 = vmatprep.mubr.f32.mxu0 0.0
      %4153 = vmatmul.mubr.f32.gmra.mrb[0].mxu0 %v3952
      %v4154 = vpop.f32.mrb[0].mxu0
      %v4155 = vadd.f32 %v3892, %v4154
      %v4156 = vpop.f32.mrb[0].mxu0
      %4157 = vmatprep.mubr.f32.mxu0 0.0
      %4158 = vmatmul.mubr.f32.gmra.mrb[0].mxu0 %v3955
      %v4159 = vpop.f32.mrb[0].mxu0
      %v4160 = vadd.f32 %v3892, %v4159
      %v4161 = vpop.f32.mrb[0].mxu0
      %4162 = vmatprep.mubr.f32.mxu0 0.0
      %4163 = vmatmul.mubr.f32.gmra.mrb[0].mxu0 %v3958
      %v4164 = vpop.f32.mrb[0].mxu0
      %v4165 = vadd.f32 %v3892, %v4164
      %v4166 = vpop.f32.mrb[0].mxu0
      %4167 = vmatprep.mubr.f32.mxu0 0.0
      %4168 = vmatmul.mubr.f32.gmra.mrb[0].mxu0 %v3961
      %v4169 = vpop.f32.mrb[0].mxu0
      %v4170 = vadd.f32 %v3892, %v4169
      %v4171 = vpop.f32.mrb[0].mxu0
      %4172 = vmatprep.mubr.f32.mxu0 0.0
      %4173 = vmatmul.mubr.f32.gmra.mrb[0].mxu0 %v3964
      %v4174 = vpop.f32.mrb[0].mxu0
      %v4175 = vadd.f32 %v3892, %v4174
      %v4176 = vpop.f32.mrb[0].mxu0
      %4177 = vmatprep.mubr.f32.mxu0 0.0
      %4178 = vmatmul.mubr.f32.gmra.mrb[0].mxu0 %v3967
      %v4179 = vpop.f32.mrb[0].mxu0
      %v4180 = vadd.f32 %v3892, %v4179
      %v4181 = vpop.f32.mrb[0].mxu0
      %4182 = vmatprep.mubr.f32.mxu0 0.0
      %4183 = vmatmul.mubr.f32.gmra.mrb[0].mxu0 %v3970
      %v4184 = vpop.f32.mrb[0].mxu0
      %v4185 = vadd.f32 %v3892, %v4184
      %v4186 = vpop.f32.mrb[0].mxu0
      %4187 = vmatprep.mubr.f32.mxu0 0.0
      %4188 = vmatmul.mubr.f32.gmra.mrb[0].mxu0 %v3973
      %v4189 = vpop.f32.mrb[0].mxu0
      %v4190 = vadd.f32 %v3892, %v4189
      %v4191 = vpop.f32.mrb[0].mxu0
      %4192 = vmatprep.mubr.f32.mxu0 0.0
      %4193 = vmatmul.mubr.f32.gmra.mrb[0].mxu0 %v3976
      %v4194 = vpop.f32.mrb[0].mxu0
      %v4195 = vadd.f32 %v3892, %v4194
      %v4196 = vpop.f32.mrb[0].mxu0
      %4197 = vmatprep.mubr.f32.mxu0 0.0
      %4198 = vmatmul.mubr.f32.gmra.mrb[0].mxu0 %v3979
      %v4199 = vpop.f32.mrb[0].mxu0
      %v4200 = vadd.f32 %v3892, %v4199
      %v4201 = vpop.f32.mrb[0].mxu0
      %4202 = vmatprep.mubr.f32.mxu0 0.0
      %4203 = vmatmul.mubr.f32.gmra.mrb[0].mxu0 %v3982
      %v4204 = vpop.f32.mrb[0].mxu0
      %v4205 = vadd.f32 %v3892, %v4204
      %v4206 = vpop.f32.mrb[0].mxu0
      %4207 = vmatprep.mubr.f32.mxu0 0.0
      %4208 = vmatmul.mubr.f32.gmra.mrb[0].mxu0 %v3985
      %v4209 = vpop.f32.mrb[0].mxu0
      %v4210 = vadd.f32 %v3892, %v4209
      %v4211 = vpop.f32.mrb[0].mxu0
      %4212 = vmatprep.mubr.f32.mxu0 0.0
      %4213 = vmatmul.mubr.f32.gmra.mrb[0].mxu0 %v3988
      %v4214 = vpop.f32.mrb[0].mxu0
      %v4215 = vadd.f32 %v3892, %v4214
      %v4216 = vpop.f32.mrb[0].mxu0
      %4217 = vdwg.mxu0
      %v4218 = vld [vmem:[%s219] sm:$0xff]
      %v4219 = vld [vmem:[%s219 + $0x8] sm:$0xff]
      %v4220 = vld [vmem:[%s219 + $0x10] sm:$0xff]
      %v4221 = vld [vmem:[%s219 + $0x18] sm:$0xff]
      %v4222 = vld [vmem:[%s219 + $0x20] sm:$0xff]
      %v4223 = vld [vmem:[%s219 + $0x28] sm:$0xff]
      %v4224 = vld [vmem:[%s219 + $0x30] sm:$0xff]
      %v4225 = vld [vmem:[%s219 + $0x38] sm:$0xff]
      %v4226 = vld [vmem:[%s219 + $0x40] sm:$0xff]
      %v4227 = vld [vmem:[%s219 + $0x48] sm:$0xff]
      %v4228 = vld [vmem:[%s219 + $0x50] sm:$0xff]
      %v4229 = vld [vmem:[%s219 + $0x58] sm:$0xff]
      %v4230 = vld [vmem:[%s219 + $0x60] sm:$0xff]
      %v4231 = vld [vmem:[%s219 + $0x68] sm:$0xff]
      %v4232 = vld [vmem:[%s219 + $0x70] sm:$0xff]
      %v4233 = vld [vmem:[%s219 + $0x78] sm:$0xff]
      %v4234 = vld [vmem:[%s219 + $0x80] sm:$0xff]
      %v4235 = vld [vmem:[%s219 + $0x88] sm:$0xff]
      %v4236 = vld [vmem:[%s219 + $0x90] sm:$0xff]
      %v4237 = vld [vmem:[%s219 + $0x98] sm:$0xff]
      %v4238 = vld [vmem:[%s219 + $0xa0] sm:$0xff]
      %v4239 = vld [vmem:[%s219 + $0xa8] sm:$0xff]
      %v4240 = vld [vmem:[%s219 + $0xb0] sm:$0xff]
      %v4241 = vld [vmem:[%s219 + $0xb8] sm:$0xff]
      %v4242 = vld [vmem:[%s219 + $0xc0] sm:$0xff]
      %v4243 = vld [vmem:[%s219 + $0xc8] sm:$0xff]
      %v4244 = vld [vmem:[%s219 + $0xd0] sm:$0xff]
      %v4245 = vld [vmem:[%s219 + $0xd8] sm:$0xff]
      %v4246 = vld [vmem:[%s219 + $0xe0] sm:$0xff]
      %v4247 = vld [vmem:[%s219 + $0xe8] sm:$0xff]
      %v4248 = vld [vmem:[%s219 + $0xf0] sm:$0xff]
      %v4249 = vld [vmem:[%s219 + $0xf8] sm:$0xff]
      %v4250 = vadd.f32 %v4060, %v4218
      %v4251 = vadd.f32 %v4065, %v4219
      %v4252 = vadd.f32 %v4070, %v4220
      %v4253 = vadd.f32 %v4075, %v4221
      %v4254 = vadd.f32 %v4080, %v4222
      %v4255 = vadd.f32 %v4085, %v4223
      %v4256 = vadd.f32 %v4090, %v4224
      %v4257 = vadd.f32 %v4095, %v4225
      %v4258 = vadd.f32 %v4100, %v4226
      %v4259 = vadd.f32 %v4105, %v4227
      %v4260 = vadd.f32 %v4110, %v4228
      %v4261 = vadd.f32 %v4115, %v4229
      %v4262 = vadd.f32 %v4120, %v4230
      %v4263 = vadd.f32 %v4125, %v4231
      %v4264 = vadd.f32 %v4130, %v4232
      %v4265 = vadd.f32 %v4135, %v4233
      %v4266 = vadd.f32 %v4140, %v4234
      %v4267 = vadd.f32 %v4145, %v4235
      %v4268 = vadd.f32 %v4150, %v4236
      %v4269 = vadd.f32 %v4155, %v4237
      %v4270 = vadd.f32 %v4160, %v4238
      %v4271 = vadd.f32 %v4165, %v4239
      %v4272 = vadd.f32 %v4170, %v4240
      %v4273 = vadd.f32 %v4175, %v4241
      %v4274 = vadd.f32 %v4180, %v4242
      %v4275 = vadd.f32 %v4185, %v4243
      %v4276 = vadd.f32 %v4190, %v4244
      %v4277 = vadd.f32 %v4195, %v4245
      %v4278 = vadd.f32 %v4200, %v4246
      %v4279 = vadd.f32 %v4205, %v4247
      %v4280 = vadd.f32 %v4210, %v4248
      %v4281 = vadd.f32 %v4215, %v4249
      %4282 = vst.msk [vmem:[%s224] sm:$0xff] %vm225, %v4250
      %4283 = vst.msk [vmem:[%s224 + $0x8] sm:$0xff] %vm225, %v4251
      %4284 = vst.msk [vmem:[%s224 + $0x10] sm:$0xff] %vm225, %v4252
      %4285 = vst.msk [vmem:[%s224 + $0x18] sm:$0xff] %vm225, %v4253
      %4286 = vst.msk [vmem:[%s224 + $0x20] sm:$0xff] %vm225, %v4254
      %4287 = vst.msk [vmem:[%s224 + $0x28] sm:$0xff] %vm225, %v4255
      %4288 = vst.msk [vmem:[%s224 + $0x30] sm:$0xff] %vm225, %v4256
      %4289 = vst.msk [vmem:[%s224 + $0x38] sm:$0xff] %vm225, %v4257
      %4290 = vst.msk [vmem:[%s224 + $0x40] sm:$0xff] %vm225, %v4258
      %4291 = vst.msk [vmem:[%s224 + $0x48] sm:$0xff] %vm225, %v4259
      %4292 = vst.msk [vmem:[%s224 + $0x50] sm:$0xff] %vm225, %v4260
      %4293 = vst.msk [vmem:[%s224 + $0x58] sm:$0xff] %vm225, %v4261
      %4294 = vst.msk [vmem:[%s224 + $0x60] sm:$0xff] %vm225, %v4262
      %4295 = vst.msk [vmem:[%s224 + $0x68] sm:$0xff] %vm225, %v4263
      %4296 = vst.msk [vmem:[%s224 + $0x70] sm:$0xff] %vm225, %v4264
      %4297 = vst.msk [vmem:[%s224 + $0x78] sm:$0xff] %vm225, %v4265
      %4298 = vst.msk [vmem:[%s224 + $0x80] sm:$0xff] %vm225, %v4266
      %4299 = vst.msk [vmem:[%s224 + $0x88] sm:$0xff] %vm225, %v4267
      %4300 = vst.msk [vmem:[%s224 + $0x90] sm:$0xff] %vm225, %v4268
      %4301 = vst.msk [vmem:[%s224 + $0x98] sm:$0xff] %vm225, %v4269
      %4302 = vst.msk [vmem:[%s224 + $0xa0] sm:$0xff] %vm225, %v4270
      %4303 = vst.msk [vmem:[%s224 + $0xa8] sm:$0xff] %vm225, %v4271
      %4304 = vst.msk [vmem:[%s224 + $0xb0] sm:$0xff] %vm225, %v4272
      %4305 = vst.msk [vmem:[%s224 + $0xb8] sm:$0xff] %vm225, %v4273
      %4306 = vst.msk [vmem:[%s224 + $0xc0] sm:$0xff] %vm225, %v4274
      %4307 = vst.msk [vmem:[%s224 + $0xc8] sm:$0xff] %vm225, %v4275
      %4308 = vst.msk [vmem:[%s224 + $0xd0] sm:$0xff] %vm225, %v4276
      %4309 = vst.msk [vmem:[%s224 + $0xd8] sm:$0xff] %vm225, %v4277
      %4310 = vst.msk [vmem:[%s224 + $0xe0] sm:$0xff] %vm225, %v4278
      %4311 = vst.msk [vmem:[%s224 + $0xe8] sm:$0xff] %vm225, %v4279
      %4312 = vst.msk [vmem:[%s224 + $0xf0] sm:$0xff] %vm225, %v4280
      %4313 = vst.msk [vmem:[%s224 + $0xf8] sm:$0xff] %vm225, %v4281
      %p4314 = scmp.lt.s32.totalorder %s16, 1
      %s4315 = scalar_select %p4314, %s16, 1
      %s4316 = smul.addr %s4315, 32
      %s4317 = smul.addr %s4316, 8
      %s4318 = scalar_lea.vmem %s5, %s4317
      // Predicated region
      $region41: #{tpu_custom_call.1} parent=39 // pred_check
        %p4319 = pneg %p144
      $region42: #{tpu_custom_call.1} parent=39 // pred_check_branch
        %4321 = sbr.rel (%p4319) target = $region44
      $region43: #{tpu_custom_call.1} parent=39 // pred_region
        _
      $region44: #{tpu_custom_call.1} parent=39 // pred_fallthru
        _
    $region40: #{tpu_custom_call.1} parent=5 // pred_fallthru
      _
    %p4322 = scmp.le.s32.totalorder 2, %s11
    // Predicated region
    $region45: #{tpu_custom_call.1} parent=5 // pred_check
      %p4323 = pneg %p4322
    $region46: #{tpu_custom_call.1} parent=5 // pred_check_branch
      %4325 = sbr.rel (%p4323) target = $region48
    $region47: #{tpu_custom_call.1} parent=5 // pred_region
      %s4326 = ssub.s32 %s11, 2
      // Predicated region
      $region49: #{tpu_custom_call.1} parent=47 // pred_check
        %p4327 = pneg %p150
      $region50: #{tpu_custom_call.1} parent=47 // pred_check_branch
        %4329 = sbr.rel (%p4327) target = $region52
      $region51: #{tpu_custom_call.1} parent=47 // pred_region
        %p4330 = scmp.lt.s32.totalorder %s17, 1
        %s4331 = scalar_select %p4330, %s17, 1
        %s4332 = smul.addr %s4331, 32
        %s4333 = smul.addr %s4332, 8
        %s4334 = scalar_lea.vmem %s5, %s4333
      $region52: #{tpu_custom_call.1} parent=47 // pred_fallthru
        _
    $region48: #{tpu_custom_call.1} parent=5 // pred_fallthru
      _
  $region6: #{tpu_custom_call.1} parent=0 // loop_footer
    %s15 = sadd.s32 1, %s11
  $region7: #{tpu_custom_call.1} parent=0 // loop_footer_branch
    %10 = sbr.rel target = $region3
  $region8: #{tpu_custom_call.1} parent=0 // loop_exit
    _

</llo_original>
